<compile_context>
chip_gen: v7x
topology: tpu7x:2x2x1
jax: 0.10.0
libtpu: 0.0.40
codegen_flags: <defaults>
</compile_context>

<pallas_src>
import functools

import jax
import jax.numpy as jnp
from jax.experimental import pallas as pl
from jax.experimental.pallas import tpu as pltpu


# ----------------------------------------------------------------- fused kernel
def speaker_encoder_kernel(
    x_ref,        # (T*B, D)   time-major input, flattened over (T, B)
    w_ref,        # (Rw, 4H)   packed LSTM weights [Wih1|Whh1|b1|Wih2'|Whh2|b2'|Wih3'|Whh3|b3']
    e_ref,        # (Re, 128)  packed epilogue weights [Wp3|bp3|avg], zero lane-padded
    wb_ref,       # (2,)       [w, b] scalars in SMEM
    emb_ref,      # out (B, P)
    sim_ref,      # out (B, N)
    *, n_time, n_batch, n_hidden, n_proj, n_spk, w_offs, e_offs):
    T, B, H, P, N = n_time, n_batch, n_hidden, n_proj, n_spk
    G = 4 * H
    D = x_ref.shape[1]
    f32 = jnp.float32
    (o_wih1, o_whh1, o_b1, o_wih2, o_whh2, o_b2, o_wih3, o_whh3, o_b3) = w_offs
    (o_wp3, o_bp3, o_avg) = e_offs

    # Static row slices of the packed weight slab (free; sublane-aligned).
    wih1 = w_ref[o_wih1:o_wih1 + D, :]
    whh1 = w_ref[o_whh1:o_whh1 + H, :]
    b1 = w_ref[o_b1:o_b1 + 1, :]
    wih2 = w_ref[o_wih2:o_wih2 + H, :]      # project1 already folded in
    whh2 = w_ref[o_whh2:o_whh2 + H, :]
    b2 = w_ref[o_b2:o_b2 + 1, :]
    wih3 = w_ref[o_wih3:o_wih3 + H, :]      # project2 already folded in
    whh3 = w_ref[o_whh3:o_whh3 + H, :]
    b3 = w_ref[o_b3:o_b3 + 1, :]

    # Layer-1 input projection hoisted out of the recurrence: one MXU slab op,
    # bias added with a single whole-slab broadcast.
    xw1 = jnp.dot(x_ref[...], wih1, preferred_element_type=f32) + b1       # (T*B, 4H)
    # Bias broadcasts for layers 2/3 hoisted out of the unrolled loop.
    b2b = jnp.broadcast_to(b2, (B, G))
    b3b = jnp.broadcast_to(b3, (B, G))

    def cell(gates, c):
        # Whole-tile activations: 2 full (B,4H) EUP pushes instead of 4 sliced.
        sig = jax.nn.sigmoid(gates)
        tah = jnp.tanh(gates)
        i_g = sig[:, 0 * H:1 * H]           # PyTorch gate order i, f, g, o
        f_g = sig[:, 1 * H:2 * H]
        g_g = tah[:, 2 * H:3 * H]
        o_g = sig[:, 3 * H:4 * H]
        c_new = f_g * c + i_g * g_g
        h_new = o_g * jnp.tanh(c_new)
        return h_new, c_new

    z = jnp.zeros((B, H), f32)
    h1 = h2 = h3 = z
    c1 = c2 = c3 = z
    h1_pipe = h2_pipe = z                   # layer k-1 output awaiting layer k
    # Skewed wavefront: at step s layer 1 does time s, layer 2 time s-1,
    # layer 3 time s-2 -> the three per-step recurrences are independent.
    for s in range(T + 2):                  # small static T -> fully unrolled
        l2_in, l3_in = h1_pipe, h2_pipe
        if s < T:
            g1 = xw1[s * B:(s + 1) * B, :] + jnp.dot(
                h1, whh1, preferred_element_type=f32)
            h1, c1 = cell(g1, c1)
            h1_pipe = h1
        if 1 <= s <= T:
            g2 = (jnp.dot(l2_in, wih2, preferred_element_type=f32)
                  + jnp.dot(h2, whh2, preferred_element_type=f32) + b2b)
            h2, c2 = cell(g2, c2)
            h2_pipe = h2
        if 2 <= s:
            g3 = (jnp.dot(l3_in, wih3, preferred_element_type=f32)
                  + jnp.dot(h3, whh3, preferred_element_type=f32) + b3b)
            h3, c3 = cell(g3, c3)

    # Final projection; Wp3/bp3 are zero-padded to 128 lanes so lanes >= P of
    # emb are exactly 0 and the reductions below are unaffected by padding.
    wp3 = e_ref[o_wp3:o_wp3 + H, :]
    bp3 = e_ref[o_bp3:o_bp3 + 1, :]
    emb = jnp.dot(h3, wp3, preferred_element_type=f32) + bp3               # (B, 128)

    # Whole-tensor Frobenius normalization (torch: x / torch.norm(x)).
    row_sq = jnp.sum(emb * emb, axis=-1, keepdims=True)                    # (B, 1)
    fro_inv = jax.lax.rsqrt(jnp.sum(row_sq, keepdims=True))                # (1, 1)
    emb_n = emb * fro_inv
    emb_ref[...] = emb_n[:, :P]

    # GE2E similarity (inclusive centroids, exactly as the torch reference):
    # cos(b,n) = <emb_n[b], cent[n]> / (max(|emb_n[b]|,eps) * max(|cent[n]|,eps))
    eps2 = jnp.float32(1e-16)               # eps = 1e-8 on the (squared) norms
    avg = e_ref[o_avg:o_avg + N, 0:B]                                      # (N, B)
    cent = jnp.dot(avg, emb_n, preferred_element_type=f32)                 # (N, 128)
    cn_sq = jnp.sum(cent * cent, axis=-1, keepdims=True)                   # (N, 1)
    cent_u = cent * jax.lax.rsqrt(jnp.maximum(cn_sq, eps2))                # unit rows
    dots = jax.lax.dot_general(emb_n, cent_u, (((1,), (1,)), ((), ())),
                               preferred_element_type=f32)                 # (B, N)
    inv_rn = jax.lax.rsqrt(jnp.maximum(row_sq * (fro_inv * fro_inv), eps2))
    sim_ref[...] = (wb_ref[0] * inv_rn) * dots + wb_ref[1]                 # w*cos + b


# --------------------------------------------------------------- host packing
def _pack_rows(pieces, lane_width=None):
    """Row-stack 2-D arrays into one slab; each piece row-padded to a multiple
    of 8 sublanes (and zero lane-padded to lane_width if given).
    Returns (slab, row_offsets)."""
    padded, offs, off = [], [], 0
    for a in pieces:
        if lane_width is not None and a.shape[1] < lane_width:
            a = jnp.pad(a, ((0, 0), (0, lane_width - a.shape[1])))
        offs.append(off)
        rpad = (-a.shape[0]) % 8
        if rpad:
            a = jnp.pad(a, ((0, rpad), (0, 0)))
        padded.append(a)
        off += a.shape[0]
    return jnp.concatenate(padded, axis=0), tuple(offs)


# --------------------------------------------------------------------- forward
def speaker_encoder_forward(x, params, n_spk, m_utt):
    # x: (T, B, D) time-major, B = n_spk * m_utt.
    # nn.LSTM dropout is a no-op for single-layer LSTMs (and eval) -> omitted.
    T, B, D = x.shape
    (wih1, whh1, b1, wp1, bp1) = params["layers"][0]
    (wih2, whh2, b2, wp2, bp2) = params["layers"][1]
    (wih3, whh3, b3, wp3, bp3) = params["layers"][2]
    H = whh1.shape[0]
    P = wp3.shape[1]
    hi = jax.lax.Precision.HIGHEST

    # Fold each per-timestep Linear into the next LSTM's input projection
    # (exact: there is no nonlinearity between them).
    wih2f = jnp.dot(wp1, wih2, precision=hi)            # (H, 4H)
    b2f = jnp.dot(bp1, wih2, precision=hi) + b2         # (1, 4H)
    wih3f = jnp.dot(wp2, wih3, precision=hi)
    b3f = jnp.dot(bp2, wih3, precision=hi) + b3

    # Inclusive-centroid averaging matrix (N, B): 1/M on own-speaker columns.
    avg = jnp.repeat(jnp.eye(n_spk, dtype=jnp.float32), m_utt, axis=1) / m_utt

    # Pack everything into two slabs -> 3 VMEM DMAs + 1 SMEM instead of ~18.
    w_slab, w_offs = _pack_rows(
        [wih1, whh1, b1, wih2f, whh2, b2f, wih3f, whh3, b3f])
    lane = ((max(P, B, 128) + 127) // 128) * 128
    e_slab, e_offs = _pack_rows([wp3, bp3, avg], lane_width=lane)

    x2d = x.reshape(T * B, D)       # B = 8 -> per-timestep row slices stay tile-aligned

    kernel = functools.partial(
        speaker_encoder_kernel, n_time=T, n_batch=B, n_hidden=H, n_proj=P,
        n_spk=n_spk, w_offs=w_offs, e_offs=e_offs)
    vmem = pl.BlockSpec(memory_space=pltpu.MemorySpace.VMEM)
    smem = pl.BlockSpec(memory_space=pltpu.MemorySpace.SMEM)
    x_emb, sim = pl.pallas_call(
        kernel,
        out_shape=(jax.ShapeDtypeStruct((B, P), jnp.float32),
                   jax.ShapeDtypeStruct((B, n_spk), jnp.float32)),
        in_specs=[vmem, vmem, vmem, smem],
        out_specs=(vmem, vmem),
    )(x2d, w_slab, e_slab, params["wb"])
    return x_emb, sim
    # TODO(synk): load_model (checkpoint loading) intentionally not translated.


# ------------------------------------------------------- pure-JAX reference
def reference_forward(x, params, n_spk, m_utt):
    """Unfolded, layer-sequential reference matching the torch forward."""
    hi = jax.lax.Precision.HIGHEST
    f32 = jnp.float32

    def lstm(inp, wih, whh, b):
        T, B, _ = inp.shape
        H = whh.shape[0]
        h = jnp.zeros((B, H), f32)
        c = jnp.zeros((B, H), f32)
        hs = []
        for t in range(T):
            gates = (jnp.dot(inp[t], wih, precision=hi)
                     + jnp.dot(h, whh, precision=hi) + b)
            i = jax.nn.sigmoid(gates[:, :H])
            f = jax.nn.sigmoid(gates[:, H:2 * H])
            g = jnp.tanh(gates[:, 2 * H:3 * H])
            o = jax.nn.sigmoid(gates[:, 3 * H:])
            c = f * c + i * g
            h = o * jnp.tanh(c)
            hs.append(h)
        return jnp.stack(hs, axis=0)

    a = x
    for (wih, whh, b, wp, bp) in params["layers"]:
        hseq = lstm(a, wih, whh, b)
        a = jnp.dot(hseq, wp, precision=hi) + bp        # per-timestep Linear
    emb = a[-1]
    emb = emb / jnp.sqrt(jnp.sum(emb * emb))            # torch.norm (Frobenius)

    N, M = n_spk, m_utt
    cent = emb.reshape(N, M, -1).mean(axis=1)           # inclusive centroids
    eps = 1e-8
    en = jnp.maximum(jnp.sqrt(jnp.sum(emb * emb, axis=-1, keepdims=True)), eps)
    cn = jnp.maximum(jnp.sqrt(jnp.sum(cent * cent, axis=-1, keepdims=True)), eps)
    cos = jnp.dot(emb, cent.T, precision=hi) / (en * cn.T)
    return emb, params["wb"][0] * cos + params["wb"][1]


# ------------------------------------------------------------------ parameters
def orthogonal(key, rows, cols):
    a = jax.random.normal(key, (rows, cols), jnp.float32)
    q, r = jnp.linalg.qr(a)
    return q * jnp.sign(jnp.diagonal(r))[None, :]


def make_lstm_params(key, din, hidden):
    k1, k2, k3 = jax.random.split(key, 3)
    # torch weight_ih_l0 (4H, Din) / weight_hh_l0 (4H, H), orthogonal init,
    # transposed so gate columns are laid out [i|f|g|o] across 4H = one lane tile.
    w_ih = orthogonal(k1, 4 * hidden, din).T       # (Din, 4H)
    w_hh = orthogonal(k2, 4 * hidden, hidden).T    # (H, 4H)
    b = 0.01 * jax.random.normal(k3, (1, 4 * hidden), jnp.float32)  # b_ih + b_hh
    return w_ih, w_hh, b


def make_linear_params(key, hidden, proj):
    k1, k2 = jax.random.split(key)
    w = 0.02 * jax.random.normal(k1, (proj, hidden), jnp.float32)   # init.normal_(0, 0.02)
    b = 0.01 * jax.random.normal(k2, (1, proj), jnp.float32)
    return w.T, b                                                   # (H, P), (1, P)


if __name__ == "__main__":
    N, M = 2, 4                  # speakers, utterances per speaker -> batch = N*M
    T, D, H, P = 6, 16, 32, 16   # seq len, input_size, hidden_size, project_size
    B = N * M

    key = jax.random.PRNGKey(0)
    keys = jax.random.split(key, 8)
    x = jax.random.normal(keys[0], (T, B, D), jnp.float32)

    layers = []
    din = D
    for i in range(3):
        wih, whh, b = make_lstm_params(keys[1 + 2 * i], din, H)
        wp, bp = make_linear_params(keys[2 + 2 * i], H, P)
        layers.append((wih, whh, b, wp, bp))
        din = P
    params = {"layers": layers, "wb": jnp.array([10.0, -5.0], jnp.float32)}

    x_emb, sim = speaker_encoder_forward(x, params, N, M)
    jax.block_until_ready((x_emb, sim))
    assert x_emb.shape == (B, P) and sim.shape == (B, N)

    # Correctness check against the unfolded, layer-sequential reference.
    # Tolerances leave margin for MXU f32 pass differences + fp reassociation.
    ref_emb, ref_sim = reference_forward(x, params, N, M)
    assert bool(jnp.all(jnp.isfinite(x_emb))) and bool(jnp.all(jnp.isfinite(sim)))
    assert bool(jnp.allclose(x_emb, ref_emb, atol=5e-3, rtol=5e-3))
    assert bool(jnp.allclose(sim, ref_sim, atol=2e-2, rtol=2e-2))
    print("KERNEL_OK")
</pallas_src>

<mosaic_0001>
module attributes {stable_mosaic.version = 11 : i64} {
  func.func @speaker_encoder_kernel(%arg0: memref<48x16xf32, #tpu.memory_space<vmem>>, %arg1: memref<200x128xf32, #tpu.memory_space<vmem>>, %arg2: memref<48x128xf32, #tpu.memory_space<vmem>>, %arg3: memref<2xf32, #tpu.memory_space<smem>>, %arg4: memref<8x16xf32, #tpu.memory_space<vmem>>, %arg5: memref<8x2xf32, #tpu.memory_space<vmem>>) attributes {dimension_semantics = [], scalar_prefetch = 0 : i64, scratch_operands = 0 : i64, tpu.core_type = #tpu.core_type<tc>} {
    %c0 = arith.constant 0 : index
    %c0_0 = arith.constant 0 : index
    %0 = vector.load %arg1[%c0, %c0_0] : memref<200x128xf32, #tpu.memory_space<vmem>>, vector<16x128xf32>
    %c16 = arith.constant 16 : index
    %c0_1 = arith.constant 0 : index
    %1 = vector.load %arg1[%c16, %c0_1] : memref<200x128xf32, #tpu.memory_space<vmem>>, vector<32x128xf32>
    %c48 = arith.constant 48 : index
    %c0_2 = arith.constant 0 : index
    %2 = vector.load %arg1[%c48, %c0_2] : memref<200x128xf32, #tpu.memory_space<vmem>>, vector<1x128xf32>
    %c56 = arith.constant 56 : index
    %c0_3 = arith.constant 0 : index
    %3 = vector.load %arg1[%c56, %c0_3] : memref<200x128xf32, #tpu.memory_space<vmem>>, vector<32x128xf32>
    %c88 = arith.constant 88 : index
    %c0_4 = arith.constant 0 : index
    %4 = vector.load %arg1[%c88, %c0_4] : memref<200x128xf32, #tpu.memory_space<vmem>>, vector<32x128xf32>
    %c120 = arith.constant 120 : index
    %c0_5 = arith.constant 0 : index
    %5 = vector.load %arg1[%c120, %c0_5] : memref<200x128xf32, #tpu.memory_space<vmem>>, vector<1x128xf32>
    %c128 = arith.constant 128 : index
    %c0_6 = arith.constant 0 : index
    %6 = vector.load %arg1[%c128, %c0_6] : memref<200x128xf32, #tpu.memory_space<vmem>>, vector<32x128xf32>
    %c160 = arith.constant 160 : index
    %c0_7 = arith.constant 0 : index
    %7 = vector.load %arg1[%c160, %c0_7] : memref<200x128xf32, #tpu.memory_space<vmem>>, vector<32x128xf32>
    %c192 = arith.constant 192 : index
    %c0_8 = arith.constant 0 : index
    %8 = vector.load %arg1[%c192, %c0_8] : memref<200x128xf32, #tpu.memory_space<vmem>>, vector<1x128xf32>
    %c0_9 = arith.constant 0 : index
    %c0_10 = arith.constant 0 : index
    %9 = vector.load %arg0[%c0_9, %c0_10] : memref<48x16xf32, #tpu.memory_space<vmem>>, vector<48x16xf32>
    %cst = arith.constant dense<0.000000e+00> : vector<48x128xf32>
    %10 = tpu.matmul %9, %0, %cst {dimension_numbers = #tpu.dot_dimension_numbers<[1], [0], [0], [1], [0, 0, 1, 1], [], []>} : vector<48x16xf32>, vector<16x128xf32>, vector<48x128xf32> -> vector<48x128xf32>
    %11 = vector.broadcast %2 : vector<1x128xf32> to vector<48x128xf32>
    %12 = arith.addf %10, %11 : vector<48x128xf32>
    %13 = vector.shape_cast %5 : vector<1x128xf32> to vector<1x128xf32>
    %14 = vector.broadcast %13 : vector<1x128xf32> to vector<8x128xf32>
    %15 = vector.shape_cast %8 : vector<1x128xf32> to vector<1x128xf32>
    %16 = vector.broadcast %15 : vector<1x128xf32> to vector<8x128xf32>
    %cst_11 = arith.constant 0.000000e+00 : f32
    %17 = vector.broadcast %cst_11 : f32 to vector<8x32xf32>
    %18 = vector.extract_strided_slice %12 {offsets = [0, 0], sizes = [8, 128], strides = [1, 1]} : vector<48x128xf32> to vector<8x128xf32>
    %cst_12 = arith.constant dense<0.000000e+00> : vector<8x128xf32>
    %19 = tpu.matmul %17, %1, %cst_12 {dimension_numbers = #tpu.dot_dimension_numbers<[1], [0], [0], [1], [0, 0, 1, 1], [], []>} : vector<8x32xf32>, vector<32x128xf32>, vector<8x128xf32> -> vector<8x128xf32>
    %20 = arith.addf %18, %19 : vector<8x128xf32>
    %21 = arith.negf %20 : vector<8x128xf32>
    %22 = math.exp %21 : vector<8x128xf32>
    %cst_13 = arith.constant 1.000000e+00 : f32
    %23 = vector.broadcast %cst_13 : f32 to vector<8x128xf32>
    %24 = arith.addf %23, %22 : vector<8x128xf32>
    %25 = arith.divf %23, %24 : vector<8x128xf32>
    %26 = math.tanh %20 : vector<8x128xf32>
    %27 = vector.extract_strided_slice %25 {offsets = [0, 0], sizes = [8, 32], strides = [1, 1]} : vector<8x128xf32> to vector<8x32xf32>
    %28 = vector.extract_strided_slice %25 {offsets = [0, 32], sizes = [8, 32], strides = [1, 1]} : vector<8x128xf32> to vector<8x32xf32>
    %29 = vector.extract_strided_slice %26 {offsets = [0, 64], sizes = [8, 32], strides = [1, 1]} : vector<8x128xf32> to vector<8x32xf32>
    %30 = vector.extract_strided_slice %25 {offsets = [0, 96], sizes = [8, 32], strides = [1, 1]} : vector<8x128xf32> to vector<8x32xf32>
    %31 = arith.mulf %28, %17 : vector<8x32xf32>
    %32 = arith.mulf %27, %29 : vector<8x32xf32>
    %33 = arith.addf %31, %32 : vector<8x32xf32>
    %34 = math.tanh %33 : vector<8x32xf32>
    %35 = arith.mulf %30, %34 : vector<8x32xf32>
    %36 = vector.extract_strided_slice %12 {offsets = [8, 0], sizes = [8, 128], strides = [1, 1]} : vector<48x128xf32> to vector<8x128xf32>
    %cst_14 = arith.constant dense<0.000000e+00> : vector<8x128xf32>
    %37 = tpu.matmul %35, %1, %cst_14 {dimension_numbers = #tpu.dot_dimension_numbers<[1], [0], [0], [1], [0, 0, 1, 1], [], []>} : vector<8x32xf32>, vector<32x128xf32>, vector<8x128xf32> -> vector<8x128xf32>
    %38 = arith.addf %36, %37 : vector<8x128xf32>
    %39 = arith.negf %38 : vector<8x128xf32>
    %40 = math.exp %39 : vector<8x128xf32>
    %cst_15 = arith.constant 1.000000e+00 : f32
    %41 = vector.broadcast %cst_15 : f32 to vector<8x128xf32>
    %42 = arith.addf %41, %40 : vector<8x128xf32>
    %43 = arith.divf %41, %42 : vector<8x128xf32>
    %44 = math.tanh %38 : vector<8x128xf32>
    %45 = vector.extract_strided_slice %43 {offsets = [0, 0], sizes = [8, 32], strides = [1, 1]} : vector<8x128xf32> to vector<8x32xf32>
    %46 = vector.extract_strided_slice %43 {offsets = [0, 32], sizes = [8, 32], strides = [1, 1]} : vector<8x128xf32> to vector<8x32xf32>
    %47 = vector.extract_strided_slice %44 {offsets = [0, 64], sizes = [8, 32], strides = [1, 1]} : vector<8x128xf32> to vector<8x32xf32>
    %48 = vector.extract_strided_slice %43 {offsets = [0, 96], sizes = [8, 32], strides = [1, 1]} : vector<8x128xf32> to vector<8x32xf32>
    %49 = arith.mulf %46, %33 : vector<8x32xf32>
    %50 = arith.mulf %45, %47 : vector<8x32xf32>
    %51 = arith.addf %49, %50 : vector<8x32xf32>
    %52 = math.tanh %51 : vector<8x32xf32>
    %53 = arith.mulf %48, %52 : vector<8x32xf32>
    %cst_16 = arith.constant dense<0.000000e+00> : vector<8x128xf32>
    %54 = tpu.matmul %35, %3, %cst_16 {dimension_numbers = #tpu.dot_dimension_numbers<[1], [0], [0], [1], [0, 0, 1, 1], [], []>} : vector<8x32xf32>, vector<32x128xf32>, vector<8x128xf32> -> vector<8x128xf32>
    %cst_17 = arith.constant dense<0.000000e+00> : vector<8x128xf32>
    %55 = tpu.matmul %17, %4, %cst_17 {dimension_numbers = #tpu.dot_dimension_numbers<[1], [0], [0], [1], [0, 0, 1, 1], [], []>} : vector<8x32xf32>, vector<32x128xf32>, vector<8x128xf32> -> vector<8x128xf32>
    %56 = arith.addf %54, %55 : vector<8x128xf32>
    %57 = arith.addf %56, %14 : vector<8x128xf32>
    %58 = arith.negf %57 : vector<8x128xf32>
    %59 = math.exp %58 : vector<8x128xf32>
    %cst_18 = arith.constant 1.000000e+00 : f32
    %60 = vector.broadcast %cst_18 : f32 to vector<8x128xf32>
    %61 = arith.addf %60, %59 : vector<8x128xf32>
    %62 = arith.divf %60, %61 : vector<8x128xf32>
    %63 = math.tanh %57 : vector<8x128xf32>
    %64 = vector.extract_strided_slice %62 {offsets = [0, 0], sizes = [8, 32], strides = [1, 1]} : vector<8x128xf32> to vector<8x32xf32>
    %65 = vector.extract_strided_slice %62 {offsets = [0, 32], sizes = [8, 32], strides = [1, 1]} : vector<8x128xf32> to vector<8x32xf32>
    %66 = vector.extract_strided_slice %63 {offsets = [0, 64], sizes = [8, 32], strides = [1, 1]} : vector<8x128xf32> to vector<8x32xf32>
    %67 = vector.extract_strided_slice %62 {offsets = [0, 96], sizes = [8, 32], strides = [1, 1]} : vector<8x128xf32> to vector<8x32xf32>
    %68 = arith.mulf %65, %17 : vector<8x32xf32>
    %69 = arith.mulf %64, %66 : vector<8x32xf32>
    %70 = arith.addf %68, %69 : vector<8x32xf32>
    %71 = math.tanh %70 : vector<8x32xf32>
    %72 = arith.mulf %67, %71 : vector<8x32xf32>
    %73 = vector.extract_strided_slice %12 {offsets = [16, 0], sizes = [8, 128], strides = [1, 1]} : vector<48x128xf32> to vector<8x128xf32>
    %cst_19 = arith.constant dense<0.000000e+00> : vector<8x128xf32>
    %74 = tpu.matmul %53, %1, %cst_19 {dimension_numbers = #tpu.dot_dimension_numbers<[1], [0], [0], [1], [0, 0, 1, 1], [], []>} : vector<8x32xf32>, vector<32x128xf32>, vector<8x128xf32> -> vector<8x128xf32>
    %75 = arith.addf %73, %74 : vector<8x128xf32>
    %76 = arith.negf %75 : vector<8x128xf32>
    %77 = math.exp %76 : vector<8x128xf32>
    %cst_20 = arith.constant 1.000000e+00 : f32
    %78 = vector.broadcast %cst_20 : f32 to vector<8x128xf32>
    %79 = arith.addf %78, %77 : vector<8x128xf32>
    %80 = arith.divf %78, %79 : vector<8x128xf32>
    %81 = math.tanh %75 : vector<8x128xf32>
    %82 = vector.extract_strided_slice %80 {offsets = [0, 0], sizes = [8, 32], strides = [1, 1]} : vector<8x128xf32> to vector<8x32xf32>
    %83 = vector.extract_strided_slice %80 {offsets = [0, 32], sizes = [8, 32], strides = [1, 1]} : vector<8x128xf32> to vector<8x32xf32>
    %84 = vector.extract_strided_slice %81 {offsets = [0, 64], sizes = [8, 32], strides = [1, 1]} : vector<8x128xf32> to vector<8x32xf32>
    %85 = vector.extract_strided_slice %80 {offsets = [0, 96], sizes = [8, 32], strides = [1, 1]} : vector<8x128xf32> to vector<8x32xf32>
    %86 = arith.mulf %83, %51 : vector<8x32xf32>
    %87 = arith.mulf %82, %84 : vector<8x32xf32>
    %88 = arith.addf %86, %87 : vector<8x32xf32>
    %89 = math.tanh %88 : vector<8x32xf32>
    %90 = arith.mulf %85, %89 : vector<8x32xf32>
    %cst_21 = arith.constant dense<0.000000e+00> : vector<8x128xf32>
    %91 = tpu.matmul %53, %3, %cst_21 {dimension_numbers = #tpu.dot_dimension_numbers<[1], [0], [0], [1], [0, 0, 1, 1], [], []>} : vector<8x32xf32>, vector<32x128xf32>, vector<8x128xf32> -> vector<8x128xf32>
    %cst_22 = arith.constant dense<0.000000e+00> : vector<8x128xf32>
    %92 = tpu.matmul %72, %4, %cst_22 {dimension_numbers = #tpu.dot_dimension_numbers<[1], [0], [0], [1], [0, 0, 1, 1], [], []>} : vector<8x32xf32>, vector<32x128xf32>, vector<8x128xf32> -> vector<8x128xf32>
    %93 = arith.addf %91, %92 : vector<8x128xf32>
    %94 = arith.addf %93, %14 : vector<8x128xf32>
    %95 = arith.negf %94 : vector<8x128xf32>
    %96 = math.exp %95 : vector<8x128xf32>
    %cst_23 = arith.constant 1.000000e+00 : f32
    %97 = vector.broadcast %cst_23 : f32 to vector<8x128xf32>
    %98 = arith.addf %97, %96 : vector<8x128xf32>
    %99 = arith.divf %97, %98 : vector<8x128xf32>
    %100 = math.tanh %94 : vector<8x128xf32>
    %101 = vector.extract_strided_slice %99 {offsets = [0, 0], sizes = [8, 32], strides = [1, 1]} : vector<8x128xf32> to vector<8x32xf32>
    %102 = vector.extract_strided_slice %99 {offsets = [0, 32], sizes = [8, 32], strides = [1, 1]} : vector<8x128xf32> to vector<8x32xf32>
    %103 = vector.extract_strided_slice %100 {offsets = [0, 64], sizes = [8, 32], strides = [1, 1]} : vector<8x128xf32> to vector<8x32xf32>
    %104 = vector.extract_strided_slice %99 {offsets = [0, 96], sizes = [8, 32], strides = [1, 1]} : vector<8x128xf32> to vector<8x32xf32>
    %105 = arith.mulf %102, %70 : vector<8x32xf32>
    %106 = arith.mulf %101, %103 : vector<8x32xf32>
    %107 = arith.addf %105, %106 : vector<8x32xf32>
    %108 = math.tanh %107 : vector<8x32xf32>
    %109 = arith.mulf %104, %108 : vector<8x32xf32>
    %cst_24 = arith.constant dense<0.000000e+00> : vector<8x128xf32>
    %110 = tpu.matmul %72, %6, %cst_24 {dimension_numbers = #tpu.dot_dimension_numbers<[1], [0], [0], [1], [0, 0, 1, 1], [], []>} : vector<8x32xf32>, vector<32x128xf32>, vector<8x128xf32> -> vector<8x128xf32>
    %cst_25 = arith.constant dense<0.000000e+00> : vector<8x128xf32>
    %111 = tpu.matmul %17, %7, %cst_25 {dimension_numbers = #tpu.dot_dimension_numbers<[1], [0], [0], [1], [0, 0, 1, 1], [], []>} : vector<8x32xf32>, vector<32x128xf32>, vector<8x128xf32> -> vector<8x128xf32>
    %112 = arith.addf %110, %111 : vector<8x128xf32>
    %113 = arith.addf %112, %16 : vector<8x128xf32>
    %114 = arith.negf %113 : vector<8x128xf32>
    %115 = math.exp %114 : vector<8x128xf32>
    %cst_26 = arith.constant 1.000000e+00 : f32
    %116 = vector.broadcast %cst_26 : f32 to vector<8x128xf32>
    %117 = arith.addf %116, %115 : vector<8x128xf32>
    %118 = arith.divf %116, %117 : vector<8x128xf32>
    %119 = math.tanh %113 : vector<8x128xf32>
    %120 = vector.extract_strided_slice %118 {offsets = [0, 0], sizes = [8, 32], strides = [1, 1]} : vector<8x128xf32> to vector<8x32xf32>
    %121 = vector.extract_strided_slice %118 {offsets = [0, 32], sizes = [8, 32], strides = [1, 1]} : vector<8x128xf32> to vector<8x32xf32>
    %122 = vector.extract_strided_slice %119 {offsets = [0, 64], sizes = [8, 32], strides = [1, 1]} : vector<8x128xf32> to vector<8x32xf32>
    %123 = vector.extract_strided_slice %118 {offsets = [0, 96], sizes = [8, 32], strides = [1, 1]} : vector<8x128xf32> to vector<8x32xf32>
    %124 = arith.mulf %121, %17 : vector<8x32xf32>
    %125 = arith.mulf %120, %122 : vector<8x32xf32>
    %126 = arith.addf %124, %125 : vector<8x32xf32>
    %127 = math.tanh %126 : vector<8x32xf32>
    %128 = arith.mulf %123, %127 : vector<8x32xf32>
    %129 = vector.extract_strided_slice %12 {offsets = [24, 0], sizes = [8, 128], strides = [1, 1]} : vector<48x128xf32> to vector<8x128xf32>
    %cst_27 = arith.constant dense<0.000000e+00> : vector<8x128xf32>
    %130 = tpu.matmul %90, %1, %cst_27 {dimension_numbers = #tpu.dot_dimension_numbers<[1], [0], [0], [1], [0, 0, 1, 1], [], []>} : vector<8x32xf32>, vector<32x128xf32>, vector<8x128xf32> -> vector<8x128xf32>
    %131 = arith.addf %129, %130 : vector<8x128xf32>
    %132 = arith.negf %131 : vector<8x128xf32>
    %133 = math.exp %132 : vector<8x128xf32>
    %cst_28 = arith.constant 1.000000e+00 : f32
    %134 = vector.broadcast %cst_28 : f32 to vector<8x128xf32>
    %135 = arith.addf %134, %133 : vector<8x128xf32>
    %136 = arith.divf %134, %135 : vector<8x128xf32>
    %137 = math.tanh %131 : vector<8x128xf32>
    %138 = vector.extract_strided_slice %136 {offsets = [0, 0], sizes = [8, 32], strides = [1, 1]} : vector<8x128xf32> to vector<8x32xf32>
    %139 = vector.extract_strided_slice %136 {offsets = [0, 32], sizes = [8, 32], strides = [1, 1]} : vector<8x128xf32> to vector<8x32xf32>
    %140 = vector.extract_strided_slice %137 {offsets = [0, 64], sizes = [8, 32], strides = [1, 1]} : vector<8x128xf32> to vector<8x32xf32>
    %141 = vector.extract_strided_slice %136 {offsets = [0, 96], sizes = [8, 32], strides = [1, 1]} : vector<8x128xf32> to vector<8x32xf32>
    %142 = arith.mulf %139, %88 : vector<8x32xf32>
    %143 = arith.mulf %138, %140 : vector<8x32xf32>
    %144 = arith.addf %142, %143 : vector<8x32xf32>
    %145 = math.tanh %144 : vector<8x32xf32>
    %146 = arith.mulf %141, %145 : vector<8x32xf32>
    %cst_29 = arith.constant dense<0.000000e+00> : vector<8x128xf32>
    %147 = tpu.matmul %90, %3, %cst_29 {dimension_numbers = #tpu.dot_dimension_numbers<[1], [0], [0], [1], [0, 0, 1, 1], [], []>} : vector<8x32xf32>, vector<32x128xf32>, vector<8x128xf32> -> vector<8x128xf32>
    %cst_30 = arith.constant dense<0.000000e+00> : vector<8x128xf32>
    %148 = tpu.matmul %109, %4, %cst_30 {dimension_numbers = #tpu.dot_dimension_numbers<[1], [0], [0], [1], [0, 0, 1, 1], [], []>} : vector<8x32xf32>, vector<32x128xf32>, vector<8x128xf32> -> vector<8x128xf32>
    %149 = arith.addf %147, %148 : vector<8x128xf32>
    %150 = arith.addf %149, %14 : vector<8x128xf32>
    %151 = arith.negf %150 : vector<8x128xf32>
    %152 = math.exp %151 : vector<8x128xf32>
    %cst_31 = arith.constant 1.000000e+00 : f32
    %153 = vector.broadcast %cst_31 : f32 to vector<8x128xf32>
    %154 = arith.addf %153, %152 : vector<8x128xf32>
    %155 = arith.divf %153, %154 : vector<8x128xf32>
    %156 = math.tanh %150 : vector<8x128xf32>
    %157 = vector.extract_strided_slice %155 {offsets = [0, 0], sizes = [8, 32], strides = [1, 1]} : vector<8x128xf32> to vector<8x32xf32>
    %158 = vector.extract_strided_slice %155 {offsets = [0, 32], sizes = [8, 32], strides = [1, 1]} : vector<8x128xf32> to vector<8x32xf32>
    %159 = vector.extract_strided_slice %156 {offsets = [0, 64], sizes = [8, 32], strides = [1, 1]} : vector<8x128xf32> to vector<8x32xf32>
    %160 = vector.extract_strided_slice %155 {offsets = [0, 96], sizes = [8, 32], strides = [1, 1]} : vector<8x128xf32> to vector<8x32xf32>
    %161 = arith.mulf %158, %107 : vector<8x32xf32>
    %162 = arith.mulf %157, %159 : vector<8x32xf32>
    %163 = arith.addf %161, %162 : vector<8x32xf32>
    %164 = math.tanh %163 : vector<8x32xf32>
    %165 = arith.mulf %160, %164 : vector<8x32xf32>
    %cst_32 = arith.constant dense<0.000000e+00> : vector<8x128xf32>
    %166 = tpu.matmul %109, %6, %cst_32 {dimension_numbers = #tpu.dot_dimension_numbers<[1], [0], [0], [1], [0, 0, 1, 1], [], []>} : vector<8x32xf32>, vector<32x128xf32>, vector<8x128xf32> -> vector<8x128xf32>
    %cst_33 = arith.constant dense<0.000000e+00> : vector<8x128xf32>
    %167 = tpu.matmul %128, %7, %cst_33 {dimension_numbers = #tpu.dot_dimension_numbers<[1], [0], [0], [1], [0, 0, 1, 1], [], []>} : vector<8x32xf32>, vector<32x128xf32>, vector<8x128xf32> -> vector<8x128xf32>
    %168 = arith.addf %166, %167 : vector<8x128xf32>
    %169 = arith.addf %168, %16 : vector<8x128xf32>
    %170 = arith.negf %169 : vector<8x128xf32>
    %171 = math.exp %170 : vector<8x128xf32>
    %cst_34 = arith.constant 1.000000e+00 : f32
    %172 = vector.broadcast %cst_34 : f32 to vector<8x128xf32>
    %173 = arith.addf %172, %171 : vector<8x128xf32>
    %174 = arith.divf %172, %173 : vector<8x128xf32>
    %175 = math.tanh %169 : vector<8x128xf32>
    %176 = vector.extract_strided_slice %174 {offsets = [0, 0], sizes = [8, 32], strides = [1, 1]} : vector<8x128xf32> to vector<8x32xf32>
    %177 = vector.extract_strided_slice %174 {offsets = [0, 32], sizes = [8, 32], strides = [1, 1]} : vector<8x128xf32> to vector<8x32xf32>
    %178 = vector.extract_strided_slice %175 {offsets = [0, 64], sizes = [8, 32], strides = [1, 1]} : vector<8x128xf32> to vector<8x32xf32>
    %179 = vector.extract_strided_slice %174 {offsets = [0, 96], sizes = [8, 32], strides = [1, 1]} : vector<8x128xf32> to vector<8x32xf32>
    %180 = arith.mulf %177, %126 : vector<8x32xf32>
    %181 = arith.mulf %176, %178 : vector<8x32xf32>
    %182 = arith.addf %180, %181 : vector<8x32xf32>
    %183 = math.tanh %182 : vector<8x32xf32>
    %184 = arith.mulf %179, %183 : vector<8x32xf32>
    %185 = vector.extract_strided_slice %12 {offsets = [32, 0], sizes = [8, 128], strides = [1, 1]} : vector<48x128xf32> to vector<8x128xf32>
    %cst_35 = arith.constant dense<0.000000e+00> : vector<8x128xf32>
    %186 = tpu.matmul %146, %1, %cst_35 {dimension_numbers = #tpu.dot_dimension_numbers<[1], [0], [0], [1], [0, 0, 1, 1], [], []>} : vector<8x32xf32>, vector<32x128xf32>, vector<8x128xf32> -> vector<8x128xf32>
    %187 = arith.addf %185, %186 : vector<8x128xf32>
    %188 = arith.negf %187 : vector<8x128xf32>
    %189 = math.exp %188 : vector<8x128xf32>
    %cst_36 = arith.constant 1.000000e+00 : f32
    %190 = vector.broadcast %cst_36 : f32 to vector<8x128xf32>
    %191 = arith.addf %190, %189 : vector<8x128xf32>
    %192 = arith.divf %190, %191 : vector<8x128xf32>
    %193 = math.tanh %187 : vector<8x128xf32>
    %194 = vector.extract_strided_slice %192 {offsets = [0, 0], sizes = [8, 32], strides = [1, 1]} : vector<8x128xf32> to vector<8x32xf32>
    %195 = vector.extract_strided_slice %192 {offsets = [0, 32], sizes = [8, 32], strides = [1, 1]} : vector<8x128xf32> to vector<8x32xf32>
    %196 = vector.extract_strided_slice %193 {offsets = [0, 64], sizes = [8, 32], strides = [1, 1]} : vector<8x128xf32> to vector<8x32xf32>
    %197 = vector.extract_strided_slice %192 {offsets = [0, 96], sizes = [8, 32], strides = [1, 1]} : vector<8x128xf32> to vector<8x32xf32>
    %198 = arith.mulf %195, %144 : vector<8x32xf32>
    %199 = arith.mulf %194, %196 : vector<8x32xf32>
    %200 = arith.addf %198, %199 : vector<8x32xf32>
    %201 = math.tanh %200 : vector<8x32xf32>
    %202 = arith.mulf %197, %201 : vector<8x32xf32>
    %cst_37 = arith.constant dense<0.000000e+00> : vector<8x128xf32>
    %203 = tpu.matmul %146, %3, %cst_37 {dimension_numbers = #tpu.dot_dimension_numbers<[1], [0], [0], [1], [0, 0, 1, 1], [], []>} : vector<8x32xf32>, vector<32x128xf32>, vector<8x128xf32> -> vector<8x128xf32>
    %cst_38 = arith.constant dense<0.000000e+00> : vector<8x128xf32>
    %204 = tpu.matmul %165, %4, %cst_38 {dimension_numbers = #tpu.dot_dimension_numbers<[1], [0], [0], [1], [0, 0, 1, 1], [], []>} : vector<8x32xf32>, vector<32x128xf32>, vector<8x128xf32> -> vector<8x128xf32>
    %205 = arith.addf %203, %204 : vector<8x128xf32>
    %206 = arith.addf %205, %14 : vector<8x128xf32>
    %207 = arith.negf %206 : vector<8x128xf32>
    %208 = math.exp %207 : vector<8x128xf32>
    %cst_39 = arith.constant 1.000000e+00 : f32
    %209 = vector.broadcast %cst_39 : f32 to vector<8x128xf32>
    %210 = arith.addf %209, %208 : vector<8x128xf32>
    %211 = arith.divf %209, %210 : vector<8x128xf32>
    %212 = math.tanh %206 : vector<8x128xf32>
    %213 = vector.extract_strided_slice %211 {offsets = [0, 0], sizes = [8, 32], strides = [1, 1]} : vector<8x128xf32> to vector<8x32xf32>
    %214 = vector.extract_strided_slice %211 {offsets = [0, 32], sizes = [8, 32], strides = [1, 1]} : vector<8x128xf32> to vector<8x32xf32>
    %215 = vector.extract_strided_slice %212 {offsets = [0, 64], sizes = [8, 32], strides = [1, 1]} : vector<8x128xf32> to vector<8x32xf32>
    %216 = vector.extract_strided_slice %211 {offsets = [0, 96], sizes = [8, 32], strides = [1, 1]} : vector<8x128xf32> to vector<8x32xf32>
    %217 = arith.mulf %214, %163 : vector<8x32xf32>
    %218 = arith.mulf %213, %215 : vector<8x32xf32>
    %219 = arith.addf %217, %218 : vector<8x32xf32>
    %220 = math.tanh %219 : vector<8x32xf32>
    %221 = arith.mulf %216, %220 : vector<8x32xf32>
    %cst_40 = arith.constant dense<0.000000e+00> : vector<8x128xf32>
    %222 = tpu.matmul %165, %6, %cst_40 {dimension_numbers = #tpu.dot_dimension_numbers<[1], [0], [0], [1], [0, 0, 1, 1], [], []>} : vector<8x32xf32>, vector<32x128xf32>, vector<8x128xf32> -> vector<8x128xf32>
    %cst_41 = arith.constant dense<0.000000e+00> : vector<8x128xf32>
    %223 = tpu.matmul %184, %7, %cst_41 {dimension_numbers = #tpu.dot_dimension_numbers<[1], [0], [0], [1], [0, 0, 1, 1], [], []>} : vector<8x32xf32>, vector<32x128xf32>, vector<8x128xf32> -> vector<8x128xf32>
    %224 = arith.addf %222, %223 : vector<8x128xf32>
    %225 = arith.addf %224, %16 : vector<8x128xf32>
    %226 = arith.negf %225 : vector<8x128xf32>
    %227 = math.exp %226 : vector<8x128xf32>
    %cst_42 = arith.constant 1.000000e+00 : f32
    %228 = vector.broadcast %cst_42 : f32 to vector<8x128xf32>
    %229 = arith.addf %228, %227 : vector<8x128xf32>
    %230 = arith.divf %228, %229 : vector<8x128xf32>
    %231 = math.tanh %225 : vector<8x128xf32>
    %232 = vector.extract_strided_slice %230 {offsets = [0, 0], sizes = [8, 32], strides = [1, 1]} : vector<8x128xf32> to vector<8x32xf32>
    %233 = vector.extract_strided_slice %230 {offsets = [0, 32], sizes = [8, 32], strides = [1, 1]} : vector<8x128xf32> to vector<8x32xf32>
    %234 = vector.extract_strided_slice %231 {offsets = [0, 64], sizes = [8, 32], strides = [1, 1]} : vector<8x128xf32> to vector<8x32xf32>
    %235 = vector.extract_strided_slice %230 {offsets = [0, 96], sizes = [8, 32], strides = [1, 1]} : vector<8x128xf32> to vector<8x32xf32>
    %236 = arith.mulf %233, %182 : vector<8x32xf32>
    %237 = arith.mulf %232, %234 : vector<8x32xf32>
    %238 = arith.addf %236, %237 : vector<8x32xf32>
    %239 = math.tanh %238 : vector<8x32xf32>
    %240 = arith.mulf %235, %239 : vector<8x32xf32>
    %241 = vector.extract_strided_slice %12 {offsets = [40, 0], sizes = [8, 128], strides = [1, 1]} : vector<48x128xf32> to vector<8x128xf32>
    %cst_43 = arith.constant dense<0.000000e+00> : vector<8x128xf32>
    %242 = tpu.matmul %202, %1, %cst_43 {dimension_numbers = #tpu.dot_dimension_numbers<[1], [0], [0], [1], [0, 0, 1, 1], [], []>} : vector<8x32xf32>, vector<32x128xf32>, vector<8x128xf32> -> vector<8x128xf32>
    %243 = arith.addf %241, %242 : vector<8x128xf32>
    %244 = arith.negf %243 : vector<8x128xf32>
    %245 = math.exp %244 : vector<8x128xf32>
    %cst_44 = arith.constant 1.000000e+00 : f32
    %246 = vector.broadcast %cst_44 : f32 to vector<8x128xf32>
    %247 = arith.addf %246, %245 : vector<8x128xf32>
    %248 = arith.divf %246, %247 : vector<8x128xf32>
    %249 = math.tanh %243 : vector<8x128xf32>
    %250 = vector.extract_strided_slice %248 {offsets = [0, 0], sizes = [8, 32], strides = [1, 1]} : vector<8x128xf32> to vector<8x32xf32>
    %251 = vector.extract_strided_slice %248 {offsets = [0, 32], sizes = [8, 32], strides = [1, 1]} : vector<8x128xf32> to vector<8x32xf32>
    %252 = vector.extract_strided_slice %249 {offsets = [0, 64], sizes = [8, 32], strides = [1, 1]} : vector<8x128xf32> to vector<8x32xf32>
    %253 = vector.extract_strided_slice %248 {offsets = [0, 96], sizes = [8, 32], strides = [1, 1]} : vector<8x128xf32> to vector<8x32xf32>
    %254 = arith.mulf %251, %200 : vector<8x32xf32>
    %255 = arith.mulf %250, %252 : vector<8x32xf32>
    %256 = arith.addf %254, %255 : vector<8x32xf32>
    %257 = math.tanh %256 : vector<8x32xf32>
    %258 = arith.mulf %253, %257 : vector<8x32xf32>
    %cst_45 = arith.constant dense<0.000000e+00> : vector<8x128xf32>
    %259 = tpu.matmul %202, %3, %cst_45 {dimension_numbers = #tpu.dot_dimension_numbers<[1], [0], [0], [1], [0, 0, 1, 1], [], []>} : vector<8x32xf32>, vector<32x128xf32>, vector<8x128xf32> -> vector<8x128xf32>
    %cst_46 = arith.constant dense<0.000000e+00> : vector<8x128xf32>
    %260 = tpu.matmul %221, %4, %cst_46 {dimension_numbers = #tpu.dot_dimension_numbers<[1], [0], [0], [1], [0, 0, 1, 1], [], []>} : vector<8x32xf32>, vector<32x128xf32>, vector<8x128xf32> -> vector<8x128xf32>
    %261 = arith.addf %259, %260 : vector<8x128xf32>
    %262 = arith.addf %261, %14 : vector<8x128xf32>
    %263 = arith.negf %262 : vector<8x128xf32>
    %264 = math.exp %263 : vector<8x128xf32>
    %cst_47 = arith.constant 1.000000e+00 : f32
    %265 = vector.broadcast %cst_47 : f32 to vector<8x128xf32>
    %266 = arith.addf %265, %264 : vector<8x128xf32>
    %267 = arith.divf %265, %266 : vector<8x128xf32>
    %268 = math.tanh %262 : vector<8x128xf32>
    %269 = vector.extract_strided_slice %267 {offsets = [0, 0], sizes = [8, 32], strides = [1, 1]} : vector<8x128xf32> to vector<8x32xf32>
    %270 = vector.extract_strided_slice %267 {offsets = [0, 32], sizes = [8, 32], strides = [1, 1]} : vector<8x128xf32> to vector<8x32xf32>
    %271 = vector.extract_strided_slice %268 {offsets = [0, 64], sizes = [8, 32], strides = [1, 1]} : vector<8x128xf32> to vector<8x32xf32>
    %272 = vector.extract_strided_slice %267 {offsets = [0, 96], sizes = [8, 32], strides = [1, 1]} : vector<8x128xf32> to vector<8x32xf32>
    %273 = arith.mulf %270, %219 : vector<8x32xf32>
    %274 = arith.mulf %269, %271 : vector<8x32xf32>
    %275 = arith.addf %273, %274 : vector<8x32xf32>
    %276 = math.tanh %275 : vector<8x32xf32>
    %277 = arith.mulf %272, %276 : vector<8x32xf32>
    %cst_48 = arith.constant dense<0.000000e+00> : vector<8x128xf32>
    %278 = tpu.matmul %221, %6, %cst_48 {dimension_numbers = #tpu.dot_dimension_numbers<[1], [0], [0], [1], [0, 0, 1, 1], [], []>} : vector<8x32xf32>, vector<32x128xf32>, vector<8x128xf32> -> vector<8x128xf32>
    %cst_49 = arith.constant dense<0.000000e+00> : vector<8x128xf32>
    %279 = tpu.matmul %240, %7, %cst_49 {dimension_numbers = #tpu.dot_dimension_numbers<[1], [0], [0], [1], [0, 0, 1, 1], [], []>} : vector<8x32xf32>, vector<32x128xf32>, vector<8x128xf32> -> vector<8x128xf32>
    %280 = arith.addf %278, %279 : vector<8x128xf32>
    %281 = arith.addf %280, %16 : vector<8x128xf32>
    %282 = arith.negf %281 : vector<8x128xf32>
    %283 = math.exp %282 : vector<8x128xf32>
    %cst_50 = arith.constant 1.000000e+00 : f32
    %284 = vector.broadcast %cst_50 : f32 to vector<8x128xf32>
    %285 = arith.addf %284, %283 : vector<8x128xf32>
    %286 = arith.divf %284, %285 : vector<8x128xf32>
    %287 = math.tanh %281 : vector<8x128xf32>
    %288 = vector.extract_strided_slice %286 {offsets = [0, 0], sizes = [8, 32], strides = [1, 1]} : vector<8x128xf32> to vector<8x32xf32>
    %289 = vector.extract_strided_slice %286 {offsets = [0, 32], sizes = [8, 32], strides = [1, 1]} : vector<8x128xf32> to vector<8x32xf32>
    %290 = vector.extract_strided_slice %287 {offsets = [0, 64], sizes = [8, 32], strides = [1, 1]} : vector<8x128xf32> to vector<8x32xf32>
    %291 = vector.extract_strided_slice %286 {offsets = [0, 96], sizes = [8, 32], strides = [1, 1]} : vector<8x128xf32> to vector<8x32xf32>
    %292 = arith.mulf %289, %238 : vector<8x32xf32>
    %293 = arith.mulf %288, %290 : vector<8x32xf32>
    %294 = arith.addf %292, %293 : vector<8x32xf32>
    %295 = math.tanh %294 : vector<8x32xf32>
    %296 = arith.mulf %291, %295 : vector<8x32xf32>
    %cst_51 = arith.constant dense<0.000000e+00> : vector<8x128xf32>
    %297 = tpu.matmul %258, %3, %cst_51 {dimension_numbers = #tpu.dot_dimension_numbers<[1], [0], [0], [1], [0, 0, 1, 1], [], []>} : vector<8x32xf32>, vector<32x128xf32>, vector<8x128xf32> -> vector<8x128xf32>
    %cst_52 = arith.constant dense<0.000000e+00> : vector<8x128xf32>
    %298 = tpu.matmul %277, %4, %cst_52 {dimension_numbers = #tpu.dot_dimension_numbers<[1], [0], [0], [1], [0, 0, 1, 1], [], []>} : vector<8x32xf32>, vector<32x128xf32>, vector<8x128xf32> -> vector<8x128xf32>
    %299 = arith.addf %297, %298 : vector<8x128xf32>
    %300 = arith.addf %299, %14 : vector<8x128xf32>
    %301 = arith.negf %300 : vector<8x128xf32>
    %302 = math.exp %301 : vector<8x128xf32>
    %cst_53 = arith.constant 1.000000e+00 : f32
    %303 = vector.broadcast %cst_53 : f32 to vector<8x128xf32>
    %304 = arith.addf %303, %302 : vector<8x128xf32>
    %305 = arith.divf %303, %304 : vector<8x128xf32>
    %306 = math.tanh %300 : vector<8x128xf32>
    %307 = vector.extract_strided_slice %305 {offsets = [0, 0], sizes = [8, 32], strides = [1, 1]} : vector<8x128xf32> to vector<8x32xf32>
    %308 = vector.extract_strided_slice %305 {offsets = [0, 32], sizes = [8, 32], strides = [1, 1]} : vector<8x128xf32> to vector<8x32xf32>
    %309 = vector.extract_strided_slice %306 {offsets = [0, 64], sizes = [8, 32], strides = [1, 1]} : vector<8x128xf32> to vector<8x32xf32>
    %310 = vector.extract_strided_slice %305 {offsets = [0, 96], sizes = [8, 32], strides = [1, 1]} : vector<8x128xf32> to vector<8x32xf32>
    %311 = arith.mulf %308, %275 : vector<8x32xf32>
    %312 = arith.mulf %307, %309 : vector<8x32xf32>
    %313 = arith.addf %311, %312 : vector<8x32xf32>
    %314 = math.tanh %313 : vector<8x32xf32>
    %315 = arith.mulf %310, %314 : vector<8x32xf32>
    %cst_54 = arith.constant dense<0.000000e+00> : vector<8x128xf32>
    %316 = tpu.matmul %277, %6, %cst_54 {dimension_numbers = #tpu.dot_dimension_numbers<[1], [0], [0], [1], [0, 0, 1, 1], [], []>} : vector<8x32xf32>, vector<32x128xf32>, vector<8x128xf32> -> vector<8x128xf32>
    %cst_55 = arith.constant dense<0.000000e+00> : vector<8x128xf32>
    %317 = tpu.matmul %296, %7, %cst_55 {dimension_numbers = #tpu.dot_dimension_numbers<[1], [0], [0], [1], [0, 0, 1, 1], [], []>} : vector<8x32xf32>, vector<32x128xf32>, vector<8x128xf32> -> vector<8x128xf32>
    %318 = arith.addf %316, %317 : vector<8x128xf32>
    %319 = arith.addf %318, %16 : vector<8x128xf32>
    %320 = arith.negf %319 : vector<8x128xf32>
    %321 = math.exp %320 : vector<8x128xf32>
    %cst_56 = arith.constant 1.000000e+00 : f32
    %322 = vector.broadcast %cst_56 : f32 to vector<8x128xf32>
    %323 = arith.addf %322, %321 : vector<8x128xf32>
    %324 = arith.divf %322, %323 : vector<8x128xf32>
    %325 = math.tanh %319 : vector<8x128xf32>
    %326 = vector.extract_strided_slice %324 {offsets = [0, 0], sizes = [8, 32], strides = [1, 1]} : vector<8x128xf32> to vector<8x32xf32>
    %327 = vector.extract_strided_slice %324 {offsets = [0, 32], sizes = [8, 32], strides = [1, 1]} : vector<8x128xf32> to vector<8x32xf32>
    %328 = vector.extract_strided_slice %325 {offsets = [0, 64], sizes = [8, 32], strides = [1, 1]} : vector<8x128xf32> to vector<8x32xf32>
    %329 = vector.extract_strided_slice %324 {offsets = [0, 96], sizes = [8, 32], strides = [1, 1]} : vector<8x128xf32> to vector<8x32xf32>
    %330 = arith.mulf %327, %294 : vector<8x32xf32>
    %331 = arith.mulf %326, %328 : vector<8x32xf32>
    %332 = arith.addf %330, %331 : vector<8x32xf32>
    %333 = math.tanh %332 : vector<8x32xf32>
    %334 = arith.mulf %329, %333 : vector<8x32xf32>
    %cst_57 = arith.constant dense<0.000000e+00> : vector<8x128xf32>
    %335 = tpu.matmul %315, %6, %cst_57 {dimension_numbers = #tpu.dot_dimension_numbers<[1], [0], [0], [1], [0, 0, 1, 1], [], []>} : vector<8x32xf32>, vector<32x128xf32>, vector<8x128xf32> -> vector<8x128xf32>
    %cst_58 = arith.constant dense<0.000000e+00> : vector<8x128xf32>
    %336 = tpu.matmul %334, %7, %cst_58 {dimension_numbers = #tpu.dot_dimension_numbers<[1], [0], [0], [1], [0, 0, 1, 1], [], []>} : vector<8x32xf32>, vector<32x128xf32>, vector<8x128xf32> -> vector<8x128xf32>
    %337 = arith.addf %335, %336 : vector<8x128xf32>
    %338 = arith.addf %337, %16 : vector<8x128xf32>
    %339 = arith.negf %338 : vector<8x128xf32>
    %340 = math.exp %339 : vector<8x128xf32>
    %cst_59 = arith.constant 1.000000e+00 : f32
    %341 = vector.broadcast %cst_59 : f32 to vector<8x128xf32>
    %342 = arith.addf %341, %340 : vector<8x128xf32>
    %343 = arith.divf %341, %342 : vector<8x128xf32>
    %344 = math.tanh %338 : vector<8x128xf32>
    %345 = vector.extract_strided_slice %343 {offsets = [0, 0], sizes = [8, 32], strides = [1, 1]} : vector<8x128xf32> to vector<8x32xf32>
    %346 = vector.extract_strided_slice %343 {offsets = [0, 32], sizes = [8, 32], strides = [1, 1]} : vector<8x128xf32> to vector<8x32xf32>
    %347 = vector.extract_strided_slice %344 {offsets = [0, 64], sizes = [8, 32], strides = [1, 1]} : vector<8x128xf32> to vector<8x32xf32>
    %348 = vector.extract_strided_slice %343 {offsets = [0, 96], sizes = [8, 32], strides = [1, 1]} : vector<8x128xf32> to vector<8x32xf32>
    %349 = arith.mulf %346, %332 : vector<8x32xf32>
    %350 = arith.mulf %345, %347 : vector<8x32xf32>
    %351 = arith.addf %349, %350 : vector<8x32xf32>
    %352 = math.tanh %351 : vector<8x32xf32>
    %353 = arith.mulf %348, %352 : vector<8x32xf32>
    %c0_60 = arith.constant 0 : index
    %c0_61 = arith.constant 0 : index
    %354 = vector.load %arg2[%c0_60, %c0_61] : memref<48x128xf32, #tpu.memory_space<vmem>>, vector<32x128xf32>
    %c32 = arith.constant 32 : index
    %c0_62 = arith.constant 0 : index
    %355 = vector.load %arg2[%c32, %c0_62] : memref<48x128xf32, #tpu.memory_space<vmem>>, vector<1x128xf32>
    %cst_63 = arith.constant dense<0.000000e+00> : vector<8x128xf32>
    %356 = tpu.matmul %353, %354, %cst_63 {dimension_numbers = #tpu.dot_dimension_numbers<[1], [0], [0], [1], [0, 0, 1, 1], [], []>} : vector<8x32xf32>, vector<32x128xf32>, vector<8x128xf32> -> vector<8x128xf32>
    %357 = vector.broadcast %355 : vector<1x128xf32> to vector<8x128xf32>
    %358 = arith.addf %356, %357 : vector<8x128xf32>
    %359 = arith.mulf %358, %358 : vector<8x128xf32>
    %cst_64 = arith.constant dense<0.000000e+00> : vector<8xf32>
    %360 = vector.multi_reduction <add>, %359, %cst_64 [1] : vector<8x128xf32> to vector<8xf32>
    %361 = vector.shape_cast %360 : vector<8xf32> to vector<8x1xf32>
    %362 = vector.shape_cast %361 : vector<8x1xf32> to vector<1x8x1xf32>
    %cst_65 = arith.constant dense<0.000000e+00> : vector<1xf32>
    %363 = vector.multi_reduction <add>, %362, %cst_65 [1, 2] : vector<1x8x1xf32> to vector<1xf32>
    %364 = vector.shape_cast %363 : vector<1xf32> to vector<1x1x1xf32>
    %365 = vector.extract %364[0, 0, 0] : f32 from vector<1x1x1xf32>
    %366 = vector.broadcast %365 : f32 to vector<1x1xf32>
    %367 = math.rsqrt %366 : vector<1x1xf32>
    %368 = vector.broadcast %367 : vector<1x1xf32> to vector<8x128xf32>
    %369 = arith.mulf %358, %368 : vector<8x128xf32>
    %370 = vector.extract_strided_slice %369 {offsets = [0, 0], sizes = [8, 16], strides = [1, 1]} : vector<8x128xf32> to vector<8x16xf32>
    %c0_66 = arith.constant 0 : index
    %c0_67 = arith.constant 0 : index
    %371 = vector.load %arg4[%c0_66, %c0_67] : memref<8x16xf32, #tpu.memory_space<vmem>>, vector<8x16xf32>
    tpu.vector_store %arg4[%c0_66, %c0_67], %370 {strides = array<i32>} : memref<8x16xf32, #tpu.memory_space<vmem>>, vector<8x16xf32>,
    %c40 = arith.constant 40 : index
    %c0_68 = arith.constant 0 : index
    %372 = vector.load %arg2[%c40, %c0_68] : memref<48x128xf32, #tpu.memory_space<vmem>>, vector<2x8xf32>
    %cst_69 = arith.constant dense<0.000000e+00> : vector<2x128xf32>
    %373 = tpu.matmul %372, %369, %cst_69 {dimension_numbers = #tpu.dot_dimension_numbers<[1], [0], [0], [1], [0, 0, 1, 1], [], []>} : vector<2x8xf32>, vector<8x128xf32>, vector<2x128xf32> -> vector<2x128xf32>
    %374 = arith.mulf %373, %373 : vector<2x128xf32>
    %cst_70 = arith.constant dense<0.000000e+00> : vector<2xf32>
    %375 = vector.multi_reduction <add>, %374, %cst_70 [1] : vector<2x128xf32> to vector<2xf32>
    %376 = vector.shape_cast %375 : vector<2xf32> to vector<2x1xf32>
    %cst_71 = arith.constant 1.000000e-16 : f32
    %377 = vector.broadcast %cst_71 : f32 to vector<2x1xf32>
    %378 = arith.maximumf %376, %377 : vector<2x1xf32>
    %379 = math.rsqrt %378 : vector<2x1xf32>
    %380 = vector.broadcast %379 : vector<2x1xf32> to vector<2x128xf32>
    %381 = arith.mulf %373, %380 : vector<2x128xf32>
    %cst_72 = arith.constant dense<0.000000e+00> : vector<8x2xf32>
    %382 = tpu.matmul %369, %381, %cst_72 {dimension_numbers = #tpu.dot_dimension_numbers<[1], [1], [0], [0], [0, 0, 1, 0], [], []>} : vector<8x128xf32>, vector<2x128xf32>, vector<8x2xf32> -> vector<8x2xf32>
    %383 = arith.mulf %367, %367 : vector<1x1xf32>
    %384 = vector.broadcast %383 : vector<1x1xf32> to vector<8x1xf32>
    %385 = arith.mulf %361, %384 : vector<8x1xf32>
    %cst_73 = arith.constant 1.000000e-16 : f32
    %386 = vector.broadcast %cst_73 : f32 to vector<8x1xf32>
    %387 = arith.maximumf %385, %386 : vector<8x1xf32>
    %388 = math.rsqrt %387 : vector<8x1xf32>
    %c0_74 = arith.constant 0 : index
    %389 = memref.load %arg3[%c0_74] : memref<2xf32, #tpu.memory_space<smem>>
    %390 = vector.broadcast %389 : f32 to vector<8x1xf32>
    %391 = arith.mulf %390, %388 : vector<8x1xf32>
    %392 = vector.broadcast %391 : vector<8x1xf32> to vector<8x2xf32>
    %393 = arith.mulf %392, %382 : vector<8x2xf32>
    %c1 = arith.constant 1 : index
    %394 = memref.load %arg3[%c1] : memref<2xf32, #tpu.memory_space<smem>>
    %395 = vector.broadcast %394 : f32 to vector<8x2xf32>
    %396 = arith.addf %393, %395 : vector<8x2xf32>
    %c0_75 = arith.constant 0 : index
    %c0_76 = arith.constant 0 : index
    %397 = vector.load %arg5[%c0_75, %c0_76] : memref<8x2xf32, #tpu.memory_space<vmem>>, vector<8x2xf32>
    tpu.vector_store %arg5[%c0_75, %c0_76], %396 {strides = array<i32>} : memref<8x2xf32, #tpu.memory_space<vmem>>, vector<8x2xf32>,
    return
  }
}

</mosaic_0001>

<llo_original>
// kernel: tpu_custom_call.1
$region0: #{tpu_custom_call.1}
  #allocation0 [shape = 'u32[]', space=smem, size = 0x4, offset = 0x4, fixed_abs, tag = 'smem constant byte address 0x4 - core index']
  #allocation1 [shape = 'u32[144,128]{1,0:T(1,128)}', space=vmem, size = 0x12000, scoped, tag = 'internal scratch']
  %s0 = inlined_call_operand.vmem [shape: f32[48,16], index: 0, kind: input, shape index: {}]
  %s1 = inlined_call_operand.hbm [shape: f32[200,128], index: 1, kind: input, shape index: {}]
  %s2 = inlined_call_operand.vmem [shape: f32[48,128], index: 2, kind: input, shape index: {}]
  %s3 = inlined_call_operand.vmem [shape: f32[2], index: 3, kind: input, shape index: {}]
  %s4 = inlined_call_operand.hbm [shape: f32[8,16], index: 4, kind: output, shape index: {0}]
  %s5 = inlined_call_operand.vmem [shape: f32[8,2], index: 5, kind: output, shape index: {1}]
  %6 = xla_tuple %s4, %s5
  %s7 = sld [smem:[#allocation0]]
  $region42: #{tpu_custom_call.1} parent=0
    _
  %s9 = ssub.s32 1, %s7
  %s10 = scalar_select 0, %s9, %s7
  $region1: #{tpu_custom_call.1} parent=0
    #allocation2 [shape = 'u8[102400]{0}', space=vmem, size = 0x19000, scoped, tag = 'input window, operand 1, single buffered']
    #allocation3 [shape = 's32[1]{0}', space=sflag, size = 0x4, scoped, tag = 'scoped memory for tpu_custom_call.1']
    #allocation4 [shape = 's32[1]{0}', space=sflag, size = 0x4, scoped, tag = 'scoped memory for tpu_custom_call.1']
    #allocation5 [shape = 's32[1]{0}', space=sflag, size = 0x4, scoped, tag = 'scoped memory for tpu_custom_call.1']
    #allocation6 [shape = 'u8[512]{0}', space=smem, size = 0x200, scoped, tag = 'input window, operand 3, single buffered']
    #allocation7 [shape = 'u8[4096]{0}', space=vmem, size = 0x1000, scoped, tag = 'output window, operand 0, single buffered']
    %11 = vsyncpa [#allocation3], 0
    %12 = vsyncpa [#allocation5], 0
    %13 = vsyncpa [#allocation4], 0
    // Predicated region
    $region2: #{tpu_custom_call.1} parent=1 // pred_check
      _
    $region3: #{tpu_custom_call.1} parent=1 // pred_check_branch
      %15 = sbr.rel (0) target = $region5
    $region4: #{tpu_custom_call.1} parent=1 // pred_region
      _
    $region5: #{tpu_custom_call.1} parent=1 // pred_fallthru
      _
    // Predicated region
    $region6: #{tpu_custom_call.1} parent=1 // pred_check
      _
    $region7: #{tpu_custom_call.1} parent=1 // pred_check_branch
      %17 = sbr.rel (0) target = $region9
    $region8: #{tpu_custom_call.1} parent=1 // pred_region
      %s19 = ssub.s32 3200, 3200
      %20 = vsyncadd [#allocation3], %s19
      %s21 = sshll.u32 [#allocation2], 4
      %s22 = int_to_ptr.vmem [resolvable:$true] %s21
      %27 = dma.hbm_to_vmem [thread:$0]  %s1, 3200, %s22, [#allocation3], 128, 128, 8
    $region9: #{tpu_custom_call.1} parent=1 // pred_fallthru
      _
    // Predicated region
    $region10: #{tpu_custom_call.1} parent=1 // pred_check
      _
    $region11: #{tpu_custom_call.1} parent=1 // pred_check_branch
      %29 = sbr.rel (0) target = $region13
    $region12: #{tpu_custom_call.1} parent=1 // pred_region
      _
    $region13: #{tpu_custom_call.1} parent=1 // pred_fallthru
      _
    // Predicated region
    $region14: #{tpu_custom_call.1} parent=1 // pred_check
      _
    $region15: #{tpu_custom_call.1} parent=1 // pred_check_branch
      %31 = sbr.rel (0) target = $region17
    $region16: #{tpu_custom_call.1} parent=1 // pred_region
      %s33 = ssub.s32 16, 16
      %34 = vsyncadd [#allocation5], %s33
      %s36 = sshll.u32 %s3, 4
      %s37 = int_to_ptr.vmem [resolvable:$true] %s36
      %39 = dma.vmem_to_smem %s37, 16, [#allocation6], [#allocation5]
    $region17: #{tpu_custom_call.1} parent=1 // pred_fallthru
      _
    // Predicated region
    $region18: #{tpu_custom_call.1} parent=1 // pred_check
      _
    $region19: #{tpu_custom_call.1} parent=1 // pred_check_branch
      %41 = sbr.rel (0) target = $region21
    $region20: #{tpu_custom_call.1} parent=1 // pred_region
      %42 = dma.done [#allocation3], 3200
    $region21: #{tpu_custom_call.1} parent=1 // pred_fallthru
      _
    // Predicated region
    $region22: #{tpu_custom_call.1} parent=1 // pred_check
      _
    $region23: #{tpu_custom_call.1} parent=1 // pred_check_branch
      %44 = sbr.rel (0) target = $region25
    $region24: #{tpu_custom_call.1} parent=1 // pred_region
      %45 = dma.done [#allocation5], 16
    $region25: #{tpu_custom_call.1} parent=1 // pred_fallthru
      _
    %46 = sfence
    %v47 = vld [vmem:[#allocation2] sm:$0xff]
    %v48 = vld [vmem:[#allocation2 + $0x8] sm:$0xff]
    %v49 = vld [vmem:[#allocation2 + $0x10] sm:$0xff]
    %v50 = vld [vmem:[#allocation2 + $0x18] sm:$0xff]
    %v51 = vld [vmem:[#allocation2 + $0x20] sm:$0xff]
    %v52 = vld [vmem:[#allocation2 + $0x28] sm:$0xff]
    %v53 = vld [vmem:[#allocation2 + $0x30] sm:$0x1]
    %v54 = vld [vmem:[#allocation2 + $0x38] sm:$0xff]
    %v55 = vld [vmem:[#allocation2 + $0x40] sm:$0xff]
    %v56 = vld [vmem:[#allocation2 + $0x48] sm:$0xff]
    %v57 = vld [vmem:[#allocation2 + $0x50] sm:$0xff]
    %v58 = vld [vmem:[#allocation2 + $0x58] sm:$0xff]
    %v59 = vld [vmem:[#allocation2 + $0x60] sm:$0xff]
    %v60 = vld [vmem:[#allocation2 + $0x68] sm:$0xff]
    %v61 = vld [vmem:[#allocation2 + $0x70] sm:$0xff]
    %v62 = vld [vmem:[#allocation2 + $0x78] sm:$0x1]
    %v63 = vld [vmem:[#allocation2 + $0x80] sm:$0xff]
    %v64 = vld [vmem:[#allocation2 + $0x88] sm:$0xff]
    %v65 = vld [vmem:[#allocation2 + $0x90] sm:$0xff]
    %v66 = vld [vmem:[#allocation2 + $0x98] sm:$0xff]
    %v67 = vld [vmem:[#allocation2 + $0xa0] sm:$0xff]
    %v68 = vld [vmem:[#allocation2 + $0xa8] sm:$0xff]
    %v69 = vld [vmem:[#allocation2 + $0xb0] sm:$0xff]
    %v70 = vld [vmem:[#allocation2 + $0xb8] sm:$0xff]
    %v71 = vld [vmem:[#allocation2 + $0xc0] sm:$0x1]
    %v72 = vld [vmem:[%s0] sm:$0xff]
    %v73 = vld [vmem:[%s0 + $0x8] sm:$0xff]
    %v74 = vld [vmem:[%s0 + $0x10] sm:$0xff]
    %v75 = vld [vmem:[%s0 + $0x18] sm:$0xff]
    %v76 = vld [vmem:[%s0 + $0x20] sm:$0xff]
    %v77 = vld [vmem:[%s0 + $0x28] sm:$0xff]
    %v78 = vlaneseq
    %v79 = vshrl.u32 %v78, 7
    %v80 = vsub.s32 0, %v79
    %v81 = vrot.slane %v53, %v80
    %vm82 = vcmask 130048
    %v84 = vsel %vm82, %v72, 0
    %v87 = vsel %vm82, %v73, 0
    %v90 = vsel %vm82, %v74, 0
    %v93 = vsel %vm82, %v75, 0
    %v96 = vsel %vm82, %v76, 0
    %v99 = vsel %vm82, %v77, 0
    %101 = vmatprep.subr.mxu0 0.0
    %102 = vmatpush1.msra.mxu0 %v47
    %103 = vmatprep.subr.mxu0 0.0
    %104 = vmatpush1.msra.mxu0 %v48
    %105 = vmatprep.subr.mxu0 0.0
    %106 = vmatpush1.msra.mxu0 0.0
    %107 = vmatprep.subr.mxu0 0.0
    %108 = vmatpush1.msra.mxu0 0.0
    %109 = vmatprep.subr.mxu0 0.0
    %110 = vmatpush1.msra.mxu0 0.0
    %111 = vmatprep.subr.mxu0 0.0
    %112 = vmatpush1.msra.mxu0 0.0
    %113 = vmatprep.subr.mxu0 0.0
    %114 = vmatpush1.msra.mxu0 0.0
    %115 = vmatprep.subr.mxu0 0.0
    %116 = vmatpush1.msra.mxu0 0.0
    %117 = vmatprep.subr.mxu0 0.0
    %118 = vmatpush1.msra.mxu0 0.0
    %119 = vmatprep.subr.mxu0 0.0
    %120 = vmatpush1.msra.mxu0 0.0
    %121 = vmatprep.subr.mxu0 0.0
    %122 = vmatpush1.msra.mxu0 0.0
    %123 = vmatprep.subr.mxu0 0.0
    %124 = vmatpush1.msra.mxu0 0.0
    %125 = vmatprep.subr.mxu0 0.0
    %126 = vmatpush1.msra.mxu0 0.0
    %127 = vmatprep.subr.mxu0 0.0
    %128 = vmatpush1.msra.mxu0 0.0
    %129 = vmatprep.subr.mxu0 0.0
    %130 = vmatpush1.msra.mxu0 0.0
    %131 = vmatprep.subr.mxu0 0.0
    %132 = vmatpush1.msra.mxu0 0.0
    %133 = vmatprep.subr.mxu0 0.0
    %134 = vmatpush1.msra.mxu0 0.0
    %135 = vmatprep.subr.mxu0 0.0
    %136 = vmatpush1.msra.mxu0 0.0
    %137 = vmatprep.subr.mxu0 0.0
    %138 = vmatpush1.msra.mxu0 0.0
    %139 = vmatprep.subr.mxu0 0.0
    %140 = vmatpush1.msra.mxu0 0.0
    %141 = vmatprep.subr.mxu0 0.0
    %142 = vmatpush1.msra.mxu0 0.0
    %143 = vmatprep.subr.mxu0 0.0
    %144 = vmatpush1.msra.mxu0 0.0
    %145 = vmatprep.subr.mxu0 0.0
    %146 = vmatpush1.msra.mxu0 0.0
    %147 = vmatprep.subr.mxu0 0.0
    %148 = vmatpush1.msra.mxu0 0.0
    %149 = vmatprep.subr.mxu0 0.0
    %150 = vmatpush1.msra.mxu0 0.0
    %151 = vmatprep.subr.mxu0 0.0
    %152 = vmatpush1.msra.mxu0 0.0
    %153 = vmatprep.subr.mxu0 0.0
    %154 = vmatpush1.msra.mxu0 0.0
    %155 = vmatprep.subr.mxu0 0.0
    %156 = vmatpush1.msra.mxu0 0.0
    %157 = vmatprep.subr.mxu0 0.0
    %158 = vmatpush1.msra.mxu0 0.0
    %159 = vmatprep.subr.mxu0 0.0
    %160 = vmatpush1.msra.mxu0 0.0
    %161 = vmatprep.subr.mxu0 0.0
    %162 = vmatpush1.msra.mxu0 0.0
    %163 = vmatprep.subr.mxu0 0.0
    %164 = vmatpush1.msra.mxu0 0.0
    %165 = vmatprep.mubr.f32.mxu0 0.0
    %166 = vmatmul.mubr.f32.gmra.mrb[0].mxu0 %v84
    %v167 = vpop.f32.mrb[0].mxu0
    %v168 = vadd.f32 %v81, %v167
    %v169 = vpop.f32.mrb[0].mxu0
    %170 = vmatprep.mubr.f32.mxu0 0.0
    %171 = vmatmul.mubr.f32.gmra.mrb[0].mxu0 %v87
    %v172 = vpop.f32.mrb[0].mxu0
    %v173 = vadd.f32 %v81, %v172
    %v174 = vpop.f32.mrb[0].mxu0
    %175 = vmatprep.mubr.f32.mxu0 0.0
    %176 = vmatmul.mubr.f32.gmra.mrb[0].mxu0 %v90
    %v177 = vpop.f32.mrb[0].mxu0
    %v178 = vadd.f32 %v81, %v177
    %v179 = vpop.f32.mrb[0].mxu0
    %180 = vmatprep.mubr.f32.mxu0 0.0
    %181 = vmatmul.mubr.f32.gmra.mrb[0].mxu0 %v93
    %v182 = vpop.f32.mrb[0].mxu0
    %v183 = vadd.f32 %v81, %v182
    %v184 = vpop.f32.mrb[0].mxu0
    %185 = vmatprep.mubr.f32.mxu0 0.0
    %186 = vmatmul.mubr.f32.gmra.mrb[0].mxu0 %v96
    %v187 = vpop.f32.mrb[0].mxu0
    %v188 = vadd.f32 %v81, %v187
    %v189 = vpop.f32.mrb[0].mxu0
    %190 = vmatprep.mubr.f32.mxu0 0.0
    %191 = vmatmul.mubr.f32.gmra.mrb[0].mxu0 %v99
    %v192 = vpop.f32.mrb[0].mxu0
    %v193 = vadd.f32 %v81, %v192
    %v194 = vpop.f32.mrb[0].mxu0
    %195 = vdwg.mxu0
    %v196 = vlaneseq
    %v197 = vshrl.u32 %v196, 7
    %v198 = vsub.s32 0, %v197
    %v199 = vrot.slane %v62, %v198
    %v200 = vlaneseq
    %v201 = vshrl.u32 %v200, 7
    %v202 = vsub.s32 0, %v201
    %v203 = vrot.slane %v71, %v202
    %vm204 = vcmask 261120
    %v206 = vsel %vm204, 0.0, 0
    %208 = vmatprep.subr.mxu0 0.0
    %209 = vmatpush1.msra.mxu0 %v49
    %210 = vmatprep.subr.mxu0 0.0
    %211 = vmatpush1.msra.mxu0 %v50
    %212 = vmatprep.subr.mxu0 0.0
    %213 = vmatpush1.msra.mxu0 %v51
    %214 = vmatprep.subr.mxu0 0.0
    %215 = vmatpush1.msra.mxu0 %v52
    %216 = vmatprep.subr.mxu0 0.0
    %217 = vmatpush1.msra.mxu0 0.0
    %218 = vmatprep.subr.mxu0 0.0
    %219 = vmatpush1.msra.mxu0 0.0
    %220 = vmatprep.subr.mxu0 0.0
    %221 = vmatpush1.msra.mxu0 0.0
    %222 = vmatprep.subr.mxu0 0.0
    %223 = vmatpush1.msra.mxu0 0.0
    %224 = vmatprep.subr.mxu0 0.0
    %225 = vmatpush1.msra.mxu0 0.0
    %226 = vmatprep.subr.mxu0 0.0
    %227 = vmatpush1.msra.mxu0 0.0
    %228 = vmatprep.subr.mxu0 0.0
    %229 = vmatpush1.msra.mxu0 0.0
    %230 = vmatprep.subr.mxu0 0.0
    %231 = vmatpush1.msra.mxu0 0.0
    %232 = vmatprep.subr.mxu0 0.0
    %233 = vmatpush1.msra.mxu0 0.0
    %234 = vmatprep.subr.mxu0 0.0
    %235 = vmatpush1.msra.mxu0 0.0
    %236 = vmatprep.subr.mxu0 0.0
    %237 = vmatpush1.msra.mxu0 0.0
    %238 = vmatprep.subr.mxu0 0.0
    %239 = vmatpush1.msra.mxu0 0.0
    %240 = vmatprep.subr.mxu0 0.0
    %241 = vmatpush1.msra.mxu0 0.0
    %242 = vmatprep.subr.mxu0 0.0
    %243 = vmatpush1.msra.mxu0 0.0
    %244 = vmatprep.subr.mxu0 0.0
    %245 = vmatpush1.msra.mxu0 0.0
    %246 = vmatprep.subr.mxu0 0.0
    %247 = vmatpush1.msra.mxu0 0.0
    %248 = vmatprep.subr.mxu0 0.0
    %249 = vmatpush1.msra.mxu0 0.0
    %250 = vmatprep.subr.mxu0 0.0
    %251 = vmatpush1.msra.mxu0 0.0
    %252 = vmatprep.subr.mxu0 0.0
    %253 = vmatpush1.msra.mxu0 0.0
    %254 = vmatprep.subr.mxu0 0.0
    %255 = vmatpush1.msra.mxu0 0.0
    %256 = vmatprep.subr.mxu0 0.0
    %257 = vmatpush1.msra.mxu0 0.0
    %258 = vmatprep.subr.mxu0 0.0
    %259 = vmatpush1.msra.mxu0 0.0
    %260 = vmatprep.subr.mxu0 0.0
    %261 = vmatpush1.msra.mxu0 0.0
    %262 = vmatprep.subr.mxu0 0.0
    %263 = vmatpush1.msra.mxu0 0.0
    %264 = vmatprep.subr.mxu0 0.0
    %265 = vmatpush1.msra.mxu0 0.0
    %266 = vmatprep.subr.mxu0 0.0
    %267 = vmatpush1.msra.mxu0 0.0
    %268 = vmatprep.subr.mxu0 0.0
    %269 = vmatpush1.msra.mxu0 0.0
    %270 = vmatprep.subr.mxu0 0.0
    %271 = vmatpush1.msra.mxu0 0.0
    %272 = vmatprep.mubr.f32.mxu0 0.0
    %273 = vmatmul.mubr.f32.gmra.mrb[0].mxu0 %v206
    %v274 = vpop.f32.mrb[0].mxu0
    %v275 = vadd.f32 0.0, %v274
    %v276 = vpop.f32.mrb[0].mxu0
    %277 = vdwg.mxu0
    %v278 = vadd.f32 %v168, %v275
    %v279 = vxor.u32 %v278, 2147483648
    %v280 = vmul.f32 %v279, 1.442695
    %v281 = vpow.pop %v280
    %v282 = vadd.f32 %v281, 1.0
    %v283 = vrcp.pop %v282
    %v284 = vmul.f32 1.0, %v283
    %v285 = vtanh.pop %v278
    %v286 = vmul.f32 %v284, 0.0
    %288 = vrot.lane.b32.xlu0 %v285, 64
    %v289 = vpop.permute.xlu0 %288
    %v291 = vmul.f32 %v284, %v289
    %293 = vrot.lane.b32.xlu0 %v291, 32
    %v294 = vpop.permute.xlu0 %293
    %v296 = vadd.f32 %v286, %v294
    %v297 = vtanh.pop %v296
    %299 = vrot.lane.b32.xlu0 %v297, 64
    %v300 = vpop.permute.xlu0 %299
    %v302 = vmul.f32 %v284, %v300
    %304 = vrot.lane.b32.xlu0 %v302, 32
    %v305 = vpop.permute.xlu0 %304
    %v306 = vsel %vm204, %v305, 0
    %308 = vmatprep.subr.mxu0 0.0
    %309 = vmatpush1.msra.mxu0 %v49
    %310 = vmatprep.subr.mxu0 0.0
    %311 = vmatpush1.msra.mxu0 %v50
    %312 = vmatprep.subr.mxu0 0.0
    %313 = vmatpush1.msra.mxu0 %v51
    %314 = vmatprep.subr.mxu0 0.0
    %315 = vmatpush1.msra.mxu0 %v52
    %316 = vmatprep.subr.mxu0 0.0
    %317 = vmatpush1.msra.mxu0 0.0
    %318 = vmatprep.subr.mxu0 0.0
    %319 = vmatpush1.msra.mxu0 0.0
    %320 = vmatprep.subr.mxu0 0.0
    %321 = vmatpush1.msra.mxu0 0.0
    %322 = vmatprep.subr.mxu0 0.0
    %323 = vmatpush1.msra.mxu0 0.0
    %324 = vmatprep.subr.mxu0 0.0
    %325 = vmatpush1.msra.mxu0 0.0
    %326 = vmatprep.subr.mxu0 0.0
    %327 = vmatpush1.msra.mxu0 0.0
    %328 = vmatprep.subr.mxu0 0.0
    %329 = vmatpush1.msra.mxu0 0.0
    %330 = vmatprep.subr.mxu0 0.0
    %331 = vmatpush1.msra.mxu0 0.0
    %332 = vmatprep.subr.mxu0 0.0
    %333 = vmatpush1.msra.mxu0 0.0
    %334 = vmatprep.subr.mxu0 0.0
    %335 = vmatpush1.msra.mxu0 0.0
    %336 = vmatprep.subr.mxu0 0.0
    %337 = vmatpush1.msra.mxu0 0.0
    %338 = vmatprep.subr.mxu0 0.0
    %339 = vmatpush1.msra.mxu0 0.0
    %340 = vmatprep.subr.mxu0 0.0
    %341 = vmatpush1.msra.mxu0 0.0
    %342 = vmatprep.subr.mxu0 0.0
    %343 = vmatpush1.msra.mxu0 0.0
    %344 = vmatprep.subr.mxu0 0.0
    %345 = vmatpush1.msra.mxu0 0.0
    %346 = vmatprep.subr.mxu0 0.0
    %347 = vmatpush1.msra.mxu0 0.0
    %348 = vmatprep.subr.mxu0 0.0
    %349 = vmatpush1.msra.mxu0 0.0
    %350 = vmatprep.subr.mxu0 0.0
    %351 = vmatpush1.msra.mxu0 0.0
    %352 = vmatprep.subr.mxu0 0.0
    %353 = vmatpush1.msra.mxu0 0.0
    %354 = vmatprep.subr.mxu0 0.0
    %355 = vmatpush1.msra.mxu0 0.0
    %356 = vmatprep.subr.mxu0 0.0
    %357 = vmatpush1.msra.mxu0 0.0
    %358 = vmatprep.subr.mxu0 0.0
    %359 = vmatpush1.msra.mxu0 0.0
    %360 = vmatprep.subr.mxu0 0.0
    %361 = vmatpush1.msra.mxu0 0.0
    %362 = vmatprep.subr.mxu0 0.0
    %363 = vmatpush1.msra.mxu0 0.0
    %364 = vmatprep.subr.mxu0 0.0
    %365 = vmatpush1.msra.mxu0 0.0
    %366 = vmatprep.subr.mxu0 0.0
    %367 = vmatpush1.msra.mxu0 0.0
    %368 = vmatprep.subr.mxu0 0.0
    %369 = vmatpush1.msra.mxu0 0.0
    %370 = vmatprep.subr.mxu0 0.0
    %371 = vmatpush1.msra.mxu0 0.0
    %372 = vmatprep.mubr.f32.mxu0 0.0
    %373 = vmatmul.mubr.f32.gmra.mrb[0].mxu0 %v306
    %v374 = vpop.f32.mrb[0].mxu0
    %v375 = vadd.f32 0.0, %v374
    %v376 = vpop.f32.mrb[0].mxu0
    %377 = vdwg.mxu0
    %v378 = vadd.f32 %v173, %v375
    %v379 = vxor.u32 %v378, 2147483648
    %v380 = vmul.f32 %v379, 1.442695
    %v381 = vpow.pop %v380
    %v382 = vadd.f32 %v381, 1.0
    %v383 = vrcp.pop %v382
    %v384 = vmul.f32 1.0, %v383
    %v385 = vtanh.pop %v378
    %v386 = vmul.f32 %v384, %v296
    %388 = vrot.lane.b32.xlu0 %v385, 64
    %v389 = vpop.permute.xlu0 %388
    %v391 = vmul.f32 %v384, %v389
    %393 = vrot.lane.b32.xlu0 %v391, 32
    %v394 = vpop.permute.xlu0 %393
    %v396 = vadd.f32 %v386, %v394
    %v397 = vtanh.pop %v396
    %399 = vrot.lane.b32.xlu0 %v397, 64
    %v400 = vpop.permute.xlu0 %399
    %v402 = vmul.f32 %v384, %v400
    %403 = vmatprep.subr.mxu0 0.0
    %404 = vmatpush1.msra.mxu0 %v58
    %405 = vmatprep.subr.mxu0 0.0
    %406 = vmatpush1.msra.mxu0 %v59
    %407 = vmatprep.subr.mxu0 0.0
    %408 = vmatpush1.msra.mxu0 %v60
    %409 = vmatprep.subr.mxu0 0.0
    %410 = vmatpush1.msra.mxu0 %v61
    %411 = vmatprep.subr.mxu0 0.0
    %412 = vmatpush1.msra.mxu0 0.0
    %413 = vmatprep.subr.mxu0 0.0
    %414 = vmatpush1.msra.mxu0 0.0
    %415 = vmatprep.subr.mxu0 0.0
    %416 = vmatpush1.msra.mxu0 0.0
    %417 = vmatprep.subr.mxu0 0.0
    %418 = vmatpush1.msra.mxu0 0.0
    %419 = vmatprep.subr.mxu0 0.0
    %420 = vmatpush1.msra.mxu0 0.0
    %421 = vmatprep.subr.mxu0 0.0
    %422 = vmatpush1.msra.mxu0 0.0
    %423 = vmatprep.subr.mxu0 0.0
    %424 = vmatpush1.msra.mxu0 0.0
    %425 = vmatprep.subr.mxu0 0.0
    %426 = vmatpush1.msra.mxu0 0.0
    %427 = vmatprep.subr.mxu0 0.0
    %428 = vmatpush1.msra.mxu0 0.0
    %429 = vmatprep.subr.mxu0 0.0
    %430 = vmatpush1.msra.mxu0 0.0
    %431 = vmatprep.subr.mxu0 0.0
    %432 = vmatpush1.msra.mxu0 0.0
    %433 = vmatprep.subr.mxu0 0.0
    %434 = vmatpush1.msra.mxu0 0.0
    %435 = vmatprep.subr.mxu0 0.0
    %436 = vmatpush1.msra.mxu0 0.0
    %437 = vmatprep.subr.mxu0 0.0
    %438 = vmatpush1.msra.mxu0 0.0
    %439 = vmatprep.subr.mxu0 0.0
    %440 = vmatpush1.msra.mxu0 0.0
    %441 = vmatprep.subr.mxu0 0.0
    %442 = vmatpush1.msra.mxu0 0.0
    %443 = vmatprep.subr.mxu0 0.0
    %444 = vmatpush1.msra.mxu0 0.0
    %445 = vmatprep.subr.mxu0 0.0
    %446 = vmatpush1.msra.mxu0 0.0
    %447 = vmatprep.subr.mxu0 0.0
    %448 = vmatpush1.msra.mxu0 0.0
    %449 = vmatprep.subr.mxu0 0.0
    %450 = vmatpush1.msra.mxu0 0.0
    %451 = vmatprep.subr.mxu0 0.0
    %452 = vmatpush1.msra.mxu0 0.0
    %453 = vmatprep.subr.mxu0 0.0
    %454 = vmatpush1.msra.mxu0 0.0
    %455 = vmatprep.subr.mxu0 0.0
    %456 = vmatpush1.msra.mxu0 0.0
    %457 = vmatprep.subr.mxu0 0.0
    %458 = vmatpush1.msra.mxu0 0.0
    %459 = vmatprep.subr.mxu0 0.0
    %460 = vmatpush1.msra.mxu0 0.0
    %461 = vmatprep.subr.mxu0 0.0
    %462 = vmatpush1.msra.mxu0 0.0
    %463 = vmatprep.subr.mxu0 0.0
    %464 = vmatpush1.msra.mxu0 0.0
    %465 = vmatprep.subr.mxu0 0.0
    %466 = vmatpush1.msra.mxu0 0.0
    %467 = vmatprep.mubr.f32.mxu0 0.0
    %468 = vmatmul.mubr.f32.gmra.mrb[0].mxu0 %v206
    %v469 = vpop.f32.mrb[0].mxu0
    %v470 = vadd.f32 0.0, %v469
    %v471 = vpop.f32.mrb[0].mxu0
    %472 = vdwg.mxu0
    %473 = vmatprep.subr.mxu0 0.0
    %474 = vmatpush1.msra.mxu0 %v54
    %475 = vmatprep.subr.mxu0 0.0
    %476 = vmatpush1.msra.mxu0 %v55
    %477 = vmatprep.subr.mxu0 0.0
    %478 = vmatpush1.msra.mxu0 %v56
    %479 = vmatprep.subr.mxu0 0.0
    %480 = vmatpush1.msra.mxu0 %v57
    %481 = vmatprep.subr.mxu0 0.0
    %482 = vmatpush1.msra.mxu0 0.0
    %483 = vmatprep.subr.mxu0 0.0
    %484 = vmatpush1.msra.mxu0 0.0
    %485 = vmatprep.subr.mxu0 0.0
    %486 = vmatpush1.msra.mxu0 0.0
    %487 = vmatprep.subr.mxu0 0.0
    %488 = vmatpush1.msra.mxu0 0.0
    %489 = vmatprep.subr.mxu0 0.0
    %490 = vmatpush1.msra.mxu0 0.0
    %491 = vmatprep.subr.mxu0 0.0
    %492 = vmatpush1.msra.mxu0 0.0
    %493 = vmatprep.subr.mxu0 0.0
    %494 = vmatpush1.msra.mxu0 0.0
    %495 = vmatprep.subr.mxu0 0.0
    %496 = vmatpush1.msra.mxu0 0.0
    %497 = vmatprep.subr.mxu0 0.0
    %498 = vmatpush1.msra.mxu0 0.0
    %499 = vmatprep.subr.mxu0 0.0
    %500 = vmatpush1.msra.mxu0 0.0
    %501 = vmatprep.subr.mxu0 0.0
    %502 = vmatpush1.msra.mxu0 0.0
    %503 = vmatprep.subr.mxu0 0.0
    %504 = vmatpush1.msra.mxu0 0.0
    %505 = vmatprep.subr.mxu0 0.0
    %506 = vmatpush1.msra.mxu0 0.0
    %507 = vmatprep.subr.mxu0 0.0
    %508 = vmatpush1.msra.mxu0 0.0
    %509 = vmatprep.subr.mxu0 0.0
    %510 = vmatpush1.msra.mxu0 0.0
    %511 = vmatprep.subr.mxu0 0.0
    %512 = vmatpush1.msra.mxu0 0.0
    %513 = vmatprep.subr.mxu0 0.0
    %514 = vmatpush1.msra.mxu0 0.0
    %515 = vmatprep.subr.mxu0 0.0
    %516 = vmatpush1.msra.mxu0 0.0
    %517 = vmatprep.subr.mxu0 0.0
    %518 = vmatpush1.msra.mxu0 0.0
    %519 = vmatprep.subr.mxu0 0.0
    %520 = vmatpush1.msra.mxu0 0.0
    %521 = vmatprep.subr.mxu0 0.0
    %522 = vmatpush1.msra.mxu0 0.0
    %523 = vmatprep.subr.mxu0 0.0
    %524 = vmatpush1.msra.mxu0 0.0
    %525 = vmatprep.subr.mxu0 0.0
    %526 = vmatpush1.msra.mxu0 0.0
    %527 = vmatprep.subr.mxu0 0.0
    %528 = vmatpush1.msra.mxu0 0.0
    %529 = vmatprep.subr.mxu0 0.0
    %530 = vmatpush1.msra.mxu0 0.0
    %531 = vmatprep.subr.mxu0 0.0
    %532 = vmatpush1.msra.mxu0 0.0
    %533 = vmatprep.subr.mxu0 0.0
    %534 = vmatpush1.msra.mxu0 0.0
    %535 = vmatprep.subr.mxu0 0.0
    %536 = vmatpush1.msra.mxu0 0.0
    %537 = vmatprep.mubr.f32.mxu0 0.0
    %538 = vmatmul.mubr.f32.gmra.mrb[0].mxu0 %v306
    %v539 = vpop.f32.mrb[0].mxu0
    %v540 = vadd.f32 %v470, %v539
    %v541 = vpop.f32.mrb[0].mxu0
    %542 = vdwg.mxu0
    %v543 = vadd.f32 %v540, %v199
    %v544 = vxor.u32 %v543, 2147483648
    %v545 = vmul.f32 %v544, 1.442695
    %v546 = vpow.pop %v545
    %v547 = vadd.f32 %v546, 1.0
    %v548 = vrcp.pop %v547
    %v549 = vmul.f32 1.0, %v548
    %v550 = vtanh.pop %v543
    %v551 = vmul.f32 %v549, 0.0
    %553 = vrot.lane.b32.xlu0 %v550, 64
    %v554 = vpop.permute.xlu0 %553
    %v556 = vmul.f32 %v549, %v554
    %558 = vrot.lane.b32.xlu0 %v556, 32
    %v559 = vpop.permute.xlu0 %558
    %v561 = vadd.f32 %v551, %v559
    %v562 = vtanh.pop %v561
    %564 = vrot.lane.b32.xlu0 %v562, 64
    %v565 = vpop.permute.xlu0 %564
    %v567 = vmul.f32 %v549, %v565
    %569 = vrot.lane.b32.xlu0 %v402, 32
    %v570 = vpop.permute.xlu0 %569
    %v571 = vsel %vm204, %v570, 0
    %573 = vmatprep.subr.mxu0 0.0
    %574 = vmatpush1.msra.mxu0 %v49
    %575 = vmatprep.subr.mxu0 0.0
    %576 = vmatpush1.msra.mxu0 %v50
    %577 = vmatprep.subr.mxu0 0.0
    %578 = vmatpush1.msra.mxu0 %v51
    %579 = vmatprep.subr.mxu0 0.0
    %580 = vmatpush1.msra.mxu0 %v52
    %581 = vmatprep.subr.mxu0 0.0
    %582 = vmatpush1.msra.mxu0 0.0
    %583 = vmatprep.subr.mxu0 0.0
    %584 = vmatpush1.msra.mxu0 0.0
    %585 = vmatprep.subr.mxu0 0.0
    %586 = vmatpush1.msra.mxu0 0.0
    %587 = vmatprep.subr.mxu0 0.0
    %588 = vmatpush1.msra.mxu0 0.0
    %589 = vmatprep.subr.mxu0 0.0
    %590 = vmatpush1.msra.mxu0 0.0
    %591 = vmatprep.subr.mxu0 0.0
    %592 = vmatpush1.msra.mxu0 0.0
    %593 = vmatprep.subr.mxu0 0.0
    %594 = vmatpush1.msra.mxu0 0.0
    %595 = vmatprep.subr.mxu0 0.0
    %596 = vmatpush1.msra.mxu0 0.0
    %597 = vmatprep.subr.mxu0 0.0
    %598 = vmatpush1.msra.mxu0 0.0
    %599 = vmatprep.subr.mxu0 0.0
    %600 = vmatpush1.msra.mxu0 0.0
    %601 = vmatprep.subr.mxu0 0.0
    %602 = vmatpush1.msra.mxu0 0.0
    %603 = vmatprep.subr.mxu0 0.0
    %604 = vmatpush1.msra.mxu0 0.0
    %605 = vmatprep.subr.mxu0 0.0
    %606 = vmatpush1.msra.mxu0 0.0
    %607 = vmatprep.subr.mxu0 0.0
    %608 = vmatpush1.msra.mxu0 0.0
    %609 = vmatprep.subr.mxu0 0.0
    %610 = vmatpush1.msra.mxu0 0.0
    %611 = vmatprep.subr.mxu0 0.0
    %612 = vmatpush1.msra.mxu0 0.0
    %613 = vmatprep.subr.mxu0 0.0
    %614 = vmatpush1.msra.mxu0 0.0
    %615 = vmatprep.subr.mxu0 0.0
    %616 = vmatpush1.msra.mxu0 0.0
    %617 = vmatprep.subr.mxu0 0.0
    %618 = vmatpush1.msra.mxu0 0.0
    %619 = vmatprep.subr.mxu0 0.0
    %620 = vmatpush1.msra.mxu0 0.0
    %621 = vmatprep.subr.mxu0 0.0
    %622 = vmatpush1.msra.mxu0 0.0
    %623 = vmatprep.subr.mxu0 0.0
    %624 = vmatpush1.msra.mxu0 0.0
    %625 = vmatprep.subr.mxu0 0.0
    %626 = vmatpush1.msra.mxu0 0.0
    %627 = vmatprep.subr.mxu0 0.0
    %628 = vmatpush1.msra.mxu0 0.0
    %629 = vmatprep.subr.mxu0 0.0
    %630 = vmatpush1.msra.mxu0 0.0
    %631 = vmatprep.subr.mxu0 0.0
    %632 = vmatpush1.msra.mxu0 0.0
    %633 = vmatprep.subr.mxu0 0.0
    %634 = vmatpush1.msra.mxu0 0.0
    %635 = vmatprep.subr.mxu0 0.0
    %636 = vmatpush1.msra.mxu0 0.0
    %637 = vmatprep.mubr.f32.mxu0 0.0
    %638 = vmatmul.mubr.f32.gmra.mrb[0].mxu0 %v571
    %v639 = vpop.f32.mrb[0].mxu0
    %v640 = vadd.f32 0.0, %v639
    %v641 = vpop.f32.mrb[0].mxu0
    %642 = vdwg.mxu0
    %v643 = vadd.f32 %v178, %v640
    %v644 = vxor.u32 %v643, 2147483648
    %v645 = vmul.f32 %v644, 1.442695
    %v646 = vpow.pop %v645
    %v647 = vadd.f32 %v646, 1.0
    %v648 = vrcp.pop %v647
    %v649 = vmul.f32 1.0, %v648
    %v650 = vtanh.pop %v643
    %v651 = vmul.f32 %v649, %v396
    %653 = vrot.lane.b32.xlu0 %v650, 64
    %v654 = vpop.permute.xlu0 %653
    %v656 = vmul.f32 %v649, %v654
    %658 = vrot.lane.b32.xlu0 %v656, 32
    %v659 = vpop.permute.xlu0 %658
    %v661 = vadd.f32 %v651, %v659
    %v662 = vtanh.pop %v661
    %664 = vrot.lane.b32.xlu0 %v662, 64
    %v665 = vpop.permute.xlu0 %664
    %v667 = vmul.f32 %v649, %v665
    %669 = vrot.lane.b32.xlu0 %v567, 32
    %v670 = vpop.permute.xlu0 %669
    %v671 = vsel %vm204, %v670, 0
    %673 = vmatprep.subr.mxu0 0.0
    %674 = vmatpush1.msra.mxu0 %v58
    %675 = vmatprep.subr.mxu0 0.0
    %676 = vmatpush1.msra.mxu0 %v59
    %677 = vmatprep.subr.mxu0 0.0
    %678 = vmatpush1.msra.mxu0 %v60
    %679 = vmatprep.subr.mxu0 0.0
    %680 = vmatpush1.msra.mxu0 %v61
    %681 = vmatprep.subr.mxu0 0.0
    %682 = vmatpush1.msra.mxu0 0.0
    %683 = vmatprep.subr.mxu0 0.0
    %684 = vmatpush1.msra.mxu0 0.0
    %685 = vmatprep.subr.mxu0 0.0
    %686 = vmatpush1.msra.mxu0 0.0
    %687 = vmatprep.subr.mxu0 0.0
    %688 = vmatpush1.msra.mxu0 0.0
    %689 = vmatprep.subr.mxu0 0.0
    %690 = vmatpush1.msra.mxu0 0.0
    %691 = vmatprep.subr.mxu0 0.0
    %692 = vmatpush1.msra.mxu0 0.0
    %693 = vmatprep.subr.mxu0 0.0
    %694 = vmatpush1.msra.mxu0 0.0
    %695 = vmatprep.subr.mxu0 0.0
    %696 = vmatpush1.msra.mxu0 0.0
    %697 = vmatprep.subr.mxu0 0.0
    %698 = vmatpush1.msra.mxu0 0.0
    %699 = vmatprep.subr.mxu0 0.0
    %700 = vmatpush1.msra.mxu0 0.0
    %701 = vmatprep.subr.mxu0 0.0
    %702 = vmatpush1.msra.mxu0 0.0
    %703 = vmatprep.subr.mxu0 0.0
    %704 = vmatpush1.msra.mxu0 0.0
    %705 = vmatprep.subr.mxu0 0.0
    %706 = vmatpush1.msra.mxu0 0.0
    %707 = vmatprep.subr.mxu0 0.0
    %708 = vmatpush1.msra.mxu0 0.0
    %709 = vmatprep.subr.mxu0 0.0
    %710 = vmatpush1.msra.mxu0 0.0
    %711 = vmatprep.subr.mxu0 0.0
    %712 = vmatpush1.msra.mxu0 0.0
    %713 = vmatprep.subr.mxu0 0.0
    %714 = vmatpush1.msra.mxu0 0.0
    %715 = vmatprep.subr.mxu0 0.0
    %716 = vmatpush1.msra.mxu0 0.0
    %717 = vmatprep.subr.mxu0 0.0
    %718 = vmatpush1.msra.mxu0 0.0
    %719 = vmatprep.subr.mxu0 0.0
    %720 = vmatpush1.msra.mxu0 0.0
    %721 = vmatprep.subr.mxu0 0.0
    %722 = vmatpush1.msra.mxu0 0.0
    %723 = vmatprep.subr.mxu0 0.0
    %724 = vmatpush1.msra.mxu0 0.0
    %725 = vmatprep.subr.mxu0 0.0
    %726 = vmatpush1.msra.mxu0 0.0
    %727 = vmatprep.subr.mxu0 0.0
    %728 = vmatpush1.msra.mxu0 0.0
    %729 = vmatprep.subr.mxu0 0.0
    %730 = vmatpush1.msra.mxu0 0.0
    %731 = vmatprep.subr.mxu0 0.0
    %732 = vmatpush1.msra.mxu0 0.0
    %733 = vmatprep.subr.mxu0 0.0
    %734 = vmatpush1.msra.mxu0 0.0
    %735 = vmatprep.subr.mxu0 0.0
    %736 = vmatpush1.msra.mxu0 0.0
    %737 = vmatprep.mubr.f32.mxu0 0.0
    %738 = vmatmul.mubr.f32.gmra.mrb[0].mxu0 %v671
    %v739 = vpop.f32.mrb[0].mxu0
    %v740 = vadd.f32 0.0, %v739
    %v741 = vpop.f32.mrb[0].mxu0
    %742 = vdwg.mxu0
    %743 = vmatprep.subr.mxu0 0.0
    %744 = vmatpush1.msra.mxu0 %v54
    %745 = vmatprep.subr.mxu0 0.0
    %746 = vmatpush1.msra.mxu0 %v55
    %747 = vmatprep.subr.mxu0 0.0
    %748 = vmatpush1.msra.mxu0 %v56
    %749 = vmatprep.subr.mxu0 0.0
    %750 = vmatpush1.msra.mxu0 %v57
    %751 = vmatprep.subr.mxu0 0.0
    %752 = vmatpush1.msra.mxu0 0.0
    %753 = vmatprep.subr.mxu0 0.0
    %754 = vmatpush1.msra.mxu0 0.0
    %755 = vmatprep.subr.mxu0 0.0
    %756 = vmatpush1.msra.mxu0 0.0
    %757 = vmatprep.subr.mxu0 0.0
    %758 = vmatpush1.msra.mxu0 0.0
    %759 = vmatprep.subr.mxu0 0.0
    %760 = vmatpush1.msra.mxu0 0.0
    %761 = vmatprep.subr.mxu0 0.0
    %762 = vmatpush1.msra.mxu0 0.0
    %763 = vmatprep.subr.mxu0 0.0
    %764 = vmatpush1.msra.mxu0 0.0
    %765 = vmatprep.subr.mxu0 0.0
    %766 = vmatpush1.msra.mxu0 0.0
    %767 = vmatprep.subr.mxu0 0.0
    %768 = vmatpush1.msra.mxu0 0.0
    %769 = vmatprep.subr.mxu0 0.0
    %770 = vmatpush1.msra.mxu0 0.0
    %771 = vmatprep.subr.mxu0 0.0
    %772 = vmatpush1.msra.mxu0 0.0
    %773 = vmatprep.subr.mxu0 0.0
    %774 = vmatpush1.msra.mxu0 0.0
    %775 = vmatprep.subr.mxu0 0.0
    %776 = vmatpush1.msra.mxu0 0.0
    %777 = vmatprep.subr.mxu0 0.0
    %778 = vmatpush1.msra.mxu0 0.0
    %779 = vmatprep.subr.mxu0 0.0
    %780 = vmatpush1.msra.mxu0 0.0
    %781 = vmatprep.subr.mxu0 0.0
    %782 = vmatpush1.msra.mxu0 0.0
    %783 = vmatprep.subr.mxu0 0.0
    %784 = vmatpush1.msra.mxu0 0.0
    %785 = vmatprep.subr.mxu0 0.0
    %786 = vmatpush1.msra.mxu0 0.0
    %787 = vmatprep.subr.mxu0 0.0
    %788 = vmatpush1.msra.mxu0 0.0
    %789 = vmatprep.subr.mxu0 0.0
    %790 = vmatpush1.msra.mxu0 0.0
    %791 = vmatprep.subr.mxu0 0.0
    %792 = vmatpush1.msra.mxu0 0.0
    %793 = vmatprep.subr.mxu0 0.0
    %794 = vmatpush1.msra.mxu0 0.0
    %795 = vmatprep.subr.mxu0 0.0
    %796 = vmatpush1.msra.mxu0 0.0
    %797 = vmatprep.subr.mxu0 0.0
    %798 = vmatpush1.msra.mxu0 0.0
    %799 = vmatprep.subr.mxu0 0.0
    %800 = vmatpush1.msra.mxu0 0.0
    %801 = vmatprep.subr.mxu0 0.0
    %802 = vmatpush1.msra.mxu0 0.0
    %803 = vmatprep.subr.mxu0 0.0
    %804 = vmatpush1.msra.mxu0 0.0
    %805 = vmatprep.subr.mxu0 0.0
    %806 = vmatpush1.msra.mxu0 0.0
    %807 = vmatprep.mubr.f32.mxu0 0.0
    %808 = vmatmul.mubr.f32.gmra.mrb[0].mxu0 %v571
    %v809 = vpop.f32.mrb[0].mxu0
    %v810 = vadd.f32 %v740, %v809
    %v811 = vpop.f32.mrb[0].mxu0
    %812 = vdwg.mxu0
    %v813 = vadd.f32 %v810, %v199
    %v814 = vxor.u32 %v813, 2147483648
    %v815 = vmul.f32 %v814, 1.442695
    %v816 = vpow.pop %v815
    %v817 = vadd.f32 %v816, 1.0
    %v818 = vrcp.pop %v817
    %v819 = vmul.f32 1.0, %v818
    %v820 = vtanh.pop %v813
    %v821 = vmul.f32 %v819, %v561
    %823 = vrot.lane.b32.xlu0 %v820, 64
    %v824 = vpop.permute.xlu0 %823
    %v826 = vmul.f32 %v819, %v824
    %828 = vrot.lane.b32.xlu0 %v826, 32
    %v829 = vpop.permute.xlu0 %828
    %v831 = vadd.f32 %v821, %v829
    %v832 = vtanh.pop %v831
    %834 = vrot.lane.b32.xlu0 %v832, 64
    %v835 = vpop.permute.xlu0 %834
    %v837 = vmul.f32 %v819, %v835
    %838 = vmatprep.subr.mxu0 0.0
    %839 = vmatpush1.msra.mxu0 %v67
    %840 = vmatprep.subr.mxu0 0.0
    %841 = vmatpush1.msra.mxu0 %v68
    %842 = vmatprep.subr.mxu0 0.0
    %843 = vmatpush1.msra.mxu0 %v69
    %844 = vmatprep.subr.mxu0 0.0
    %845 = vmatpush1.msra.mxu0 %v70
    %846 = vmatprep.subr.mxu0 0.0
    %847 = vmatpush1.msra.mxu0 0.0
    %848 = vmatprep.subr.mxu0 0.0
    %849 = vmatpush1.msra.mxu0 0.0
    %850 = vmatprep.subr.mxu0 0.0
    %851 = vmatpush1.msra.mxu0 0.0
    %852 = vmatprep.subr.mxu0 0.0
    %853 = vmatpush1.msra.mxu0 0.0
    %854 = vmatprep.subr.mxu0 0.0
    %855 = vmatpush1.msra.mxu0 0.0
    %856 = vmatprep.subr.mxu0 0.0
    %857 = vmatpush1.msra.mxu0 0.0
    %858 = vmatprep.subr.mxu0 0.0
    %859 = vmatpush1.msra.mxu0 0.0
    %860 = vmatprep.subr.mxu0 0.0
    %861 = vmatpush1.msra.mxu0 0.0
    %862 = vmatprep.subr.mxu0 0.0
    %863 = vmatpush1.msra.mxu0 0.0
    %864 = vmatprep.subr.mxu0 0.0
    %865 = vmatpush1.msra.mxu0 0.0
    %866 = vmatprep.subr.mxu0 0.0
    %867 = vmatpush1.msra.mxu0 0.0
    %868 = vmatprep.subr.mxu0 0.0
    %869 = vmatpush1.msra.mxu0 0.0
    %870 = vmatprep.subr.mxu0 0.0
    %871 = vmatpush1.msra.mxu0 0.0
    %872 = vmatprep.subr.mxu0 0.0
    %873 = vmatpush1.msra.mxu0 0.0
    %874 = vmatprep.subr.mxu0 0.0
    %875 = vmatpush1.msra.mxu0 0.0
    %876 = vmatprep.subr.mxu0 0.0
    %877 = vmatpush1.msra.mxu0 0.0
    %878 = vmatprep.subr.mxu0 0.0
    %879 = vmatpush1.msra.mxu0 0.0
    %880 = vmatprep.subr.mxu0 0.0
    %881 = vmatpush1.msra.mxu0 0.0
    %882 = vmatprep.subr.mxu0 0.0
    %883 = vmatpush1.msra.mxu0 0.0
    %884 = vmatprep.subr.mxu0 0.0
    %885 = vmatpush1.msra.mxu0 0.0
    %886 = vmatprep.subr.mxu0 0.0
    %887 = vmatpush1.msra.mxu0 0.0
    %888 = vmatprep.subr.mxu0 0.0
    %889 = vmatpush1.msra.mxu0 0.0
    %890 = vmatprep.subr.mxu0 0.0
    %891 = vmatpush1.msra.mxu0 0.0
    %892 = vmatprep.subr.mxu0 0.0
    %893 = vmatpush1.msra.mxu0 0.0
    %894 = vmatprep.subr.mxu0 0.0
    %895 = vmatpush1.msra.mxu0 0.0
    %896 = vmatprep.subr.mxu0 0.0
    %897 = vmatpush1.msra.mxu0 0.0
    %898 = vmatprep.subr.mxu0 0.0
    %899 = vmatpush1.msra.mxu0 0.0
    %900 = vmatprep.subr.mxu0 0.0
    %901 = vmatpush1.msra.mxu0 0.0
    %902 = vmatprep.mubr.f32.mxu0 0.0
    %903 = vmatmul.mubr.f32.gmra.mrb[0].mxu0 %v206
    %v904 = vpop.f32.mrb[0].mxu0
    %v905 = vadd.f32 0.0, %v904
    %v906 = vpop.f32.mrb[0].mxu0
    %907 = vdwg.mxu0
    %908 = vmatprep.subr.mxu0 0.0
    %909 = vmatpush1.msra.mxu0 %v63
    %910 = vmatprep.subr.mxu0 0.0
    %911 = vmatpush1.msra.mxu0 %v64
    %912 = vmatprep.subr.mxu0 0.0
    %913 = vmatpush1.msra.mxu0 %v65
    %914 = vmatprep.subr.mxu0 0.0
    %915 = vmatpush1.msra.mxu0 %v66
    %916 = vmatprep.subr.mxu0 0.0
    %917 = vmatpush1.msra.mxu0 0.0
    %918 = vmatprep.subr.mxu0 0.0
    %919 = vmatpush1.msra.mxu0 0.0
    %920 = vmatprep.subr.mxu0 0.0
    %921 = vmatpush1.msra.mxu0 0.0
    %922 = vmatprep.subr.mxu0 0.0
    %923 = vmatpush1.msra.mxu0 0.0
    %924 = vmatprep.subr.mxu0 0.0
    %925 = vmatpush1.msra.mxu0 0.0
    %926 = vmatprep.subr.mxu0 0.0
    %927 = vmatpush1.msra.mxu0 0.0
    %928 = vmatprep.subr.mxu0 0.0
    %929 = vmatpush1.msra.mxu0 0.0
    %930 = vmatprep.subr.mxu0 0.0
    %931 = vmatpush1.msra.mxu0 0.0
    %932 = vmatprep.subr.mxu0 0.0
    %933 = vmatpush1.msra.mxu0 0.0
    %934 = vmatprep.subr.mxu0 0.0
    %935 = vmatpush1.msra.mxu0 0.0
    %936 = vmatprep.subr.mxu0 0.0
    %937 = vmatpush1.msra.mxu0 0.0
    %938 = vmatprep.subr.mxu0 0.0
    %939 = vmatpush1.msra.mxu0 0.0
    %940 = vmatprep.subr.mxu0 0.0
    %941 = vmatpush1.msra.mxu0 0.0
    %942 = vmatprep.subr.mxu0 0.0
    %943 = vmatpush1.msra.mxu0 0.0
    %944 = vmatprep.subr.mxu0 0.0
    %945 = vmatpush1.msra.mxu0 0.0
    %946 = vmatprep.subr.mxu0 0.0
    %947 = vmatpush1.msra.mxu0 0.0
    %948 = vmatprep.subr.mxu0 0.0
    %949 = vmatpush1.msra.mxu0 0.0
    %950 = vmatprep.subr.mxu0 0.0
    %951 = vmatpush1.msra.mxu0 0.0
    %952 = vmatprep.subr.mxu0 0.0
    %953 = vmatpush1.msra.mxu0 0.0
    %954 = vmatprep.subr.mxu0 0.0
    %955 = vmatpush1.msra.mxu0 0.0
    %956 = vmatprep.subr.mxu0 0.0
    %957 = vmatpush1.msra.mxu0 0.0
    %958 = vmatprep.subr.mxu0 0.0
    %959 = vmatpush1.msra.mxu0 0.0
    %960 = vmatprep.subr.mxu0 0.0
    %961 = vmatpush1.msra.mxu0 0.0
    %962 = vmatprep.subr.mxu0 0.0
    %963 = vmatpush1.msra.mxu0 0.0
    %964 = vmatprep.subr.mxu0 0.0
    %965 = vmatpush1.msra.mxu0 0.0
    %966 = vmatprep.subr.mxu0 0.0
    %967 = vmatpush1.msra.mxu0 0.0
    %968 = vmatprep.subr.mxu0 0.0
    %969 = vmatpush1.msra.mxu0 0.0
    %970 = vmatprep.subr.mxu0 0.0
    %971 = vmatpush1.msra.mxu0 0.0
    %972 = vmatprep.mubr.f32.mxu0 0.0
    %973 = vmatmul.mubr.f32.gmra.mrb[0].mxu0 %v671
    %v974 = vpop.f32.mrb[0].mxu0
    %v975 = vadd.f32 %v905, %v974
    %v976 = vpop.f32.mrb[0].mxu0
    %977 = vdwg.mxu0
    %v978 = vadd.f32 %v975, %v203
    %v979 = vxor.u32 %v978, 2147483648
    %v980 = vmul.f32 %v979, 1.442695
    %v981 = vpow.pop %v980
    %v982 = vadd.f32 %v981, 1.0
    %v983 = vrcp.pop %v982
    %v984 = vmul.f32 1.0, %v983
    %v985 = vtanh.pop %v978
    %v986 = vmul.f32 %v984, 0.0
    %988 = vrot.lane.b32.xlu0 %v985, 64
    %v989 = vpop.permute.xlu0 %988
    %v991 = vmul.f32 %v984, %v989
    %993 = vrot.lane.b32.xlu0 %v991, 32
    %v994 = vpop.permute.xlu0 %993
    %v996 = vadd.f32 %v986, %v994
    %v997 = vtanh.pop %v996
    %999 = vrot.lane.b32.xlu0 %v997, 64
    %v1000 = vpop.permute.xlu0 %999
    %v1002 = vmul.f32 %v984, %v1000
    %1004 = vrot.lane.b32.xlu0 %v667, 32
    %v1005 = vpop.permute.xlu0 %1004
    %v1006 = vsel %vm204, %v1005, 0
    %1008 = vmatprep.subr.mxu0 0.0
    %1009 = vmatpush1.msra.mxu0 %v49
    %1010 = vmatprep.subr.mxu0 0.0
    %1011 = vmatpush1.msra.mxu0 %v50
    %1012 = vmatprep.subr.mxu0 0.0
    %1013 = vmatpush1.msra.mxu0 %v51
    %1014 = vmatprep.subr.mxu0 0.0
    %1015 = vmatpush1.msra.mxu0 %v52
    %1016 = vmatprep.subr.mxu0 0.0
    %1017 = vmatpush1.msra.mxu0 0.0
    %1018 = vmatprep.subr.mxu0 0.0
    %1019 = vmatpush1.msra.mxu0 0.0
    %1020 = vmatprep.subr.mxu0 0.0
    %1021 = vmatpush1.msra.mxu0 0.0
    %1022 = vmatprep.subr.mxu0 0.0
    %1023 = vmatpush1.msra.mxu0 0.0
    %1024 = vmatprep.subr.mxu0 0.0
    %1025 = vmatpush1.msra.mxu0 0.0
    %1026 = vmatprep.subr.mxu0 0.0
    %1027 = vmatpush1.msra.mxu0 0.0
    %1028 = vmatprep.subr.mxu0 0.0
    %1029 = vmatpush1.msra.mxu0 0.0
    %1030 = vmatprep.subr.mxu0 0.0
    %1031 = vmatpush1.msra.mxu0 0.0
    %1032 = vmatprep.subr.mxu0 0.0
    %1033 = vmatpush1.msra.mxu0 0.0
    %1034 = vmatprep.subr.mxu0 0.0
    %1035 = vmatpush1.msra.mxu0 0.0
    %1036 = vmatprep.subr.mxu0 0.0
    %1037 = vmatpush1.msra.mxu0 0.0
    %1038 = vmatprep.subr.mxu0 0.0
    %1039 = vmatpush1.msra.mxu0 0.0
    %1040 = vmatprep.subr.mxu0 0.0
    %1041 = vmatpush1.msra.mxu0 0.0
    %1042 = vmatprep.subr.mxu0 0.0
    %1043 = vmatpush1.msra.mxu0 0.0
    %1044 = vmatprep.subr.mxu0 0.0
    %1045 = vmatpush1.msra.mxu0 0.0
    %1046 = vmatprep.subr.mxu0 0.0
    %1047 = vmatpush1.msra.mxu0 0.0
    %1048 = vmatprep.subr.mxu0 0.0
    %1049 = vmatpush1.msra.mxu0 0.0
    %1050 = vmatprep.subr.mxu0 0.0
    %1051 = vmatpush1.msra.mxu0 0.0
    %1052 = vmatprep.subr.mxu0 0.0
    %1053 = vmatpush1.msra.mxu0 0.0
    %1054 = vmatprep.subr.mxu0 0.0
    %1055 = vmatpush1.msra.mxu0 0.0
    %1056 = vmatprep.subr.mxu0 0.0
    %1057 = vmatpush1.msra.mxu0 0.0
    %1058 = vmatprep.subr.mxu0 0.0
    %1059 = vmatpush1.msra.mxu0 0.0
    %1060 = vmatprep.subr.mxu0 0.0
    %1061 = vmatpush1.msra.mxu0 0.0
    %1062 = vmatprep.subr.mxu0 0.0
    %1063 = vmatpush1.msra.mxu0 0.0
    %1064 = vmatprep.subr.mxu0 0.0
    %1065 = vmatpush1.msra.mxu0 0.0
    %1066 = vmatprep.subr.mxu0 0.0
    %1067 = vmatpush1.msra.mxu0 0.0
    %1068 = vmatprep.subr.mxu0 0.0
    %1069 = vmatpush1.msra.mxu0 0.0
    %1070 = vmatprep.subr.mxu0 0.0
    %1071 = vmatpush1.msra.mxu0 0.0
    %1072 = vmatprep.mubr.f32.mxu0 0.0
    %1073 = vmatmul.mubr.f32.gmra.mrb[0].mxu0 %v1006
    %v1074 = vpop.f32.mrb[0].mxu0
    %v1075 = vadd.f32 0.0, %v1074
    %v1076 = vpop.f32.mrb[0].mxu0
    %1077 = vdwg.mxu0
    %v1078 = vadd.f32 %v183, %v1075
    %v1079 = vxor.u32 %v1078, 2147483648
    %v1080 = vmul.f32 %v1079, 1.442695
    %v1081 = vpow.pop %v1080
    %v1082 = vadd.f32 %v1081, 1.0
    %v1083 = vrcp.pop %v1082
    %v1084 = vmul.f32 1.0, %v1083
    %v1085 = vtanh.pop %v1078
    %v1086 = vmul.f32 %v1084, %v661
    %1088 = vrot.lane.b32.xlu0 %v1085, 64
    %v1089 = vpop.permute.xlu0 %1088
    %v1091 = vmul.f32 %v1084, %v1089
    %1093 = vrot.lane.b32.xlu0 %v1091, 32
    %v1094 = vpop.permute.xlu0 %1093
    %v1096 = vadd.f32 %v1086, %v1094
    %v1097 = vtanh.pop %v1096
    %1099 = vrot.lane.b32.xlu0 %v1097, 64
    %v1100 = vpop.permute.xlu0 %1099
    %v1102 = vmul.f32 %v1084, %v1100
    %1104 = vrot.lane.b32.xlu0 %v837, 32
    %v1105 = vpop.permute.xlu0 %1104
    %v1106 = vsel %vm204, %v1105, 0
    %1108 = vmatprep.subr.mxu0 0.0
    %1109 = vmatpush1.msra.mxu0 %v58
    %1110 = vmatprep.subr.mxu0 0.0
    %1111 = vmatpush1.msra.mxu0 %v59
    %1112 = vmatprep.subr.mxu0 0.0
    %1113 = vmatpush1.msra.mxu0 %v60
    %1114 = vmatprep.subr.mxu0 0.0
    %1115 = vmatpush1.msra.mxu0 %v61
    %1116 = vmatprep.subr.mxu0 0.0
    %1117 = vmatpush1.msra.mxu0 0.0
    %1118 = vmatprep.subr.mxu0 0.0
    %1119 = vmatpush1.msra.mxu0 0.0
    %1120 = vmatprep.subr.mxu0 0.0
    %1121 = vmatpush1.msra.mxu0 0.0
    %1122 = vmatprep.subr.mxu0 0.0
    %1123 = vmatpush1.msra.mxu0 0.0
    %1124 = vmatprep.subr.mxu0 0.0
    %1125 = vmatpush1.msra.mxu0 0.0
    %1126 = vmatprep.subr.mxu0 0.0
    %1127 = vmatpush1.msra.mxu0 0.0
    %1128 = vmatprep.subr.mxu0 0.0
    %1129 = vmatpush1.msra.mxu0 0.0
    %1130 = vmatprep.subr.mxu0 0.0
    %1131 = vmatpush1.msra.mxu0 0.0
    %1132 = vmatprep.subr.mxu0 0.0
    %1133 = vmatpush1.msra.mxu0 0.0
    %1134 = vmatprep.subr.mxu0 0.0
    %1135 = vmatpush1.msra.mxu0 0.0
    %1136 = vmatprep.subr.mxu0 0.0
    %1137 = vmatpush1.msra.mxu0 0.0
    %1138 = vmatprep.subr.mxu0 0.0
    %1139 = vmatpush1.msra.mxu0 0.0
    %1140 = vmatprep.subr.mxu0 0.0
    %1141 = vmatpush1.msra.mxu0 0.0
    %1142 = vmatprep.subr.mxu0 0.0
    %1143 = vmatpush1.msra.mxu0 0.0
    %1144 = vmatprep.subr.mxu0 0.0
    %1145 = vmatpush1.msra.mxu0 0.0
    %1146 = vmatprep.subr.mxu0 0.0
    %1147 = vmatpush1.msra.mxu0 0.0
    %1148 = vmatprep.subr.mxu0 0.0
    %1149 = vmatpush1.msra.mxu0 0.0
    %1150 = vmatprep.subr.mxu0 0.0
    %1151 = vmatpush1.msra.mxu0 0.0
    %1152 = vmatprep.subr.mxu0 0.0
    %1153 = vmatpush1.msra.mxu0 0.0
    %1154 = vmatprep.subr.mxu0 0.0
    %1155 = vmatpush1.msra.mxu0 0.0
    %1156 = vmatprep.subr.mxu0 0.0
    %1157 = vmatpush1.msra.mxu0 0.0
    %1158 = vmatprep.subr.mxu0 0.0
    %1159 = vmatpush1.msra.mxu0 0.0
    %1160 = vmatprep.subr.mxu0 0.0
    %1161 = vmatpush1.msra.mxu0 0.0
    %1162 = vmatprep.subr.mxu0 0.0
    %1163 = vmatpush1.msra.mxu0 0.0
    %1164 = vmatprep.subr.mxu0 0.0
    %1165 = vmatpush1.msra.mxu0 0.0
    %1166 = vmatprep.subr.mxu0 0.0
    %1167 = vmatpush1.msra.mxu0 0.0
    %1168 = vmatprep.subr.mxu0 0.0
    %1169 = vmatpush1.msra.mxu0 0.0
    %1170 = vmatprep.subr.mxu0 0.0
    %1171 = vmatpush1.msra.mxu0 0.0
    %1172 = vmatprep.mubr.f32.mxu0 0.0
    %1173 = vmatmul.mubr.f32.gmra.mrb[0].mxu0 %v1106
    %v1174 = vpop.f32.mrb[0].mxu0
    %v1175 = vadd.f32 0.0, %v1174
    %v1176 = vpop.f32.mrb[0].mxu0
    %1177 = vdwg.mxu0
    %1178 = vmatprep.subr.mxu0 0.0
    %1179 = vmatpush1.msra.mxu0 %v54
    %1180 = vmatprep.subr.mxu0 0.0
    %1181 = vmatpush1.msra.mxu0 %v55
    %1182 = vmatprep.subr.mxu0 0.0
    %1183 = vmatpush1.msra.mxu0 %v56
    %1184 = vmatprep.subr.mxu0 0.0
    %1185 = vmatpush1.msra.mxu0 %v57
    %1186 = vmatprep.subr.mxu0 0.0
    %1187 = vmatpush1.msra.mxu0 0.0
    %1188 = vmatprep.subr.mxu0 0.0
    %1189 = vmatpush1.msra.mxu0 0.0
    %1190 = vmatprep.subr.mxu0 0.0
    %1191 = vmatpush1.msra.mxu0 0.0
    %1192 = vmatprep.subr.mxu0 0.0
    %1193 = vmatpush1.msra.mxu0 0.0
    %1194 = vmatprep.subr.mxu0 0.0
    %1195 = vmatpush1.msra.mxu0 0.0
    %1196 = vmatprep.subr.mxu0 0.0
    %1197 = vmatpush1.msra.mxu0 0.0
    %1198 = vmatprep.subr.mxu0 0.0
    %1199 = vmatpush1.msra.mxu0 0.0
    %1200 = vmatprep.subr.mxu0 0.0
    %1201 = vmatpush1.msra.mxu0 0.0
    %1202 = vmatprep.subr.mxu0 0.0
    %1203 = vmatpush1.msra.mxu0 0.0
    %1204 = vmatprep.subr.mxu0 0.0
    %1205 = vmatpush1.msra.mxu0 0.0
    %1206 = vmatprep.subr.mxu0 0.0
    %1207 = vmatpush1.msra.mxu0 0.0
    %1208 = vmatprep.subr.mxu0 0.0
    %1209 = vmatpush1.msra.mxu0 0.0
    %1210 = vmatprep.subr.mxu0 0.0
    %1211 = vmatpush1.msra.mxu0 0.0
    %1212 = vmatprep.subr.mxu0 0.0
    %1213 = vmatpush1.msra.mxu0 0.0
    %1214 = vmatprep.subr.mxu0 0.0
    %1215 = vmatpush1.msra.mxu0 0.0
    %1216 = vmatprep.subr.mxu0 0.0
    %1217 = vmatpush1.msra.mxu0 0.0
    %1218 = vmatprep.subr.mxu0 0.0
    %1219 = vmatpush1.msra.mxu0 0.0
    %1220 = vmatprep.subr.mxu0 0.0
    %1221 = vmatpush1.msra.mxu0 0.0
    %1222 = vmatprep.subr.mxu0 0.0
    %1223 = vmatpush1.msra.mxu0 0.0
    %1224 = vmatprep.subr.mxu0 0.0
    %1225 = vmatpush1.msra.mxu0 0.0
    %1226 = vmatprep.subr.mxu0 0.0
    %1227 = vmatpush1.msra.mxu0 0.0
    %1228 = vmatprep.subr.mxu0 0.0
    %1229 = vmatpush1.msra.mxu0 0.0
    %1230 = vmatprep.subr.mxu0 0.0
    %1231 = vmatpush1.msra.mxu0 0.0
    %1232 = vmatprep.subr.mxu0 0.0
    %1233 = vmatpush1.msra.mxu0 0.0
    %1234 = vmatprep.subr.mxu0 0.0
    %1235 = vmatpush1.msra.mxu0 0.0
    %1236 = vmatprep.subr.mxu0 0.0
    %1237 = vmatpush1.msra.mxu0 0.0
    %1238 = vmatprep.subr.mxu0 0.0
    %1239 = vmatpush1.msra.mxu0 0.0
    %1240 = vmatprep.subr.mxu0 0.0
    %1241 = vmatpush1.msra.mxu0 0.0
    %1242 = vmatprep.mubr.f32.mxu0 0.0
    %1243 = vmatmul.mubr.f32.gmra.mrb[0].mxu0 %v1006
    %v1244 = vpop.f32.mrb[0].mxu0
    %v1245 = vadd.f32 %v1175, %v1244
    %v1246 = vpop.f32.mrb[0].mxu0
    %1247 = vdwg.mxu0
    %v1248 = vadd.f32 %v1245, %v199
    %v1249 = vxor.u32 %v1248, 2147483648
    %v1250 = vmul.f32 %v1249, 1.442695
    %v1251 = vpow.pop %v1250
    %v1252 = vadd.f32 %v1251, 1.0
    %v1253 = vrcp.pop %v1252
    %v1254 = vmul.f32 1.0, %v1253
    %v1255 = vtanh.pop %v1248
    %v1256 = vmul.f32 %v1254, %v831
    %1258 = vrot.lane.b32.xlu0 %v1255, 64
    %v1259 = vpop.permute.xlu0 %1258
    %v1261 = vmul.f32 %v1254, %v1259
    %1263 = vrot.lane.b32.xlu0 %v1261, 32
    %v1264 = vpop.permute.xlu0 %1263
    %v1266 = vadd.f32 %v1256, %v1264
    %v1267 = vtanh.pop %v1266
    %1269 = vrot.lane.b32.xlu0 %v1267, 64
    %v1270 = vpop.permute.xlu0 %1269
    %v1272 = vmul.f32 %v1254, %v1270
    %1274 = vrot.lane.b32.xlu0 %v1002, 32
    %v1275 = vpop.permute.xlu0 %1274
    %v1276 = vsel %vm204, %v1275, 0
    %1278 = vmatprep.subr.mxu0 0.0
    %1279 = vmatpush1.msra.mxu0 %v67
    %1280 = vmatprep.subr.mxu0 0.0
    %1281 = vmatpush1.msra.mxu0 %v68
    %1282 = vmatprep.subr.mxu0 0.0
    %1283 = vmatpush1.msra.mxu0 %v69
    %1284 = vmatprep.subr.mxu0 0.0
    %1285 = vmatpush1.msra.mxu0 %v70
    %1286 = vmatprep.subr.mxu0 0.0
    %1287 = vmatpush1.msra.mxu0 0.0
    %1288 = vmatprep.subr.mxu0 0.0
    %1289 = vmatpush1.msra.mxu0 0.0
    %1290 = vmatprep.subr.mxu0 0.0
    %1291 = vmatpush1.msra.mxu0 0.0
    %1292 = vmatprep.subr.mxu0 0.0
    %1293 = vmatpush1.msra.mxu0 0.0
    %1294 = vmatprep.subr.mxu0 0.0
    %1295 = vmatpush1.msra.mxu0 0.0
    %1296 = vmatprep.subr.mxu0 0.0
    %1297 = vmatpush1.msra.mxu0 0.0
    %1298 = vmatprep.subr.mxu0 0.0
    %1299 = vmatpush1.msra.mxu0 0.0
    %1300 = vmatprep.subr.mxu0 0.0
    %1301 = vmatpush1.msra.mxu0 0.0
    %1302 = vmatprep.subr.mxu0 0.0
    %1303 = vmatpush1.msra.mxu0 0.0
    %1304 = vmatprep.subr.mxu0 0.0
    %1305 = vmatpush1.msra.mxu0 0.0
    %1306 = vmatprep.subr.mxu0 0.0
    %1307 = vmatpush1.msra.mxu0 0.0
    %1308 = vmatprep.subr.mxu0 0.0
    %1309 = vmatpush1.msra.mxu0 0.0
    %1310 = vmatprep.subr.mxu0 0.0
    %1311 = vmatpush1.msra.mxu0 0.0
    %1312 = vmatprep.subr.mxu0 0.0
    %1313 = vmatpush1.msra.mxu0 0.0
    %1314 = vmatprep.subr.mxu0 0.0
    %1315 = vmatpush1.msra.mxu0 0.0
    %1316 = vmatprep.subr.mxu0 0.0
    %1317 = vmatpush1.msra.mxu0 0.0
    %1318 = vmatprep.subr.mxu0 0.0
    %1319 = vmatpush1.msra.mxu0 0.0
    %1320 = vmatprep.subr.mxu0 0.0
    %1321 = vmatpush1.msra.mxu0 0.0
    %1322 = vmatprep.subr.mxu0 0.0
    %1323 = vmatpush1.msra.mxu0 0.0
    %1324 = vmatprep.subr.mxu0 0.0
    %1325 = vmatpush1.msra.mxu0 0.0
    %1326 = vmatprep.subr.mxu0 0.0
    %1327 = vmatpush1.msra.mxu0 0.0
    %1328 = vmatprep.subr.mxu0 0.0
    %1329 = vmatpush1.msra.mxu0 0.0
    %1330 = vmatprep.subr.mxu0 0.0
    %1331 = vmatpush1.msra.mxu0 0.0
    %1332 = vmatprep.subr.mxu0 0.0
    %1333 = vmatpush1.msra.mxu0 0.0
    %1334 = vmatprep.subr.mxu0 0.0
    %1335 = vmatpush1.msra.mxu0 0.0
    %1336 = vmatprep.subr.mxu0 0.0
    %1337 = vmatpush1.msra.mxu0 0.0
    %1338 = vmatprep.subr.mxu0 0.0
    %1339 = vmatpush1.msra.mxu0 0.0
    %1340 = vmatprep.subr.mxu0 0.0
    %1341 = vmatpush1.msra.mxu0 0.0
    %1342 = vmatprep.mubr.f32.mxu0 0.0
    %1343 = vmatmul.mubr.f32.gmra.mrb[0].mxu0 %v1276
    %v1344 = vpop.f32.mrb[0].mxu0
    %v1345 = vadd.f32 0.0, %v1344
    %v1346 = vpop.f32.mrb[0].mxu0
    %1347 = vdwg.mxu0
    %1348 = vmatprep.subr.mxu0 0.0
    %1349 = vmatpush1.msra.mxu0 %v63
    %1350 = vmatprep.subr.mxu0 0.0
    %1351 = vmatpush1.msra.mxu0 %v64
    %1352 = vmatprep.subr.mxu0 0.0
    %1353 = vmatpush1.msra.mxu0 %v65
    %1354 = vmatprep.subr.mxu0 0.0
    %1355 = vmatpush1.msra.mxu0 %v66
    %1356 = vmatprep.subr.mxu0 0.0
    %1357 = vmatpush1.msra.mxu0 0.0
    %1358 = vmatprep.subr.mxu0 0.0
    %1359 = vmatpush1.msra.mxu0 0.0
    %1360 = vmatprep.subr.mxu0 0.0
    %1361 = vmatpush1.msra.mxu0 0.0
    %1362 = vmatprep.subr.mxu0 0.0
    %1363 = vmatpush1.msra.mxu0 0.0
    %1364 = vmatprep.subr.mxu0 0.0
    %1365 = vmatpush1.msra.mxu0 0.0
    %1366 = vmatprep.subr.mxu0 0.0
    %1367 = vmatpush1.msra.mxu0 0.0
    %1368 = vmatprep.subr.mxu0 0.0
    %1369 = vmatpush1.msra.mxu0 0.0
    %1370 = vmatprep.subr.mxu0 0.0
    %1371 = vmatpush1.msra.mxu0 0.0
    %1372 = vmatprep.subr.mxu0 0.0
    %1373 = vmatpush1.msra.mxu0 0.0
    %1374 = vmatprep.subr.mxu0 0.0
    %1375 = vmatpush1.msra.mxu0 0.0
    %1376 = vmatprep.subr.mxu0 0.0
    %1377 = vmatpush1.msra.mxu0 0.0
    %1378 = vmatprep.subr.mxu0 0.0
    %1379 = vmatpush1.msra.mxu0 0.0
    %1380 = vmatprep.subr.mxu0 0.0
    %1381 = vmatpush1.msra.mxu0 0.0
    %1382 = vmatprep.subr.mxu0 0.0
    %1383 = vmatpush1.msra.mxu0 0.0
    %1384 = vmatprep.subr.mxu0 0.0
    %1385 = vmatpush1.msra.mxu0 0.0
    %1386 = vmatprep.subr.mxu0 0.0
    %1387 = vmatpush1.msra.mxu0 0.0
    %1388 = vmatprep.subr.mxu0 0.0
    %1389 = vmatpush1.msra.mxu0 0.0
    %1390 = vmatprep.subr.mxu0 0.0
    %1391 = vmatpush1.msra.mxu0 0.0
    %1392 = vmatprep.subr.mxu0 0.0
    %1393 = vmatpush1.msra.mxu0 0.0
    %1394 = vmatprep.subr.mxu0 0.0
    %1395 = vmatpush1.msra.mxu0 0.0
    %1396 = vmatprep.subr.mxu0 0.0
    %1397 = vmatpush1.msra.mxu0 0.0
    %1398 = vmatprep.subr.mxu0 0.0
    %1399 = vmatpush1.msra.mxu0 0.0
    %1400 = vmatprep.subr.mxu0 0.0
    %1401 = vmatpush1.msra.mxu0 0.0
    %1402 = vmatprep.subr.mxu0 0.0
    %1403 = vmatpush1.msra.mxu0 0.0
    %1404 = vmatprep.subr.mxu0 0.0
    %1405 = vmatpush1.msra.mxu0 0.0
    %1406 = vmatprep.subr.mxu0 0.0
    %1407 = vmatpush1.msra.mxu0 0.0
    %1408 = vmatprep.subr.mxu0 0.0
    %1409 = vmatpush1.msra.mxu0 0.0
    %1410 = vmatprep.subr.mxu0 0.0
    %1411 = vmatpush1.msra.mxu0 0.0
    %1412 = vmatprep.mubr.f32.mxu0 0.0
    %1413 = vmatmul.mubr.f32.gmra.mrb[0].mxu0 %v1106
    %v1414 = vpop.f32.mrb[0].mxu0
    %v1415 = vadd.f32 %v1345, %v1414
    %v1416 = vpop.f32.mrb[0].mxu0
    %1417 = vdwg.mxu0
    %v1418 = vadd.f32 %v1415, %v203
    %v1419 = vxor.u32 %v1418, 2147483648
    %v1420 = vmul.f32 %v1419, 1.442695
    %v1421 = vpow.pop %v1420
    %v1422 = vadd.f32 %v1421, 1.0
    %v1423 = vrcp.pop %v1422
    %v1424 = vmul.f32 1.0, %v1423
    %v1425 = vtanh.pop %v1418
    %v1426 = vmul.f32 %v1424, %v996
    %1428 = vrot.lane.b32.xlu0 %v1425, 64
    %v1429 = vpop.permute.xlu0 %1428
    %v1431 = vmul.f32 %v1424, %v1429
    %1433 = vrot.lane.b32.xlu0 %v1431, 32
    %v1434 = vpop.permute.xlu0 %1433
    %v1436 = vadd.f32 %v1426, %v1434
    %v1437 = vtanh.pop %v1436
    %1439 = vrot.lane.b32.xlu0 %v1437, 64
    %v1440 = vpop.permute.xlu0 %1439
    %v1442 = vmul.f32 %v1424, %v1440
    %1444 = vrot.lane.b32.xlu0 %v1102, 32
    %v1445 = vpop.permute.xlu0 %1444
    %v1446 = vsel %vm204, %v1445, 0
    %1448 = vmatprep.subr.mxu0 0.0
    %1449 = vmatpush1.msra.mxu0 %v49
    %1450 = vmatprep.subr.mxu0 0.0
    %1451 = vmatpush1.msra.mxu0 %v50
    %1452 = vmatprep.subr.mxu0 0.0
    %1453 = vmatpush1.msra.mxu0 %v51
    %1454 = vmatprep.subr.mxu0 0.0
    %1455 = vmatpush1.msra.mxu0 %v52
    %1456 = vmatprep.subr.mxu0 0.0
    %1457 = vmatpush1.msra.mxu0 0.0
    %1458 = vmatprep.subr.mxu0 0.0
    %1459 = vmatpush1.msra.mxu0 0.0
    %1460 = vmatprep.subr.mxu0 0.0
    %1461 = vmatpush1.msra.mxu0 0.0
    %1462 = vmatprep.subr.mxu0 0.0
    %1463 = vmatpush1.msra.mxu0 0.0
    %1464 = vmatprep.subr.mxu0 0.0
    %1465 = vmatpush1.msra.mxu0 0.0
    %1466 = vmatprep.subr.mxu0 0.0
    %1467 = vmatpush1.msra.mxu0 0.0
    %1468 = vmatprep.subr.mxu0 0.0
    %1469 = vmatpush1.msra.mxu0 0.0
    %1470 = vmatprep.subr.mxu0 0.0
    %1471 = vmatpush1.msra.mxu0 0.0
    %1472 = vmatprep.subr.mxu0 0.0
    %1473 = vmatpush1.msra.mxu0 0.0
    %1474 = vmatprep.subr.mxu0 0.0
    %1475 = vmatpush1.msra.mxu0 0.0
    %1476 = vmatprep.subr.mxu0 0.0
    %1477 = vmatpush1.msra.mxu0 0.0
    %1478 = vmatprep.subr.mxu0 0.0
    %1479 = vmatpush1.msra.mxu0 0.0
    %1480 = vmatprep.subr.mxu0 0.0
    %1481 = vmatpush1.msra.mxu0 0.0
    %1482 = vmatprep.subr.mxu0 0.0
    %1483 = vmatpush1.msra.mxu0 0.0
    %1484 = vmatprep.subr.mxu0 0.0
    %1485 = vmatpush1.msra.mxu0 0.0
    %1486 = vmatprep.subr.mxu0 0.0
    %1487 = vmatpush1.msra.mxu0 0.0
    %1488 = vmatprep.subr.mxu0 0.0
    %1489 = vmatpush1.msra.mxu0 0.0
    %1490 = vmatprep.subr.mxu0 0.0
    %1491 = vmatpush1.msra.mxu0 0.0
    %1492 = vmatprep.subr.mxu0 0.0
    %1493 = vmatpush1.msra.mxu0 0.0
    %1494 = vmatprep.subr.mxu0 0.0
    %1495 = vmatpush1.msra.mxu0 0.0
    %1496 = vmatprep.subr.mxu0 0.0
    %1497 = vmatpush1.msra.mxu0 0.0
    %1498 = vmatprep.subr.mxu0 0.0
    %1499 = vmatpush1.msra.mxu0 0.0
    %1500 = vmatprep.subr.mxu0 0.0
    %1501 = vmatpush1.msra.mxu0 0.0
    %1502 = vmatprep.subr.mxu0 0.0
    %1503 = vmatpush1.msra.mxu0 0.0
    %1504 = vmatprep.subr.mxu0 0.0
    %1505 = vmatpush1.msra.mxu0 0.0
    %1506 = vmatprep.subr.mxu0 0.0
    %1507 = vmatpush1.msra.mxu0 0.0
    %1508 = vmatprep.subr.mxu0 0.0
    %1509 = vmatpush1.msra.mxu0 0.0
    %1510 = vmatprep.subr.mxu0 0.0
    %1511 = vmatpush1.msra.mxu0 0.0
    %1512 = vmatprep.mubr.f32.mxu0 0.0
    %1513 = vmatmul.mubr.f32.gmra.mrb[0].mxu0 %v1446
    %v1514 = vpop.f32.mrb[0].mxu0
    %v1515 = vadd.f32 0.0, %v1514
    %v1516 = vpop.f32.mrb[0].mxu0
    %1517 = vdwg.mxu0
    %v1518 = vadd.f32 %v188, %v1515
    %v1519 = vxor.u32 %v1518, 2147483648
    %v1520 = vmul.f32 %v1519, 1.442695
    %v1521 = vpow.pop %v1520
    %v1522 = vadd.f32 %v1521, 1.0
    %v1523 = vrcp.pop %v1522
    %v1524 = vmul.f32 1.0, %v1523
    %v1525 = vtanh.pop %v1518
    %v1526 = vmul.f32 %v1524, %v1096
    %1528 = vrot.lane.b32.xlu0 %v1525, 64
    %v1529 = vpop.permute.xlu0 %1528
    %v1531 = vmul.f32 %v1524, %v1529
    %1533 = vrot.lane.b32.xlu0 %v1531, 32
    %v1534 = vpop.permute.xlu0 %1533
    %v1536 = vadd.f32 %v1526, %v1534
    %v1537 = vtanh.pop %v1536
    %1539 = vrot.lane.b32.xlu0 %v1537, 64
    %v1540 = vpop.permute.xlu0 %1539
    %v1542 = vmul.f32 %v1524, %v1540
    %1544 = vrot.lane.b32.xlu0 %v1272, 32
    %v1545 = vpop.permute.xlu0 %1544
    %v1546 = vsel %vm204, %v1545, 0
    %1548 = vmatprep.subr.mxu0 0.0
    %1549 = vmatpush1.msra.mxu0 %v58
    %1550 = vmatprep.subr.mxu0 0.0
    %1551 = vmatpush1.msra.mxu0 %v59
    %1552 = vmatprep.subr.mxu0 0.0
    %1553 = vmatpush1.msra.mxu0 %v60
    %1554 = vmatprep.subr.mxu0 0.0
    %1555 = vmatpush1.msra.mxu0 %v61
    %1556 = vmatprep.subr.mxu0 0.0
    %1557 = vmatpush1.msra.mxu0 0.0
    %1558 = vmatprep.subr.mxu0 0.0
    %1559 = vmatpush1.msra.mxu0 0.0
    %1560 = vmatprep.subr.mxu0 0.0
    %1561 = vmatpush1.msra.mxu0 0.0
    %1562 = vmatprep.subr.mxu0 0.0
    %1563 = vmatpush1.msra.mxu0 0.0
    %1564 = vmatprep.subr.mxu0 0.0
    %1565 = vmatpush1.msra.mxu0 0.0
    %1566 = vmatprep.subr.mxu0 0.0
    %1567 = vmatpush1.msra.mxu0 0.0
    %1568 = vmatprep.subr.mxu0 0.0
    %1569 = vmatpush1.msra.mxu0 0.0
    %1570 = vmatprep.subr.mxu0 0.0
    %1571 = vmatpush1.msra.mxu0 0.0
    %1572 = vmatprep.subr.mxu0 0.0
    %1573 = vmatpush1.msra.mxu0 0.0
    %1574 = vmatprep.subr.mxu0 0.0
    %1575 = vmatpush1.msra.mxu0 0.0
    %1576 = vmatprep.subr.mxu0 0.0
    %1577 = vmatpush1.msra.mxu0 0.0
    %1578 = vmatprep.subr.mxu0 0.0
    %1579 = vmatpush1.msra.mxu0 0.0
    %1580 = vmatprep.subr.mxu0 0.0
    %1581 = vmatpush1.msra.mxu0 0.0
    %1582 = vmatprep.subr.mxu0 0.0
    %1583 = vmatpush1.msra.mxu0 0.0
    %1584 = vmatprep.subr.mxu0 0.0
    %1585 = vmatpush1.msra.mxu0 0.0
    %1586 = vmatprep.subr.mxu0 0.0
    %1587 = vmatpush1.msra.mxu0 0.0
    %1588 = vmatprep.subr.mxu0 0.0
    %1589 = vmatpush1.msra.mxu0 0.0
    %1590 = vmatprep.subr.mxu0 0.0
    %1591 = vmatpush1.msra.mxu0 0.0
    %1592 = vmatprep.subr.mxu0 0.0
    %1593 = vmatpush1.msra.mxu0 0.0
    %1594 = vmatprep.subr.mxu0 0.0
    %1595 = vmatpush1.msra.mxu0 0.0
    %1596 = vmatprep.subr.mxu0 0.0
    %1597 = vmatpush1.msra.mxu0 0.0
    %1598 = vmatprep.subr.mxu0 0.0
    %1599 = vmatpush1.msra.mxu0 0.0
    %1600 = vmatprep.subr.mxu0 0.0
    %1601 = vmatpush1.msra.mxu0 0.0
    %1602 = vmatprep.subr.mxu0 0.0
    %1603 = vmatpush1.msra.mxu0 0.0
    %1604 = vmatprep.subr.mxu0 0.0
    %1605 = vmatpush1.msra.mxu0 0.0
    %1606 = vmatprep.subr.mxu0 0.0
    %1607 = vmatpush1.msra.mxu0 0.0
    %1608 = vmatprep.subr.mxu0 0.0
    %1609 = vmatpush1.msra.mxu0 0.0
    %1610 = vmatprep.subr.mxu0 0.0
    %1611 = vmatpush1.msra.mxu0 0.0
    %1612 = vmatprep.mubr.f32.mxu0 0.0
    %1613 = vmatmul.mubr.f32.gmra.mrb[0].mxu0 %v1546
    %v1614 = vpop.f32.mrb[0].mxu0
    %v1615 = vadd.f32 0.0, %v1614
    %v1616 = vpop.f32.mrb[0].mxu0
    %1617 = vdwg.mxu0
    %1618 = vmatprep.subr.mxu0 0.0
    %1619 = vmatpush1.msra.mxu0 %v54
    %1620 = vmatprep.subr.mxu0 0.0
    %1621 = vmatpush1.msra.mxu0 %v55
    %1622 = vmatprep.subr.mxu0 0.0
    %1623 = vmatpush1.msra.mxu0 %v56
    %1624 = vmatprep.subr.mxu0 0.0
    %1625 = vmatpush1.msra.mxu0 %v57
    %1626 = vmatprep.subr.mxu0 0.0
    %1627 = vmatpush1.msra.mxu0 0.0
    %1628 = vmatprep.subr.mxu0 0.0
    %1629 = vmatpush1.msra.mxu0 0.0
    %1630 = vmatprep.subr.mxu0 0.0
    %1631 = vmatpush1.msra.mxu0 0.0
    %1632 = vmatprep.subr.mxu0 0.0
    %1633 = vmatpush1.msra.mxu0 0.0
    %1634 = vmatprep.subr.mxu0 0.0
    %1635 = vmatpush1.msra.mxu0 0.0
    %1636 = vmatprep.subr.mxu0 0.0
    %1637 = vmatpush1.msra.mxu0 0.0
    %1638 = vmatprep.subr.mxu0 0.0
    %1639 = vmatpush1.msra.mxu0 0.0
    %1640 = vmatprep.subr.mxu0 0.0
    %1641 = vmatpush1.msra.mxu0 0.0
    %1642 = vmatprep.subr.mxu0 0.0
    %1643 = vmatpush1.msra.mxu0 0.0
    %1644 = vmatprep.subr.mxu0 0.0
    %1645 = vmatpush1.msra.mxu0 0.0
    %1646 = vmatprep.subr.mxu0 0.0
    %1647 = vmatpush1.msra.mxu0 0.0
    %1648 = vmatprep.subr.mxu0 0.0
    %1649 = vmatpush1.msra.mxu0 0.0
    %1650 = vmatprep.subr.mxu0 0.0
    %1651 = vmatpush1.msra.mxu0 0.0
    %1652 = vmatprep.subr.mxu0 0.0
    %1653 = vmatpush1.msra.mxu0 0.0
    %1654 = vmatprep.subr.mxu0 0.0
    %1655 = vmatpush1.msra.mxu0 0.0
    %1656 = vmatprep.subr.mxu0 0.0
    %1657 = vmatpush1.msra.mxu0 0.0
    %1658 = vmatprep.subr.mxu0 0.0
    %1659 = vmatpush1.msra.mxu0 0.0
    %1660 = vmatprep.subr.mxu0 0.0
    %1661 = vmatpush1.msra.mxu0 0.0
    %1662 = vmatprep.subr.mxu0 0.0
    %1663 = vmatpush1.msra.mxu0 0.0
    %1664 = vmatprep.subr.mxu0 0.0
    %1665 = vmatpush1.msra.mxu0 0.0
    %1666 = vmatprep.subr.mxu0 0.0
    %1667 = vmatpush1.msra.mxu0 0.0
    %1668 = vmatprep.subr.mxu0 0.0
    %1669 = vmatpush1.msra.mxu0 0.0
    %1670 = vmatprep.subr.mxu0 0.0
    %1671 = vmatpush1.msra.mxu0 0.0
    %1672 = vmatprep.subr.mxu0 0.0
    %1673 = vmatpush1.msra.mxu0 0.0
    %1674 = vmatprep.subr.mxu0 0.0
    %1675 = vmatpush1.msra.mxu0 0.0
    %1676 = vmatprep.subr.mxu0 0.0
    %1677 = vmatpush1.msra.mxu0 0.0
    %1678 = vmatprep.subr.mxu0 0.0
    %1679 = vmatpush1.msra.mxu0 0.0
    %1680 = vmatprep.subr.mxu0 0.0
    %1681 = vmatpush1.msra.mxu0 0.0
    %1682 = vmatprep.mubr.f32.mxu0 0.0
    %1683 = vmatmul.mubr.f32.gmra.mrb[0].mxu0 %v1446
    %v1684 = vpop.f32.mrb[0].mxu0
    %v1685 = vadd.f32 %v1615, %v1684
    %v1686 = vpop.f32.mrb[0].mxu0
    %1687 = vdwg.mxu0
    %v1688 = vadd.f32 %v1685, %v199
    %v1689 = vxor.u32 %v1688, 2147483648
    %v1690 = vmul.f32 %v1689, 1.442695
    %v1691 = vpow.pop %v1690
    %v1692 = vadd.f32 %v1691, 1.0
    %v1693 = vrcp.pop %v1692
    %v1694 = vmul.f32 1.0, %v1693
    %v1695 = vtanh.pop %v1688
    %v1696 = vmul.f32 %v1694, %v1266
    %1698 = vrot.lane.b32.xlu0 %v1695, 64
    %v1699 = vpop.permute.xlu0 %1698
    %v1701 = vmul.f32 %v1694, %v1699
    %1703 = vrot.lane.b32.xlu0 %v1701, 32
    %v1704 = vpop.permute.xlu0 %1703
    %v1706 = vadd.f32 %v1696, %v1704
    %v1707 = vtanh.pop %v1706
    %1709 = vrot.lane.b32.xlu0 %v1707, 64
    %v1710 = vpop.permute.xlu0 %1709
    %v1712 = vmul.f32 %v1694, %v1710
    %1714 = vrot.lane.b32.xlu0 %v1442, 32
    %v1715 = vpop.permute.xlu0 %1714
    %v1716 = vsel %vm204, %v1715, 0
    %1718 = vmatprep.subr.mxu0 0.0
    %1719 = vmatpush1.msra.mxu0 %v67
    %1720 = vmatprep.subr.mxu0 0.0
    %1721 = vmatpush1.msra.mxu0 %v68
    %1722 = vmatprep.subr.mxu0 0.0
    %1723 = vmatpush1.msra.mxu0 %v69
    %1724 = vmatprep.subr.mxu0 0.0
    %1725 = vmatpush1.msra.mxu0 %v70
    %1726 = vmatprep.subr.mxu0 0.0
    %1727 = vmatpush1.msra.mxu0 0.0
    %1728 = vmatprep.subr.mxu0 0.0
    %1729 = vmatpush1.msra.mxu0 0.0
    %1730 = vmatprep.subr.mxu0 0.0
    %1731 = vmatpush1.msra.mxu0 0.0
    %1732 = vmatprep.subr.mxu0 0.0
    %1733 = vmatpush1.msra.mxu0 0.0
    %1734 = vmatprep.subr.mxu0 0.0
    %1735 = vmatpush1.msra.mxu0 0.0
    %1736 = vmatprep.subr.mxu0 0.0
    %1737 = vmatpush1.msra.mxu0 0.0
    %1738 = vmatprep.subr.mxu0 0.0
    %1739 = vmatpush1.msra.mxu0 0.0
    %1740 = vmatprep.subr.mxu0 0.0
    %1741 = vmatpush1.msra.mxu0 0.0
    %1742 = vmatprep.subr.mxu0 0.0
    %1743 = vmatpush1.msra.mxu0 0.0
    %1744 = vmatprep.subr.mxu0 0.0
    %1745 = vmatpush1.msra.mxu0 0.0
    %1746 = vmatprep.subr.mxu0 0.0
    %1747 = vmatpush1.msra.mxu0 0.0
    %1748 = vmatprep.subr.mxu0 0.0
    %1749 = vmatpush1.msra.mxu0 0.0
    %1750 = vmatprep.subr.mxu0 0.0
    %1751 = vmatpush1.msra.mxu0 0.0
    %1752 = vmatprep.subr.mxu0 0.0
    %1753 = vmatpush1.msra.mxu0 0.0
    %1754 = vmatprep.subr.mxu0 0.0
    %1755 = vmatpush1.msra.mxu0 0.0
    %1756 = vmatprep.subr.mxu0 0.0
    %1757 = vmatpush1.msra.mxu0 0.0
    %1758 = vmatprep.subr.mxu0 0.0
    %1759 = vmatpush1.msra.mxu0 0.0
    %1760 = vmatprep.subr.mxu0 0.0
    %1761 = vmatpush1.msra.mxu0 0.0
    %1762 = vmatprep.subr.mxu0 0.0
    %1763 = vmatpush1.msra.mxu0 0.0
    %1764 = vmatprep.subr.mxu0 0.0
    %1765 = vmatpush1.msra.mxu0 0.0
    %1766 = vmatprep.subr.mxu0 0.0
    %1767 = vmatpush1.msra.mxu0 0.0
    %1768 = vmatprep.subr.mxu0 0.0
    %1769 = vmatpush1.msra.mxu0 0.0
    %1770 = vmatprep.subr.mxu0 0.0
    %1771 = vmatpush1.msra.mxu0 0.0
    %1772 = vmatprep.subr.mxu0 0.0
    %1773 = vmatpush1.msra.mxu0 0.0
    %1774 = vmatprep.subr.mxu0 0.0
    %1775 = vmatpush1.msra.mxu0 0.0
    %1776 = vmatprep.subr.mxu0 0.0
    %1777 = vmatpush1.msra.mxu0 0.0
    %1778 = vmatprep.subr.mxu0 0.0
    %1779 = vmatpush1.msra.mxu0 0.0
    %1780 = vmatprep.subr.mxu0 0.0
    %1781 = vmatpush1.msra.mxu0 0.0
    %1782 = vmatprep.mubr.f32.mxu0 0.0
    %1783 = vmatmul.mubr.f32.gmra.mrb[0].mxu0 %v1716
    %v1784 = vpop.f32.mrb[0].mxu0
    %v1785 = vadd.f32 0.0, %v1784
    %v1786 = vpop.f32.mrb[0].mxu0
    %1787 = vdwg.mxu0
    %1788 = vmatprep.subr.mxu0 0.0
    %1789 = vmatpush1.msra.mxu0 %v63
    %1790 = vmatprep.subr.mxu0 0.0
    %1791 = vmatpush1.msra.mxu0 %v64
    %1792 = vmatprep.subr.mxu0 0.0
    %1793 = vmatpush1.msra.mxu0 %v65
    %1794 = vmatprep.subr.mxu0 0.0
    %1795 = vmatpush1.msra.mxu0 %v66
    %1796 = vmatprep.subr.mxu0 0.0
    %1797 = vmatpush1.msra.mxu0 0.0
    %1798 = vmatprep.subr.mxu0 0.0
    %1799 = vmatpush1.msra.mxu0 0.0
    %1800 = vmatprep.subr.mxu0 0.0
    %1801 = vmatpush1.msra.mxu0 0.0
    %1802 = vmatprep.subr.mxu0 0.0
    %1803 = vmatpush1.msra.mxu0 0.0
    %1804 = vmatprep.subr.mxu0 0.0
    %1805 = vmatpush1.msra.mxu0 0.0
    %1806 = vmatprep.subr.mxu0 0.0
    %1807 = vmatpush1.msra.mxu0 0.0
    %1808 = vmatprep.subr.mxu0 0.0
    %1809 = vmatpush1.msra.mxu0 0.0
    %1810 = vmatprep.subr.mxu0 0.0
    %1811 = vmatpush1.msra.mxu0 0.0
    %1812 = vmatprep.subr.mxu0 0.0
    %1813 = vmatpush1.msra.mxu0 0.0
    %1814 = vmatprep.subr.mxu0 0.0
    %1815 = vmatpush1.msra.mxu0 0.0
    %1816 = vmatprep.subr.mxu0 0.0
    %1817 = vmatpush1.msra.mxu0 0.0
    %1818 = vmatprep.subr.mxu0 0.0
    %1819 = vmatpush1.msra.mxu0 0.0
    %1820 = vmatprep.subr.mxu0 0.0
    %1821 = vmatpush1.msra.mxu0 0.0
    %1822 = vmatprep.subr.mxu0 0.0
    %1823 = vmatpush1.msra.mxu0 0.0
    %1824 = vmatprep.subr.mxu0 0.0
    %1825 = vmatpush1.msra.mxu0 0.0
    %1826 = vmatprep.subr.mxu0 0.0
    %1827 = vmatpush1.msra.mxu0 0.0
    %1828 = vmatprep.subr.mxu0 0.0
    %1829 = vmatpush1.msra.mxu0 0.0
    %1830 = vmatprep.subr.mxu0 0.0
    %1831 = vmatpush1.msra.mxu0 0.0
    %1832 = vmatprep.subr.mxu0 0.0
    %1833 = vmatpush1.msra.mxu0 0.0
    %1834 = vmatprep.subr.mxu0 0.0
    %1835 = vmatpush1.msra.mxu0 0.0
    %1836 = vmatprep.subr.mxu0 0.0
    %1837 = vmatpush1.msra.mxu0 0.0
    %1838 = vmatprep.subr.mxu0 0.0
    %1839 = vmatpush1.msra.mxu0 0.0
    %1840 = vmatprep.subr.mxu0 0.0
    %1841 = vmatpush1.msra.mxu0 0.0
    %1842 = vmatprep.subr.mxu0 0.0
    %1843 = vmatpush1.msra.mxu0 0.0
    %1844 = vmatprep.subr.mxu0 0.0
    %1845 = vmatpush1.msra.mxu0 0.0
    %1846 = vmatprep.subr.mxu0 0.0
    %1847 = vmatpush1.msra.mxu0 0.0
    %1848 = vmatprep.subr.mxu0 0.0
    %1849 = vmatpush1.msra.mxu0 0.0
    %1850 = vmatprep.subr.mxu0 0.0
    %1851 = vmatpush1.msra.mxu0 0.0
    %1852 = vmatprep.mubr.f32.mxu0 0.0
    %1853 = vmatmul.mubr.f32.gmra.mrb[0].mxu0 %v1546
    %v1854 = vpop.f32.mrb[0].mxu0
    %v1855 = vadd.f32 %v1785, %v1854
    %v1856 = vpop.f32.mrb[0].mxu0
    %1857 = vdwg.mxu0
    %v1858 = vadd.f32 %v1855, %v203
    %v1859 = vxor.u32 %v1858, 2147483648
    %v1860 = vmul.f32 %v1859, 1.442695
    %v1861 = vpow.pop %v1860
    %v1862 = vadd.f32 %v1861, 1.0
    %v1863 = vrcp.pop %v1862
    %v1864 = vmul.f32 1.0, %v1863
    %v1865 = vtanh.pop %v1858
    %v1866 = vmul.f32 %v1864, %v1436
    %1868 = vrot.lane.b32.xlu0 %v1865, 64
    %v1869 = vpop.permute.xlu0 %1868
    %v1871 = vmul.f32 %v1864, %v1869
    %1873 = vrot.lane.b32.xlu0 %v1871, 32
    %v1874 = vpop.permute.xlu0 %1873
    %v1876 = vadd.f32 %v1866, %v1874
    %v1877 = vtanh.pop %v1876
    %1879 = vrot.lane.b32.xlu0 %v1877, 64
    %v1880 = vpop.permute.xlu0 %1879
    %v1882 = vmul.f32 %v1864, %v1880
    %1884 = vrot.lane.b32.xlu0 %v1542, 32
    %v1885 = vpop.permute.xlu0 %1884
    %v1886 = vsel %vm204, %v1885, 0
    %1888 = vmatprep.subr.mxu0 0.0
    %1889 = vmatpush1.msra.mxu0 %v49
    %1890 = vmatprep.subr.mxu0 0.0
    %1891 = vmatpush1.msra.mxu0 %v50
    %1892 = vmatprep.subr.mxu0 0.0
    %1893 = vmatpush1.msra.mxu0 %v51
    %1894 = vmatprep.subr.mxu0 0.0
    %1895 = vmatpush1.msra.mxu0 %v52
    %1896 = vmatprep.subr.mxu0 0.0
    %1897 = vmatpush1.msra.mxu0 0.0
    %1898 = vmatprep.subr.mxu0 0.0
    %1899 = vmatpush1.msra.mxu0 0.0
    %1900 = vmatprep.subr.mxu0 0.0
    %1901 = vmatpush1.msra.mxu0 0.0
    %1902 = vmatprep.subr.mxu0 0.0
    %1903 = vmatpush1.msra.mxu0 0.0
    %1904 = vmatprep.subr.mxu0 0.0
    %1905 = vmatpush1.msra.mxu0 0.0
    %1906 = vmatprep.subr.mxu0 0.0
    %1907 = vmatpush1.msra.mxu0 0.0
    %1908 = vmatprep.subr.mxu0 0.0
    %1909 = vmatpush1.msra.mxu0 0.0
    %1910 = vmatprep.subr.mxu0 0.0
    %1911 = vmatpush1.msra.mxu0 0.0
    %1912 = vmatprep.subr.mxu0 0.0
    %1913 = vmatpush1.msra.mxu0 0.0
    %1914 = vmatprep.subr.mxu0 0.0
    %1915 = vmatpush1.msra.mxu0 0.0
    %1916 = vmatprep.subr.mxu0 0.0
    %1917 = vmatpush1.msra.mxu0 0.0
    %1918 = vmatprep.subr.mxu0 0.0
    %1919 = vmatpush1.msra.mxu0 0.0
    %1920 = vmatprep.subr.mxu0 0.0
    %1921 = vmatpush1.msra.mxu0 0.0
    %1922 = vmatprep.subr.mxu0 0.0
    %1923 = vmatpush1.msra.mxu0 0.0
    %1924 = vmatprep.subr.mxu0 0.0
    %1925 = vmatpush1.msra.mxu0 0.0
    %1926 = vmatprep.subr.mxu0 0.0
    %1927 = vmatpush1.msra.mxu0 0.0
    %1928 = vmatprep.subr.mxu0 0.0
    %1929 = vmatpush1.msra.mxu0 0.0
    %1930 = vmatprep.subr.mxu0 0.0
    %1931 = vmatpush1.msra.mxu0 0.0
    %1932 = vmatprep.subr.mxu0 0.0
    %1933 = vmatpush1.msra.mxu0 0.0
    %1934 = vmatprep.subr.mxu0 0.0
    %1935 = vmatpush1.msra.mxu0 0.0
    %1936 = vmatprep.subr.mxu0 0.0
    %1937 = vmatpush1.msra.mxu0 0.0
    %1938 = vmatprep.subr.mxu0 0.0
    %1939 = vmatpush1.msra.mxu0 0.0
    %1940 = vmatprep.subr.mxu0 0.0
    %1941 = vmatpush1.msra.mxu0 0.0
    %1942 = vmatprep.subr.mxu0 0.0
    %1943 = vmatpush1.msra.mxu0 0.0
    %1944 = vmatprep.subr.mxu0 0.0
    %1945 = vmatpush1.msra.mxu0 0.0
    %1946 = vmatprep.subr.mxu0 0.0
    %1947 = vmatpush1.msra.mxu0 0.0
    %1948 = vmatprep.subr.mxu0 0.0
    %1949 = vmatpush1.msra.mxu0 0.0
    %1950 = vmatprep.subr.mxu0 0.0
    %1951 = vmatpush1.msra.mxu0 0.0
    %1952 = vmatprep.mubr.f32.mxu0 0.0
    %1953 = vmatmul.mubr.f32.gmra.mrb[0].mxu0 %v1886
    %v1954 = vpop.f32.mrb[0].mxu0
    %v1955 = vadd.f32 0.0, %v1954
    %v1956 = vpop.f32.mrb[0].mxu0
    %1957 = vdwg.mxu0
    %v1958 = vadd.f32 %v193, %v1955
    %v1959 = vxor.u32 %v1958, 2147483648
    %v1960 = vmul.f32 %v1959, 1.442695
    %v1961 = vpow.pop %v1960
    %v1962 = vadd.f32 %v1961, 1.0
    %v1963 = vrcp.pop %v1962
    %v1964 = vmul.f32 1.0, %v1963
    %v1965 = vtanh.pop %v1958
    %v1966 = vmul.f32 %v1964, %v1536
    %1968 = vrot.lane.b32.xlu0 %v1965, 64
    %v1969 = vpop.permute.xlu0 %1968
    %v1971 = vmul.f32 %v1964, %v1969
    %1973 = vrot.lane.b32.xlu0 %v1971, 32
    %v1974 = vpop.permute.xlu0 %1973
    %v1976 = vadd.f32 %v1966, %v1974
    %v1977 = vtanh.pop %v1976
    %1979 = vrot.lane.b32.xlu0 %v1977, 64
    %v1980 = vpop.permute.xlu0 %1979
    %v1982 = vmul.f32 %v1964, %v1980
    %1984 = vrot.lane.b32.xlu0 %v1712, 32
    %v1985 = vpop.permute.xlu0 %1984
    %v1986 = vsel %vm204, %v1985, 0
    %1988 = vmatprep.subr.mxu0 0.0
    %1989 = vmatpush1.msra.mxu0 %v58
    %1990 = vmatprep.subr.mxu0 0.0
    %1991 = vmatpush1.msra.mxu0 %v59
    %1992 = vmatprep.subr.mxu0 0.0
    %1993 = vmatpush1.msra.mxu0 %v60
    %1994 = vmatprep.subr.mxu0 0.0
    %1995 = vmatpush1.msra.mxu0 %v61
    %1996 = vmatprep.subr.mxu0 0.0
    %1997 = vmatpush1.msra.mxu0 0.0
    %1998 = vmatprep.subr.mxu0 0.0
    %1999 = vmatpush1.msra.mxu0 0.0
    %2000 = vmatprep.subr.mxu0 0.0
    %2001 = vmatpush1.msra.mxu0 0.0
    %2002 = vmatprep.subr.mxu0 0.0
    %2003 = vmatpush1.msra.mxu0 0.0
    %2004 = vmatprep.subr.mxu0 0.0
    %2005 = vmatpush1.msra.mxu0 0.0
    %2006 = vmatprep.subr.mxu0 0.0
    %2007 = vmatpush1.msra.mxu0 0.0
    %2008 = vmatprep.subr.mxu0 0.0
    %2009 = vmatpush1.msra.mxu0 0.0
    %2010 = vmatprep.subr.mxu0 0.0
    %2011 = vmatpush1.msra.mxu0 0.0
    %2012 = vmatprep.subr.mxu0 0.0
    %2013 = vmatpush1.msra.mxu0 0.0
    %2014 = vmatprep.subr.mxu0 0.0
    %2015 = vmatpush1.msra.mxu0 0.0
    %2016 = vmatprep.subr.mxu0 0.0
    %2017 = vmatpush1.msra.mxu0 0.0
    %2018 = vmatprep.subr.mxu0 0.0
    %2019 = vmatpush1.msra.mxu0 0.0
    %2020 = vmatprep.subr.mxu0 0.0
    %2021 = vmatpush1.msra.mxu0 0.0
    %2022 = vmatprep.subr.mxu0 0.0
    %2023 = vmatpush1.msra.mxu0 0.0
    %2024 = vmatprep.subr.mxu0 0.0
    %2025 = vmatpush1.msra.mxu0 0.0
    %2026 = vmatprep.subr.mxu0 0.0
    %2027 = vmatpush1.msra.mxu0 0.0
    %2028 = vmatprep.subr.mxu0 0.0
    %2029 = vmatpush1.msra.mxu0 0.0
    %2030 = vmatprep.subr.mxu0 0.0
    %2031 = vmatpush1.msra.mxu0 0.0
    %2032 = vmatprep.subr.mxu0 0.0
    %2033 = vmatpush1.msra.mxu0 0.0
    %2034 = vmatprep.subr.mxu0 0.0
    %2035 = vmatpush1.msra.mxu0 0.0
    %2036 = vmatprep.subr.mxu0 0.0
    %2037 = vmatpush1.msra.mxu0 0.0
    %2038 = vmatprep.subr.mxu0 0.0
    %2039 = vmatpush1.msra.mxu0 0.0
    %2040 = vmatprep.subr.mxu0 0.0
    %2041 = vmatpush1.msra.mxu0 0.0
    %2042 = vmatprep.subr.mxu0 0.0
    %2043 = vmatpush1.msra.mxu0 0.0
    %2044 = vmatprep.subr.mxu0 0.0
    %2045 = vmatpush1.msra.mxu0 0.0
    %2046 = vmatprep.subr.mxu0 0.0
    %2047 = vmatpush1.msra.mxu0 0.0
    %2048 = vmatprep.subr.mxu0 0.0
    %2049 = vmatpush1.msra.mxu0 0.0
    %2050 = vmatprep.subr.mxu0 0.0
    %2051 = vmatpush1.msra.mxu0 0.0
    %2052 = vmatprep.mubr.f32.mxu0 0.0
    %2053 = vmatmul.mubr.f32.gmra.mrb[0].mxu0 %v1986
    %v2054 = vpop.f32.mrb[0].mxu0
    %v2055 = vadd.f32 0.0, %v2054
    %v2056 = vpop.f32.mrb[0].mxu0
    %2057 = vdwg.mxu0
    %2058 = vmatprep.subr.mxu0 0.0
    %2059 = vmatpush1.msra.mxu0 %v54
    %2060 = vmatprep.subr.mxu0 0.0
    %2061 = vmatpush1.msra.mxu0 %v55
    %2062 = vmatprep.subr.mxu0 0.0
    %2063 = vmatpush1.msra.mxu0 %v56
    %2064 = vmatprep.subr.mxu0 0.0
    %2065 = vmatpush1.msra.mxu0 %v57
    %2066 = vmatprep.subr.mxu0 0.0
    %2067 = vmatpush1.msra.mxu0 0.0
    %2068 = vmatprep.subr.mxu0 0.0
    %2069 = vmatpush1.msra.mxu0 0.0
    %2070 = vmatprep.subr.mxu0 0.0
    %2071 = vmatpush1.msra.mxu0 0.0
    %2072 = vmatprep.subr.mxu0 0.0
    %2073 = vmatpush1.msra.mxu0 0.0
    %2074 = vmatprep.subr.mxu0 0.0
    %2075 = vmatpush1.msra.mxu0 0.0
    %2076 = vmatprep.subr.mxu0 0.0
    %2077 = vmatpush1.msra.mxu0 0.0
    %2078 = vmatprep.subr.mxu0 0.0
    %2079 = vmatpush1.msra.mxu0 0.0
    %2080 = vmatprep.subr.mxu0 0.0
    %2081 = vmatpush1.msra.mxu0 0.0
    %2082 = vmatprep.subr.mxu0 0.0
    %2083 = vmatpush1.msra.mxu0 0.0
    %2084 = vmatprep.subr.mxu0 0.0
    %2085 = vmatpush1.msra.mxu0 0.0
    %2086 = vmatprep.subr.mxu0 0.0
    %2087 = vmatpush1.msra.mxu0 0.0
    %2088 = vmatprep.subr.mxu0 0.0
    %2089 = vmatpush1.msra.mxu0 0.0
    %2090 = vmatprep.subr.mxu0 0.0
    %2091 = vmatpush1.msra.mxu0 0.0
    %2092 = vmatprep.subr.mxu0 0.0
    %2093 = vmatpush1.msra.mxu0 0.0
    %2094 = vmatprep.subr.mxu0 0.0
    %2095 = vmatpush1.msra.mxu0 0.0
    %2096 = vmatprep.subr.mxu0 0.0
    %2097 = vmatpush1.msra.mxu0 0.0
    %2098 = vmatprep.subr.mxu0 0.0
    %2099 = vmatpush1.msra.mxu0 0.0
    %2100 = vmatprep.subr.mxu0 0.0
    %2101 = vmatpush1.msra.mxu0 0.0
    %2102 = vmatprep.subr.mxu0 0.0
    %2103 = vmatpush1.msra.mxu0 0.0
    %2104 = vmatprep.subr.mxu0 0.0
    %2105 = vmatpush1.msra.mxu0 0.0
    %2106 = vmatprep.subr.mxu0 0.0
    %2107 = vmatpush1.msra.mxu0 0.0
    %2108 = vmatprep.subr.mxu0 0.0
    %2109 = vmatpush1.msra.mxu0 0.0
    %2110 = vmatprep.subr.mxu0 0.0
    %2111 = vmatpush1.msra.mxu0 0.0
    %2112 = vmatprep.subr.mxu0 0.0
    %2113 = vmatpush1.msra.mxu0 0.0
    %2114 = vmatprep.subr.mxu0 0.0
    %2115 = vmatpush1.msra.mxu0 0.0
    %2116 = vmatprep.subr.mxu0 0.0
    %2117 = vmatpush1.msra.mxu0 0.0
    %2118 = vmatprep.subr.mxu0 0.0
    %2119 = vmatpush1.msra.mxu0 0.0
    %2120 = vmatprep.subr.mxu0 0.0
    %2121 = vmatpush1.msra.mxu0 0.0
    %2122 = vmatprep.mubr.f32.mxu0 0.0
    %2123 = vmatmul.mubr.f32.gmra.mrb[0].mxu0 %v1886
    %v2124 = vpop.f32.mrb[0].mxu0
    %v2125 = vadd.f32 %v2055, %v2124
    %v2126 = vpop.f32.mrb[0].mxu0
    %2127 = vdwg.mxu0
    %v2128 = vadd.f32 %v2125, %v199
    %v2129 = vxor.u32 %v2128, 2147483648
    %v2130 = vmul.f32 %v2129, 1.442695
    %v2131 = vpow.pop %v2130
    %v2132 = vadd.f32 %v2131, 1.0
    %v2133 = vrcp.pop %v2132
    %v2134 = vmul.f32 1.0, %v2133
    %v2135 = vtanh.pop %v2128
    %v2136 = vmul.f32 %v2134, %v1706
    %2138 = vrot.lane.b32.xlu0 %v2135, 64
    %v2139 = vpop.permute.xlu0 %2138
    %v2141 = vmul.f32 %v2134, %v2139
    %2143 = vrot.lane.b32.xlu0 %v2141, 32
    %v2144 = vpop.permute.xlu0 %2143
    %v2146 = vadd.f32 %v2136, %v2144
    %v2147 = vtanh.pop %v2146
    %2149 = vrot.lane.b32.xlu0 %v2147, 64
    %v2150 = vpop.permute.xlu0 %2149
    %v2152 = vmul.f32 %v2134, %v2150
    %2154 = vrot.lane.b32.xlu0 %v1882, 32
    %v2155 = vpop.permute.xlu0 %2154
    %v2156 = vsel %vm204, %v2155, 0
    %2158 = vmatprep.subr.mxu0 0.0
    %2159 = vmatpush1.msra.mxu0 %v67
    %2160 = vmatprep.subr.mxu0 0.0
    %2161 = vmatpush1.msra.mxu0 %v68
    %2162 = vmatprep.subr.mxu0 0.0
    %2163 = vmatpush1.msra.mxu0 %v69
    %2164 = vmatprep.subr.mxu0 0.0
    %2165 = vmatpush1.msra.mxu0 %v70
    %2166 = vmatprep.subr.mxu0 0.0
    %2167 = vmatpush1.msra.mxu0 0.0
    %2168 = vmatprep.subr.mxu0 0.0
    %2169 = vmatpush1.msra.mxu0 0.0
    %2170 = vmatprep.subr.mxu0 0.0
    %2171 = vmatpush1.msra.mxu0 0.0
    %2172 = vmatprep.subr.mxu0 0.0
    %2173 = vmatpush1.msra.mxu0 0.0
    %2174 = vmatprep.subr.mxu0 0.0
    %2175 = vmatpush1.msra.mxu0 0.0
    %2176 = vmatprep.subr.mxu0 0.0
    %2177 = vmatpush1.msra.mxu0 0.0
    %2178 = vmatprep.subr.mxu0 0.0
    %2179 = vmatpush1.msra.mxu0 0.0
    %2180 = vmatprep.subr.mxu0 0.0
    %2181 = vmatpush1.msra.mxu0 0.0
    %2182 = vmatprep.subr.mxu0 0.0
    %2183 = vmatpush1.msra.mxu0 0.0
    %2184 = vmatprep.subr.mxu0 0.0
    %2185 = vmatpush1.msra.mxu0 0.0
    %2186 = vmatprep.subr.mxu0 0.0
    %2187 = vmatpush1.msra.mxu0 0.0
    %2188 = vmatprep.subr.mxu0 0.0
    %2189 = vmatpush1.msra.mxu0 0.0
    %2190 = vmatprep.subr.mxu0 0.0
    %2191 = vmatpush1.msra.mxu0 0.0
    %2192 = vmatprep.subr.mxu0 0.0
    %2193 = vmatpush1.msra.mxu0 0.0
    %2194 = vmatprep.subr.mxu0 0.0
    %2195 = vmatpush1.msra.mxu0 0.0
    %2196 = vmatprep.subr.mxu0 0.0
    %2197 = vmatpush1.msra.mxu0 0.0
    %2198 = vmatprep.subr.mxu0 0.0
    %2199 = vmatpush1.msra.mxu0 0.0
    %2200 = vmatprep.subr.mxu0 0.0
    %2201 = vmatpush1.msra.mxu0 0.0
    %2202 = vmatprep.subr.mxu0 0.0
    %2203 = vmatpush1.msra.mxu0 0.0
    %2204 = vmatprep.subr.mxu0 0.0
    %2205 = vmatpush1.msra.mxu0 0.0
    %2206 = vmatprep.subr.mxu0 0.0
    %2207 = vmatpush1.msra.mxu0 0.0
    %2208 = vmatprep.subr.mxu0 0.0
    %2209 = vmatpush1.msra.mxu0 0.0
    %2210 = vmatprep.subr.mxu0 0.0
    %2211 = vmatpush1.msra.mxu0 0.0
    %2212 = vmatprep.subr.mxu0 0.0
    %2213 = vmatpush1.msra.mxu0 0.0
    %2214 = vmatprep.subr.mxu0 0.0
    %2215 = vmatpush1.msra.mxu0 0.0
    %2216 = vmatprep.subr.mxu0 0.0
    %2217 = vmatpush1.msra.mxu0 0.0
    %2218 = vmatprep.subr.mxu0 0.0
    %2219 = vmatpush1.msra.mxu0 0.0
    %2220 = vmatprep.subr.mxu0 0.0
    %2221 = vmatpush1.msra.mxu0 0.0
    %2222 = vmatprep.mubr.f32.mxu0 0.0
    %2223 = vmatmul.mubr.f32.gmra.mrb[0].mxu0 %v2156
    %v2224 = vpop.f32.mrb[0].mxu0
    %v2225 = vadd.f32 0.0, %v2224
    %v2226 = vpop.f32.mrb[0].mxu0
    %2227 = vdwg.mxu0
    %2228 = vmatprep.subr.mxu0 0.0
    %2229 = vmatpush1.msra.mxu0 %v63
    %2230 = vmatprep.subr.mxu0 0.0
    %2231 = vmatpush1.msra.mxu0 %v64
    %2232 = vmatprep.subr.mxu0 0.0
    %2233 = vmatpush1.msra.mxu0 %v65
    %2234 = vmatprep.subr.mxu0 0.0
    %2235 = vmatpush1.msra.mxu0 %v66
    %2236 = vmatprep.subr.mxu0 0.0
    %2237 = vmatpush1.msra.mxu0 0.0
    %2238 = vmatprep.subr.mxu0 0.0
    %2239 = vmatpush1.msra.mxu0 0.0
    %2240 = vmatprep.subr.mxu0 0.0
    %2241 = vmatpush1.msra.mxu0 0.0
    %2242 = vmatprep.subr.mxu0 0.0
    %2243 = vmatpush1.msra.mxu0 0.0
    %2244 = vmatprep.subr.mxu0 0.0
    %2245 = vmatpush1.msra.mxu0 0.0
    %2246 = vmatprep.subr.mxu0 0.0
    %2247 = vmatpush1.msra.mxu0 0.0
    %2248 = vmatprep.subr.mxu0 0.0
    %2249 = vmatpush1.msra.mxu0 0.0
    %2250 = vmatprep.subr.mxu0 0.0
    %2251 = vmatpush1.msra.mxu0 0.0
    %2252 = vmatprep.subr.mxu0 0.0
    %2253 = vmatpush1.msra.mxu0 0.0
    %2254 = vmatprep.subr.mxu0 0.0
    %2255 = vmatpush1.msra.mxu0 0.0
    %2256 = vmatprep.subr.mxu0 0.0
    %2257 = vmatpush1.msra.mxu0 0.0
    %2258 = vmatprep.subr.mxu0 0.0
    %2259 = vmatpush1.msra.mxu0 0.0
    %2260 = vmatprep.subr.mxu0 0.0
    %2261 = vmatpush1.msra.mxu0 0.0
    %2262 = vmatprep.subr.mxu0 0.0
    %2263 = vmatpush1.msra.mxu0 0.0
    %2264 = vmatprep.subr.mxu0 0.0
    %2265 = vmatpush1.msra.mxu0 0.0
    %2266 = vmatprep.subr.mxu0 0.0
    %2267 = vmatpush1.msra.mxu0 0.0
    %2268 = vmatprep.subr.mxu0 0.0
    %2269 = vmatpush1.msra.mxu0 0.0
    %2270 = vmatprep.subr.mxu0 0.0
    %2271 = vmatpush1.msra.mxu0 0.0
    %2272 = vmatprep.subr.mxu0 0.0
    %2273 = vmatpush1.msra.mxu0 0.0
    %2274 = vmatprep.subr.mxu0 0.0
    %2275 = vmatpush1.msra.mxu0 0.0
    %2276 = vmatprep.subr.mxu0 0.0
    %2277 = vmatpush1.msra.mxu0 0.0
    %2278 = vmatprep.subr.mxu0 0.0
    %2279 = vmatpush1.msra.mxu0 0.0
    %2280 = vmatprep.subr.mxu0 0.0
    %2281 = vmatpush1.msra.mxu0 0.0
    %2282 = vmatprep.subr.mxu0 0.0
    %2283 = vmatpush1.msra.mxu0 0.0
    %2284 = vmatprep.subr.mxu0 0.0
    %2285 = vmatpush1.msra.mxu0 0.0
    %2286 = vmatprep.subr.mxu0 0.0
    %2287 = vmatpush1.msra.mxu0 0.0
    %2288 = vmatprep.subr.mxu0 0.0
    %2289 = vmatpush1.msra.mxu0 0.0
    %2290 = vmatprep.subr.mxu0 0.0
    %2291 = vmatpush1.msra.mxu0 0.0
    %2292 = vmatprep.mubr.f32.mxu0 0.0
    %2293 = vmatmul.mubr.f32.gmra.mrb[0].mxu0 %v1986
    %v2294 = vpop.f32.mrb[0].mxu0
    %v2295 = vadd.f32 %v2225, %v2294
    %v2296 = vpop.f32.mrb[0].mxu0
    %2297 = vdwg.mxu0
    %v2298 = vadd.f32 %v2295, %v203
    %v2299 = vxor.u32 %v2298, 2147483648
    %v2300 = vmul.f32 %v2299, 1.442695
    %v2301 = vpow.pop %v2300
    %v2302 = vadd.f32 %v2301, 1.0
    %v2303 = vrcp.pop %v2302
    %v2304 = vmul.f32 1.0, %v2303
    %v2305 = vtanh.pop %v2298
    %v2306 = vmul.f32 %v2304, %v1876
    %2308 = vrot.lane.b32.xlu0 %v2305, 64
    %v2309 = vpop.permute.xlu0 %2308
    %v2311 = vmul.f32 %v2304, %v2309
    %2313 = vrot.lane.b32.xlu0 %v2311, 32
    %v2314 = vpop.permute.xlu0 %2313
    %v2316 = vadd.f32 %v2306, %v2314
    %v2317 = vtanh.pop %v2316
    %2319 = vrot.lane.b32.xlu0 %v2317, 64
    %v2320 = vpop.permute.xlu0 %2319
    %v2322 = vmul.f32 %v2304, %v2320
    %2324 = vrot.lane.b32.xlu0 %v2152, 32
    %v2325 = vpop.permute.xlu0 %2324
    %v2326 = vsel %vm204, %v2325, 0
    %2328 = vmatprep.subr.mxu0 0.0
    %2329 = vmatpush1.msra.mxu0 %v58
    %2330 = vmatprep.subr.mxu0 0.0
    %2331 = vmatpush1.msra.mxu0 %v59
    %2332 = vmatprep.subr.mxu0 0.0
    %2333 = vmatpush1.msra.mxu0 %v60
    %2334 = vmatprep.subr.mxu0 0.0
    %2335 = vmatpush1.msra.mxu0 %v61
    %2336 = vmatprep.subr.mxu0 0.0
    %2337 = vmatpush1.msra.mxu0 0.0
    %2338 = vmatprep.subr.mxu0 0.0
    %2339 = vmatpush1.msra.mxu0 0.0
    %2340 = vmatprep.subr.mxu0 0.0
    %2341 = vmatpush1.msra.mxu0 0.0
    %2342 = vmatprep.subr.mxu0 0.0
    %2343 = vmatpush1.msra.mxu0 0.0
    %2344 = vmatprep.subr.mxu0 0.0
    %2345 = vmatpush1.msra.mxu0 0.0
    %2346 = vmatprep.subr.mxu0 0.0
    %2347 = vmatpush1.msra.mxu0 0.0
    %2348 = vmatprep.subr.mxu0 0.0
    %2349 = vmatpush1.msra.mxu0 0.0
    %2350 = vmatprep.subr.mxu0 0.0
    %2351 = vmatpush1.msra.mxu0 0.0
    %2352 = vmatprep.subr.mxu0 0.0
    %2353 = vmatpush1.msra.mxu0 0.0
    %2354 = vmatprep.subr.mxu0 0.0
    %2355 = vmatpush1.msra.mxu0 0.0
    %2356 = vmatprep.subr.mxu0 0.0
    %2357 = vmatpush1.msra.mxu0 0.0
    %2358 = vmatprep.subr.mxu0 0.0
    %2359 = vmatpush1.msra.mxu0 0.0
    %2360 = vmatprep.subr.mxu0 0.0
    %2361 = vmatpush1.msra.mxu0 0.0
    %2362 = vmatprep.subr.mxu0 0.0
    %2363 = vmatpush1.msra.mxu0 0.0
    %2364 = vmatprep.subr.mxu0 0.0
    %2365 = vmatpush1.msra.mxu0 0.0
    %2366 = vmatprep.subr.mxu0 0.0
    %2367 = vmatpush1.msra.mxu0 0.0
    %2368 = vmatprep.subr.mxu0 0.0
    %2369 = vmatpush1.msra.mxu0 0.0
    %2370 = vmatprep.subr.mxu0 0.0
    %2371 = vmatpush1.msra.mxu0 0.0
    %2372 = vmatprep.subr.mxu0 0.0
    %2373 = vmatpush1.msra.mxu0 0.0
    %2374 = vmatprep.subr.mxu0 0.0
    %2375 = vmatpush1.msra.mxu0 0.0
    %2376 = vmatprep.subr.mxu0 0.0
    %2377 = vmatpush1.msra.mxu0 0.0
    %2378 = vmatprep.subr.mxu0 0.0
    %2379 = vmatpush1.msra.mxu0 0.0
    %2380 = vmatprep.subr.mxu0 0.0
    %2381 = vmatpush1.msra.mxu0 0.0
    %2382 = vmatprep.subr.mxu0 0.0
    %2383 = vmatpush1.msra.mxu0 0.0
    %2384 = vmatprep.subr.mxu0 0.0
    %2385 = vmatpush1.msra.mxu0 0.0
    %2386 = vmatprep.subr.mxu0 0.0
    %2387 = vmatpush1.msra.mxu0 0.0
    %2388 = vmatprep.subr.mxu0 0.0
    %2389 = vmatpush1.msra.mxu0 0.0
    %2390 = vmatprep.subr.mxu0 0.0
    %2391 = vmatpush1.msra.mxu0 0.0
    %2392 = vmatprep.mubr.f32.mxu0 0.0
    %2393 = vmatmul.mubr.f32.gmra.mrb[0].mxu0 %v2326
    %v2394 = vpop.f32.mrb[0].mxu0
    %v2395 = vadd.f32 0.0, %v2394
    %v2396 = vpop.f32.mrb[0].mxu0
    %2397 = vdwg.mxu0
    %2399 = vrot.lane.b32.xlu0 %v1982, 32
    %v2400 = vpop.permute.xlu0 %2399
    %v2401 = vsel %vm204, %v2400, 0
    %2403 = vmatprep.subr.mxu0 0.0
    %2404 = vmatpush1.msra.mxu0 %v54
    %2405 = vmatprep.subr.mxu0 0.0
    %2406 = vmatpush1.msra.mxu0 %v55
    %2407 = vmatprep.subr.mxu0 0.0
    %2408 = vmatpush1.msra.mxu0 %v56
    %2409 = vmatprep.subr.mxu0 0.0
    %2410 = vmatpush1.msra.mxu0 %v57
    %2411 = vmatprep.subr.mxu0 0.0
    %2412 = vmatpush1.msra.mxu0 0.0
    %2413 = vmatprep.subr.mxu0 0.0
    %2414 = vmatpush1.msra.mxu0 0.0
    %2415 = vmatprep.subr.mxu0 0.0
    %2416 = vmatpush1.msra.mxu0 0.0
    %2417 = vmatprep.subr.mxu0 0.0
    %2418 = vmatpush1.msra.mxu0 0.0
    %2419 = vmatprep.subr.mxu0 0.0
    %2420 = vmatpush1.msra.mxu0 0.0
    %2421 = vmatprep.subr.mxu0 0.0
    %2422 = vmatpush1.msra.mxu0 0.0
    %2423 = vmatprep.subr.mxu0 0.0
    %2424 = vmatpush1.msra.mxu0 0.0
    %2425 = vmatprep.subr.mxu0 0.0
    %2426 = vmatpush1.msra.mxu0 0.0
    %2427 = vmatprep.subr.mxu0 0.0
    %2428 = vmatpush1.msra.mxu0 0.0
    %2429 = vmatprep.subr.mxu0 0.0
    %2430 = vmatpush1.msra.mxu0 0.0
    %2431 = vmatprep.subr.mxu0 0.0
    %2432 = vmatpush1.msra.mxu0 0.0
    %2433 = vmatprep.subr.mxu0 0.0
    %2434 = vmatpush1.msra.mxu0 0.0
    %2435 = vmatprep.subr.mxu0 0.0
    %2436 = vmatpush1.msra.mxu0 0.0
    %2437 = vmatprep.subr.mxu0 0.0
    %2438 = vmatpush1.msra.mxu0 0.0
    %2439 = vmatprep.subr.mxu0 0.0
    %2440 = vmatpush1.msra.mxu0 0.0
    %2441 = vmatprep.subr.mxu0 0.0
    %2442 = vmatpush1.msra.mxu0 0.0
    %2443 = vmatprep.subr.mxu0 0.0
    %2444 = vmatpush1.msra.mxu0 0.0
    %2445 = vmatprep.subr.mxu0 0.0
    %2446 = vmatpush1.msra.mxu0 0.0
    %2447 = vmatprep.subr.mxu0 0.0
    %2448 = vmatpush1.msra.mxu0 0.0
    %2449 = vmatprep.subr.mxu0 0.0
    %2450 = vmatpush1.msra.mxu0 0.0
    %2451 = vmatprep.subr.mxu0 0.0
    %2452 = vmatpush1.msra.mxu0 0.0
    %2453 = vmatprep.subr.mxu0 0.0
    %2454 = vmatpush1.msra.mxu0 0.0
    %2455 = vmatprep.subr.mxu0 0.0
    %2456 = vmatpush1.msra.mxu0 0.0
    %2457 = vmatprep.subr.mxu0 0.0
    %2458 = vmatpush1.msra.mxu0 0.0
    %2459 = vmatprep.subr.mxu0 0.0
    %2460 = vmatpush1.msra.mxu0 0.0
    %2461 = vmatprep.subr.mxu0 0.0
    %2462 = vmatpush1.msra.mxu0 0.0
    %2463 = vmatprep.subr.mxu0 0.0
    %2464 = vmatpush1.msra.mxu0 0.0
    %2465 = vmatprep.subr.mxu0 0.0
    %2466 = vmatpush1.msra.mxu0 0.0
    %2467 = vmatprep.mubr.f32.mxu0 0.0
    %2468 = vmatmul.mubr.f32.gmra.mrb[0].mxu0 %v2401
    %v2469 = vpop.f32.mrb[0].mxu0
    %v2470 = vadd.f32 %v2395, %v2469
    %v2471 = vpop.f32.mrb[0].mxu0
    %2472 = vdwg.mxu0
    %v2473 = vadd.f32 %v2470, %v199
    %v2474 = vxor.u32 %v2473, 2147483648
    %v2475 = vmul.f32 %v2474, 1.442695
    %v2476 = vpow.pop %v2475
    %v2477 = vadd.f32 %v2476, 1.0
    %v2478 = vrcp.pop %v2477
    %v2479 = vmul.f32 1.0, %v2478
    %v2480 = vtanh.pop %v2473
    %v2481 = vmul.f32 %v2479, %v2146
    %2483 = vrot.lane.b32.xlu0 %v2480, 64
    %v2484 = vpop.permute.xlu0 %2483
    %v2486 = vmul.f32 %v2479, %v2484
    %2488 = vrot.lane.b32.xlu0 %v2486, 32
    %v2489 = vpop.permute.xlu0 %2488
    %v2491 = vadd.f32 %v2481, %v2489
    %v2492 = vtanh.pop %v2491
    %2494 = vrot.lane.b32.xlu0 %v2492, 64
    %v2495 = vpop.permute.xlu0 %2494
    %v2497 = vmul.f32 %v2479, %v2495
    %2499 = vrot.lane.b32.xlu0 %v2322, 32
    %v2500 = vpop.permute.xlu0 %2499
    %v2501 = vsel %vm204, %v2500, 0
    %2503 = vmatprep.subr.mxu0 0.0
    %2504 = vmatpush1.msra.mxu0 %v67
    %2505 = vmatprep.subr.mxu0 0.0
    %2506 = vmatpush1.msra.mxu0 %v68
    %2507 = vmatprep.subr.mxu0 0.0
    %2508 = vmatpush1.msra.mxu0 %v69
    %2509 = vmatprep.subr.mxu0 0.0
    %2510 = vmatpush1.msra.mxu0 %v70
    %2511 = vmatprep.subr.mxu0 0.0
    %2512 = vmatpush1.msra.mxu0 0.0
    %2513 = vmatprep.subr.mxu0 0.0
    %2514 = vmatpush1.msra.mxu0 0.0
    %2515 = vmatprep.subr.mxu0 0.0
    %2516 = vmatpush1.msra.mxu0 0.0
    %2517 = vmatprep.subr.mxu0 0.0
    %2518 = vmatpush1.msra.mxu0 0.0
    %2519 = vmatprep.subr.mxu0 0.0
    %2520 = vmatpush1.msra.mxu0 0.0
    %2521 = vmatprep.subr.mxu0 0.0
    %2522 = vmatpush1.msra.mxu0 0.0
    %2523 = vmatprep.subr.mxu0 0.0
    %2524 = vmatpush1.msra.mxu0 0.0
    %2525 = vmatprep.subr.mxu0 0.0
    %2526 = vmatpush1.msra.mxu0 0.0
    %2527 = vmatprep.subr.mxu0 0.0
    %2528 = vmatpush1.msra.mxu0 0.0
    %2529 = vmatprep.subr.mxu0 0.0
    %2530 = vmatpush1.msra.mxu0 0.0
    %2531 = vmatprep.subr.mxu0 0.0
    %2532 = vmatpush1.msra.mxu0 0.0
    %2533 = vmatprep.subr.mxu0 0.0
    %2534 = vmatpush1.msra.mxu0 0.0
    %2535 = vmatprep.subr.mxu0 0.0
    %2536 = vmatpush1.msra.mxu0 0.0
    %2537 = vmatprep.subr.mxu0 0.0
    %2538 = vmatpush1.msra.mxu0 0.0
    %2539 = vmatprep.subr.mxu0 0.0
    %2540 = vmatpush1.msra.mxu0 0.0
    %2541 = vmatprep.subr.mxu0 0.0
    %2542 = vmatpush1.msra.mxu0 0.0
    %2543 = vmatprep.subr.mxu0 0.0
    %2544 = vmatpush1.msra.mxu0 0.0
    %2545 = vmatprep.subr.mxu0 0.0
    %2546 = vmatpush1.msra.mxu0 0.0
    %2547 = vmatprep.subr.mxu0 0.0
    %2548 = vmatpush1.msra.mxu0 0.0
    %2549 = vmatprep.subr.mxu0 0.0
    %2550 = vmatpush1.msra.mxu0 0.0
    %2551 = vmatprep.subr.mxu0 0.0
    %2552 = vmatpush1.msra.mxu0 0.0
    %2553 = vmatprep.subr.mxu0 0.0
    %2554 = vmatpush1.msra.mxu0 0.0
    %2555 = vmatprep.subr.mxu0 0.0
    %2556 = vmatpush1.msra.mxu0 0.0
    %2557 = vmatprep.subr.mxu0 0.0
    %2558 = vmatpush1.msra.mxu0 0.0
    %2559 = vmatprep.subr.mxu0 0.0
    %2560 = vmatpush1.msra.mxu0 0.0
    %2561 = vmatprep.subr.mxu0 0.0
    %2562 = vmatpush1.msra.mxu0 0.0
    %2563 = vmatprep.subr.mxu0 0.0
    %2564 = vmatpush1.msra.mxu0 0.0
    %2565 = vmatprep.subr.mxu0 0.0
    %2566 = vmatpush1.msra.mxu0 0.0
    %2567 = vmatprep.mubr.f32.mxu0 0.0
    %2568 = vmatmul.mubr.f32.gmra.mrb[0].mxu0 %v2501
    %v2569 = vpop.f32.mrb[0].mxu0
    %v2570 = vadd.f32 0.0, %v2569
    %v2571 = vpop.f32.mrb[0].mxu0
    %2572 = vdwg.mxu0
    %2573 = vmatprep.subr.mxu0 0.0
    %2574 = vmatpush1.msra.mxu0 %v63
    %2575 = vmatprep.subr.mxu0 0.0
    %2576 = vmatpush1.msra.mxu0 %v64
    %2577 = vmatprep.subr.mxu0 0.0
    %2578 = vmatpush1.msra.mxu0 %v65
    %2579 = vmatprep.subr.mxu0 0.0
    %2580 = vmatpush1.msra.mxu0 %v66
    %2581 = vmatprep.subr.mxu0 0.0
    %2582 = vmatpush1.msra.mxu0 0.0
    %2583 = vmatprep.subr.mxu0 0.0
    %2584 = vmatpush1.msra.mxu0 0.0
    %2585 = vmatprep.subr.mxu0 0.0
    %2586 = vmatpush1.msra.mxu0 0.0
    %2587 = vmatprep.subr.mxu0 0.0
    %2588 = vmatpush1.msra.mxu0 0.0
    %2589 = vmatprep.subr.mxu0 0.0
    %2590 = vmatpush1.msra.mxu0 0.0
    %2591 = vmatprep.subr.mxu0 0.0
    %2592 = vmatpush1.msra.mxu0 0.0
    %2593 = vmatprep.subr.mxu0 0.0
    %2594 = vmatpush1.msra.mxu0 0.0
    %2595 = vmatprep.subr.mxu0 0.0
    %2596 = vmatpush1.msra.mxu0 0.0
    %2597 = vmatprep.subr.mxu0 0.0
    %2598 = vmatpush1.msra.mxu0 0.0
    %2599 = vmatprep.subr.mxu0 0.0
    %2600 = vmatpush1.msra.mxu0 0.0
    %2601 = vmatprep.subr.mxu0 0.0
    %2602 = vmatpush1.msra.mxu0 0.0
    %2603 = vmatprep.subr.mxu0 0.0
    %2604 = vmatpush1.msra.mxu0 0.0
    %2605 = vmatprep.subr.mxu0 0.0
    %2606 = vmatpush1.msra.mxu0 0.0
    %2607 = vmatprep.subr.mxu0 0.0
    %2608 = vmatpush1.msra.mxu0 0.0
    %2609 = vmatprep.subr.mxu0 0.0
    %2610 = vmatpush1.msra.mxu0 0.0
    %2611 = vmatprep.subr.mxu0 0.0
    %2612 = vmatpush1.msra.mxu0 0.0
    %2613 = vmatprep.subr.mxu0 0.0
    %2614 = vmatpush1.msra.mxu0 0.0
    %2615 = vmatprep.subr.mxu0 0.0
    %2616 = vmatpush1.msra.mxu0 0.0
    %2617 = vmatprep.subr.mxu0 0.0
    %2618 = vmatpush1.msra.mxu0 0.0
    %2619 = vmatprep.subr.mxu0 0.0
    %2620 = vmatpush1.msra.mxu0 0.0
    %2621 = vmatprep.subr.mxu0 0.0
    %2622 = vmatpush1.msra.mxu0 0.0
    %2623 = vmatprep.subr.mxu0 0.0
    %2624 = vmatpush1.msra.mxu0 0.0
    %2625 = vmatprep.subr.mxu0 0.0
    %2626 = vmatpush1.msra.mxu0 0.0
    %2627 = vmatprep.subr.mxu0 0.0
    %2628 = vmatpush1.msra.mxu0 0.0
    %2629 = vmatprep.subr.mxu0 0.0
    %2630 = vmatpush1.msra.mxu0 0.0
    %2631 = vmatprep.subr.mxu0 0.0
    %2632 = vmatpush1.msra.mxu0 0.0
    %2633 = vmatprep.subr.mxu0 0.0
    %2634 = vmatpush1.msra.mxu0 0.0
    %2635 = vmatprep.subr.mxu0 0.0
    %2636 = vmatpush1.msra.mxu0 0.0
    %2637 = vmatprep.mubr.f32.mxu0 0.0
    %2638 = vmatmul.mubr.f32.gmra.mrb[0].mxu0 %v2326
    %v2639 = vpop.f32.mrb[0].mxu0
    %v2640 = vadd.f32 %v2570, %v2639
    %v2641 = vpop.f32.mrb[0].mxu0
    %2642 = vdwg.mxu0
    %v2643 = vadd.f32 %v2640, %v203
    %v2644 = vxor.u32 %v2643, 2147483648
    %v2645 = vmul.f32 %v2644, 1.442695
    %v2646 = vpow.pop %v2645
    %v2647 = vadd.f32 %v2646, 1.0
    %v2648 = vrcp.pop %v2647
    %v2649 = vmul.f32 1.0, %v2648
    %v2650 = vtanh.pop %v2643
    %v2651 = vmul.f32 %v2649, %v2316
    %2653 = vrot.lane.b32.xlu0 %v2650, 64
    %v2654 = vpop.permute.xlu0 %2653
    %v2656 = vmul.f32 %v2649, %v2654
    %2658 = vrot.lane.b32.xlu0 %v2656, 32
    %v2659 = vpop.permute.xlu0 %2658
    %v2661 = vadd.f32 %v2651, %v2659
    %v2662 = vtanh.pop %v2661
    %2664 = vrot.lane.b32.xlu0 %v2662, 64
    %v2665 = vpop.permute.xlu0 %2664
    %v2667 = vmul.f32 %v2649, %v2665
    %2669 = vrot.lane.b32.xlu0 %v2667, 32
    %v2670 = vpop.permute.xlu0 %2669
    %v2671 = vsel %vm204, %v2670, 0
    %2673 = vmatprep.subr.mxu0 0.0
    %2674 = vmatpush1.msra.mxu0 %v67
    %2675 = vmatprep.subr.mxu0 0.0
    %2676 = vmatpush1.msra.mxu0 %v68
    %2677 = vmatprep.subr.mxu0 0.0
    %2678 = vmatpush1.msra.mxu0 %v69
    %2679 = vmatprep.subr.mxu0 0.0
    %2680 = vmatpush1.msra.mxu0 %v70
    %2681 = vmatprep.subr.mxu0 0.0
    %2682 = vmatpush1.msra.mxu0 0.0
    %2683 = vmatprep.subr.mxu0 0.0
    %2684 = vmatpush1.msra.mxu0 0.0
    %2685 = vmatprep.subr.mxu0 0.0
    %2686 = vmatpush1.msra.mxu0 0.0
    %2687 = vmatprep.subr.mxu0 0.0
    %2688 = vmatpush1.msra.mxu0 0.0
    %2689 = vmatprep.subr.mxu0 0.0
    %2690 = vmatpush1.msra.mxu0 0.0
    %2691 = vmatprep.subr.mxu0 0.0
    %2692 = vmatpush1.msra.mxu0 0.0
    %2693 = vmatprep.subr.mxu0 0.0
    %2694 = vmatpush1.msra.mxu0 0.0
    %2695 = vmatprep.subr.mxu0 0.0
    %2696 = vmatpush1.msra.mxu0 0.0
    %2697 = vmatprep.subr.mxu0 0.0
    %2698 = vmatpush1.msra.mxu0 0.0
    %2699 = vmatprep.subr.mxu0 0.0
    %2700 = vmatpush1.msra.mxu0 0.0
    %2701 = vmatprep.subr.mxu0 0.0
    %2702 = vmatpush1.msra.mxu0 0.0
    %2703 = vmatprep.subr.mxu0 0.0
    %2704 = vmatpush1.msra.mxu0 0.0
    %2705 = vmatprep.subr.mxu0 0.0
    %2706 = vmatpush1.msra.mxu0 0.0
    %2707 = vmatprep.subr.mxu0 0.0
    %2708 = vmatpush1.msra.mxu0 0.0
    %2709 = vmatprep.subr.mxu0 0.0
    %2710 = vmatpush1.msra.mxu0 0.0
    %2711 = vmatprep.subr.mxu0 0.0
    %2712 = vmatpush1.msra.mxu0 0.0
    %2713 = vmatprep.subr.mxu0 0.0
    %2714 = vmatpush1.msra.mxu0 0.0
    %2715 = vmatprep.subr.mxu0 0.0
    %2716 = vmatpush1.msra.mxu0 0.0
    %2717 = vmatprep.subr.mxu0 0.0
    %2718 = vmatpush1.msra.mxu0 0.0
    %2719 = vmatprep.subr.mxu0 0.0
    %2720 = vmatpush1.msra.mxu0 0.0
    %2721 = vmatprep.subr.mxu0 0.0
    %2722 = vmatpush1.msra.mxu0 0.0
    %2723 = vmatprep.subr.mxu0 0.0
    %2724 = vmatpush1.msra.mxu0 0.0
    %2725 = vmatprep.subr.mxu0 0.0
    %2726 = vmatpush1.msra.mxu0 0.0
    %2727 = vmatprep.subr.mxu0 0.0
    %2728 = vmatpush1.msra.mxu0 0.0
    %2729 = vmatprep.subr.mxu0 0.0
    %2730 = vmatpush1.msra.mxu0 0.0
    %2731 = vmatprep.subr.mxu0 0.0
    %2732 = vmatpush1.msra.mxu0 0.0
    %2733 = vmatprep.subr.mxu0 0.0
    %2734 = vmatpush1.msra.mxu0 0.0
    %2735 = vmatprep.subr.mxu0 0.0
    %2736 = vmatpush1.msra.mxu0 0.0
    %2737 = vmatprep.mubr.f32.mxu0 0.0
    %2738 = vmatmul.mubr.f32.gmra.mrb[0].mxu0 %v2671
    %v2739 = vpop.f32.mrb[0].mxu0
    %v2740 = vadd.f32 0.0, %v2739
    %v2741 = vpop.f32.mrb[0].mxu0
    %2742 = vdwg.mxu0
    %2744 = vrot.lane.b32.xlu0 %v2497, 32
    %v2745 = vpop.permute.xlu0 %2744
    %v2746 = vsel %vm204, %v2745, 0
    %2748 = vmatprep.subr.mxu0 0.0
    %2749 = vmatpush1.msra.mxu0 %v63
    %2750 = vmatprep.subr.mxu0 0.0
    %2751 = vmatpush1.msra.mxu0 %v64
    %2752 = vmatprep.subr.mxu0 0.0
    %2753 = vmatpush1.msra.mxu0 %v65
    %2754 = vmatprep.subr.mxu0 0.0
    %2755 = vmatpush1.msra.mxu0 %v66
    %2756 = vmatprep.subr.mxu0 0.0
    %2757 = vmatpush1.msra.mxu0 0.0
    %2758 = vmatprep.subr.mxu0 0.0
    %2759 = vmatpush1.msra.mxu0 0.0
    %2760 = vmatprep.subr.mxu0 0.0
    %2761 = vmatpush1.msra.mxu0 0.0
    %2762 = vmatprep.subr.mxu0 0.0
    %2763 = vmatpush1.msra.mxu0 0.0
    %2764 = vmatprep.subr.mxu0 0.0
    %2765 = vmatpush1.msra.mxu0 0.0
    %2766 = vmatprep.subr.mxu0 0.0
    %2767 = vmatpush1.msra.mxu0 0.0
    %2768 = vmatprep.subr.mxu0 0.0
    %2769 = vmatpush1.msra.mxu0 0.0
    %2770 = vmatprep.subr.mxu0 0.0
    %2771 = vmatpush1.msra.mxu0 0.0
    %2772 = vmatprep.subr.mxu0 0.0
    %2773 = vmatpush1.msra.mxu0 0.0
    %2774 = vmatprep.subr.mxu0 0.0
    %2775 = vmatpush1.msra.mxu0 0.0
    %2776 = vmatprep.subr.mxu0 0.0
    %2777 = vmatpush1.msra.mxu0 0.0
    %2778 = vmatprep.subr.mxu0 0.0
    %2779 = vmatpush1.msra.mxu0 0.0
    %2780 = vmatprep.subr.mxu0 0.0
    %2781 = vmatpush1.msra.mxu0 0.0
    %2782 = vmatprep.subr.mxu0 0.0
    %2783 = vmatpush1.msra.mxu0 0.0
    %2784 = vmatprep.subr.mxu0 0.0
    %2785 = vmatpush1.msra.mxu0 0.0
    %2786 = vmatprep.subr.mxu0 0.0
    %2787 = vmatpush1.msra.mxu0 0.0
    %2788 = vmatprep.subr.mxu0 0.0
    %2789 = vmatpush1.msra.mxu0 0.0
    %2790 = vmatprep.subr.mxu0 0.0
    %2791 = vmatpush1.msra.mxu0 0.0
    %2792 = vmatprep.subr.mxu0 0.0
    %2793 = vmatpush1.msra.mxu0 0.0
    %2794 = vmatprep.subr.mxu0 0.0
    %2795 = vmatpush1.msra.mxu0 0.0
    %2796 = vmatprep.subr.mxu0 0.0
    %2797 = vmatpush1.msra.mxu0 0.0
    %2798 = vmatprep.subr.mxu0 0.0
    %2799 = vmatpush1.msra.mxu0 0.0
    %2800 = vmatprep.subr.mxu0 0.0
    %2801 = vmatpush1.msra.mxu0 0.0
    %2802 = vmatprep.subr.mxu0 0.0
    %2803 = vmatpush1.msra.mxu0 0.0
    %2804 = vmatprep.subr.mxu0 0.0
    %2805 = vmatpush1.msra.mxu0 0.0
    %2806 = vmatprep.subr.mxu0 0.0
    %2807 = vmatpush1.msra.mxu0 0.0
    %2808 = vmatprep.subr.mxu0 0.0
    %2809 = vmatpush1.msra.mxu0 0.0
    %2810 = vmatprep.subr.mxu0 0.0
    %2811 = vmatpush1.msra.mxu0 0.0
    %2812 = vmatprep.mubr.f32.mxu0 0.0
    %2813 = vmatmul.mubr.f32.gmra.mrb[0].mxu0 %v2746
    %v2814 = vpop.f32.mrb[0].mxu0
    %v2815 = vadd.f32 %v2740, %v2814
    %v2816 = vpop.f32.mrb[0].mxu0
    %2817 = vdwg.mxu0
    %v2818 = vadd.f32 %v2815, %v203
    %v2819 = vxor.u32 %v2818, 2147483648
    %v2820 = vmul.f32 %v2819, 1.442695
    %v2821 = vpow.pop %v2820
    %v2822 = vadd.f32 %v2821, 1.0
    %v2823 = vrcp.pop %v2822
    %v2824 = vmul.f32 1.0, %v2823
    %v2825 = vtanh.pop %v2818
    %v2826 = vmul.f32 %v2824, %v2661
    %2828 = vrot.lane.b32.xlu0 %v2825, 64
    %v2829 = vpop.permute.xlu0 %2828
    %v2831 = vmul.f32 %v2824, %v2829
    %2833 = vrot.lane.b32.xlu0 %v2831, 32
    %v2834 = vpop.permute.xlu0 %2833
    %v2836 = vadd.f32 %v2826, %v2834
    %v2837 = vtanh.pop %v2836
    %2839 = vrot.lane.b32.xlu0 %v2837, 64
    %v2840 = vpop.permute.xlu0 %2839
    %v2842 = vmul.f32 %v2824, %v2840
    %v2843 = vld [vmem:[%s2] sm:$0xff]
    %v2844 = vld [vmem:[%s2 + $0x8] sm:$0xff]
    %v2845 = vld [vmem:[%s2 + $0x10] sm:$0xff]
    %v2846 = vld [vmem:[%s2 + $0x18] sm:$0xff]
    %v2847 = vld [vmem:[%s2 + $0x20] sm:$0x1]
    %v2848 = vlaneseq
    %v2849 = vshrl.u32 %v2848, 7
    %v2850 = vsub.s32 0, %v2849
    %v2851 = vrot.slane %v2847, %v2850
    %2853 = vrot.lane.b32.xlu0 %v2842, 32
    %v2854 = vpop.permute.xlu0 %2853
    %v2855 = vsel %vm204, %v2854, 0
    %2857 = vmatprep.subr.mxu0 0.0
    %2858 = vmatpush1.msra.mxu0 %v2843
    %2859 = vmatprep.subr.mxu0 0.0
    %2860 = vmatpush1.msra.mxu0 %v2844
    %2861 = vmatprep.subr.mxu0 0.0
    %2862 = vmatpush1.msra.mxu0 %v2845
    %2863 = vmatprep.subr.mxu0 0.0
    %2864 = vmatpush1.msra.mxu0 %v2846
    %2865 = vmatprep.subr.mxu0 0.0
    %2866 = vmatpush1.msra.mxu0 0.0
    %2867 = vmatprep.subr.mxu0 0.0
    %2868 = vmatpush1.msra.mxu0 0.0
    %2869 = vmatprep.subr.mxu0 0.0
    %2870 = vmatpush1.msra.mxu0 0.0
    %2871 = vmatprep.subr.mxu0 0.0
    %2872 = vmatpush1.msra.mxu0 0.0
    %2873 = vmatprep.subr.mxu0 0.0
    %2874 = vmatpush1.msra.mxu0 0.0
    %2875 = vmatprep.subr.mxu0 0.0
    %2876 = vmatpush1.msra.mxu0 0.0
    %2877 = vmatprep.subr.mxu0 0.0
    %2878 = vmatpush1.msra.mxu0 0.0
    %2879 = vmatprep.subr.mxu0 0.0
    %2880 = vmatpush1.msra.mxu0 0.0
    %2881 = vmatprep.subr.mxu0 0.0
    %2882 = vmatpush1.msra.mxu0 0.0
    %2883 = vmatprep.subr.mxu0 0.0
    %2884 = vmatpush1.msra.mxu0 0.0
    %2885 = vmatprep.subr.mxu0 0.0
    %2886 = vmatpush1.msra.mxu0 0.0
    %2887 = vmatprep.subr.mxu0 0.0
    %2888 = vmatpush1.msra.mxu0 0.0
    %2889 = vmatprep.subr.mxu0 0.0
    %2890 = vmatpush1.msra.mxu0 0.0
    %2891 = vmatprep.subr.mxu0 0.0
    %2892 = vmatpush1.msra.mxu0 0.0
    %2893 = vmatprep.subr.mxu0 0.0
    %2894 = vmatpush1.msra.mxu0 0.0
    %2895 = vmatprep.subr.mxu0 0.0
    %2896 = vmatpush1.msra.mxu0 0.0
    %2897 = vmatprep.subr.mxu0 0.0
    %2898 = vmatpush1.msra.mxu0 0.0
    %2899 = vmatprep.subr.mxu0 0.0
    %2900 = vmatpush1.msra.mxu0 0.0
    %2901 = vmatprep.subr.mxu0 0.0
    %2902 = vmatpush1.msra.mxu0 0.0
    %2903 = vmatprep.subr.mxu0 0.0
    %2904 = vmatpush1.msra.mxu0 0.0
    %2905 = vmatprep.subr.mxu0 0.0
    %2906 = vmatpush1.msra.mxu0 0.0
    %2907 = vmatprep.subr.mxu0 0.0
    %2908 = vmatpush1.msra.mxu0 0.0
    %2909 = vmatprep.subr.mxu0 0.0
    %2910 = vmatpush1.msra.mxu0 0.0
    %2911 = vmatprep.subr.mxu0 0.0
    %2912 = vmatpush1.msra.mxu0 0.0
    %2913 = vmatprep.subr.mxu0 0.0
    %2914 = vmatpush1.msra.mxu0 0.0
    %2915 = vmatprep.subr.mxu0 0.0
    %2916 = vmatpush1.msra.mxu0 0.0
    %2917 = vmatprep.subr.mxu0 0.0
    %2918 = vmatpush1.msra.mxu0 0.0
    %2919 = vmatprep.subr.mxu0 0.0
    %2920 = vmatpush1.msra.mxu0 0.0
    %2921 = vmatprep.mubr.f32.mxu0 0.0
    %2922 = vmatmul.mubr.f32.gmra.mrb[0].mxu0 %v2855
    %v2923 = vpop.f32.mrb[0].mxu0
    %v2924 = vadd.f32 %v2851, %v2923
    %v2925 = vpop.f32.mrb[0].mxu0
    %2926 = vdwg.mxu0
    %v2927 = vmul.f32 %v2924, %v2924
    %2928 = vadd.xlane.f32.xlu0 %v2927
    %v2929 = vpop.xlane.xlu0 %2928
    %vm2930 = vcmask 7168
    %v2931 = vsel %vm2930, %v2929, 0.0
    %2932 = vadd.xlane.f32.xlu0 %v2931
    %v2933 = vpop.xlane.xlu0 %2932
    %v2934 = vrot.slane %v2933, 4
    %v2935 = vadd.f32 %v2933, %v2934
    %v2936 = vrot.slane %v2935, 2
    %v2937 = vadd.f32 %v2935, %v2936
    %v2938 = vrot.slane %v2937, 1
    %v2939 = vadd.f32 %v2937, %v2938
    %s2940 = vtos %v2939
    %v2941 = vstv %s2940
    %v2942 = vrsqrt.pop %v2941
    %v2943 = vmul.f32 %v2924, %v2942
    %2944 = vst.msk [vmem:[#allocation7] sm:$0xff] %vm82, %v2943
    %v2945 = vld [vmem:[%s2 + $0x28] sm:$0x3]
    %vm2946 = vcmask 64512
    %v2948 = vsel %vm2946, %v2945, 0
    %2950 = vmatprep.subr.mxu0 0.0
    %2951 = vmatpush1.msra.mxu0 %v2943
    %2952 = vmatprep.subr.mxu0 0.0
    %2953 = vmatpush1.msra.mxu0 0.0
    %2954 = vmatprep.subr.mxu0 0.0
    %2955 = vmatpush1.msra.mxu0 0.0
    %2956 = vmatprep.subr.mxu0 0.0
    %2957 = vmatpush1.msra.mxu0 0.0
    %2958 = vmatprep.subr.mxu0 0.0
    %2959 = vmatpush1.msra.mxu0 0.0
    %2960 = vmatprep.subr.mxu0 0.0
    %2961 = vmatpush1.msra.mxu0 0.0
    %2962 = vmatprep.subr.mxu0 0.0
    %2963 = vmatpush1.msra.mxu0 0.0
    %2964 = vmatprep.subr.mxu0 0.0
    %2965 = vmatpush1.msra.mxu0 0.0
    %2966 = vmatprep.subr.mxu0 0.0
    %2967 = vmatpush1.msra.mxu0 0.0
    %2968 = vmatprep.subr.mxu0 0.0
    %2969 = vmatpush1.msra.mxu0 0.0
    %2970 = vmatprep.subr.mxu0 0.0
    %2971 = vmatpush1.msra.mxu0 0.0
    %2972 = vmatprep.subr.mxu0 0.0
    %2973 = vmatpush1.msra.mxu0 0.0
    %2974 = vmatprep.subr.mxu0 0.0
    %2975 = vmatpush1.msra.mxu0 0.0
    %2976 = vmatprep.subr.mxu0 0.0
    %2977 = vmatpush1.msra.mxu0 0.0
    %2978 = vmatprep.subr.mxu0 0.0
    %2979 = vmatpush1.msra.mxu0 0.0
    %2980 = vmatprep.subr.mxu0 0.0
    %2981 = vmatpush1.msra.mxu0 0.0
    %2982 = vmatprep.subr.mxu0 0.0
    %2983 = vmatpush1.msra.mxu0 0.0
    %2984 = vmatprep.subr.mxu0 0.0
    %2985 = vmatpush1.msra.mxu0 0.0
    %2986 = vmatprep.subr.mxu0 0.0
    %2987 = vmatpush1.msra.mxu0 0.0
    %2988 = vmatprep.subr.mxu0 0.0
    %2989 = vmatpush1.msra.mxu0 0.0
    %2990 = vmatprep.subr.mxu0 0.0
    %2991 = vmatpush1.msra.mxu0 0.0
    %2992 = vmatprep.subr.mxu0 0.0
    %2993 = vmatpush1.msra.mxu0 0.0
    %2994 = vmatprep.subr.mxu0 0.0
    %2995 = vmatpush1.msra.mxu0 0.0
    %2996 = vmatprep.subr.mxu0 0.0
    %2997 = vmatpush1.msra.mxu0 0.0
    %2998 = vmatprep.subr.mxu0 0.0
    %2999 = vmatpush1.msra.mxu0 0.0
    %3000 = vmatprep.subr.mxu0 0.0
    %3001 = vmatpush1.msra.mxu0 0.0
    %3002 = vmatprep.subr.mxu0 0.0
    %3003 = vmatpush1.msra.mxu0 0.0
    %3004 = vmatprep.subr.mxu0 0.0
    %3005 = vmatpush1.msra.mxu0 0.0
    %3006 = vmatprep.subr.mxu0 0.0
    %3007 = vmatpush1.msra.mxu0 0.0
    %3008 = vmatprep.subr.mxu0 0.0
    %3009 = vmatpush1.msra.mxu0 0.0
    %3010 = vmatprep.subr.mxu0 0.0
    %3011 = vmatpush1.msra.mxu0 0.0
    %3012 = vmatprep.subr.mxu0 0.0
    %3013 = vmatpush1.msra.mxu0 0.0
    %3014 = vmatprep.mubr.f32.mxu0 0.0
    %3015 = vmatmul.mubr.f32.gmra.mrb[0].mxu0 %v2948
    %v3016 = vpop.f32.mrb[0].mxu0
    %v3017 = vadd.f32 0.0, %v3016
    %v3018 = vpop.f32.mrb[0].mxu0
    %3019 = vdwg.mxu0
    %v3020 = vmul.f32 %v3017, %v3017
    %vm3021 = vcmask 1041408
    %v3022 = vsel %vm3021, %v3020, 0.0
    %3023 = vadd.xlane.f32.xlu0 %v3022
    %v3024 = vpop.xlane.xlu0 %3023
    %v3025 = vmax.f32 %v3024, 1e-16
    %v3026 = vrsqrt.pop %v3025
    %v3027 = vmul.f32 %v3017, %v3026
    %3028 = vmatprep.subr.mxu0 0.0
    %3029 = vmatpush1.xpose.msra.mxu0 %v3027
    %3030 = vmatprep.subr.mxu0 0.0
    %3031 = vmatpush1.xpose.msra.mxu0 0.0
    %3032 = vmatprep.subr.mxu0 0.0
    %3033 = vmatpush1.xpose.msra.mxu0 0.0
    %3034 = vmatprep.subr.mxu0 0.0
    %3035 = vmatpush1.xpose.msra.mxu0 0.0
    %3036 = vmatprep.subr.mxu0 0.0
    %3037 = vmatpush1.xpose.msra.mxu0 0.0
    %3038 = vmatprep.subr.mxu0 0.0
    %3039 = vmatpush1.xpose.msra.mxu0 0.0
    %3040 = vmatprep.subr.mxu0 0.0
    %3041 = vmatpush1.xpose.msra.mxu0 0.0
    %3042 = vmatprep.subr.mxu0 0.0
    %3043 = vmatpush1.xpose.msra.mxu0 0.0
    %3044 = vmatprep.subr.mxu0 0.0
    %3045 = vmatpush1.xpose.msra.mxu0 0.0
    %3046 = vmatprep.subr.mxu0 0.0
    %3047 = vmatpush1.xpose.msra.mxu0 0.0
    %3048 = vmatprep.subr.mxu0 0.0
    %3049 = vmatpush1.xpose.msra.mxu0 0.0
    %3050 = vmatprep.subr.mxu0 0.0
    %3051 = vmatpush1.xpose.msra.mxu0 0.0
    %3052 = vmatprep.subr.mxu0 0.0
    %3053 = vmatpush1.xpose.msra.mxu0 0.0
    %3054 = vmatprep.subr.mxu0 0.0
    %3055 = vmatpush1.xpose.msra.mxu0 0.0
    %3056 = vmatprep.subr.mxu0 0.0
    %3057 = vmatpush1.xpose.msra.mxu0 0.0
    %3058 = vmatprep.subr.mxu0 0.0
    %3059 = vmatpush1.xpose.msra.mxu0 0.0
    %3060 = vmatprep.subr.mxu0 0.0
    %3061 = vmatpush1.xpose.msra.mxu0 0.0
    %3062 = vmatprep.subr.mxu0 0.0
    %3063 = vmatpush1.xpose.msra.mxu0 0.0
    %3064 = vmatprep.subr.mxu0 0.0
    %3065 = vmatpush1.xpose.msra.mxu0 0.0
    %3066 = vmatprep.subr.mxu0 0.0
    %3067 = vmatpush1.xpose.msra.mxu0 0.0
    %3068 = vmatprep.subr.mxu0 0.0
    %3069 = vmatpush1.xpose.msra.mxu0 0.0
    %3070 = vmatprep.subr.mxu0 0.0
    %3071 = vmatpush1.xpose.msra.mxu0 0.0
    %3072 = vmatprep.subr.mxu0 0.0
    %3073 = vmatpush1.xpose.msra.mxu0 0.0
    %3074 = vmatprep.subr.mxu0 0.0
    %3075 = vmatpush1.xpose.msra.mxu0 0.0
    %3076 = vmatprep.subr.mxu0 0.0
    %3077 = vmatpush1.xpose.msra.mxu0 0.0
    %3078 = vmatprep.subr.mxu0 0.0
    %3079 = vmatpush1.xpose.msra.mxu0 0.0
    %3080 = vmatprep.subr.mxu0 0.0
    %3081 = vmatpush1.xpose.msra.mxu0 0.0
    %3082 = vmatprep.subr.mxu0 0.0
    %3083 = vmatpush1.xpose.msra.mxu0 0.0
    %3084 = vmatprep.subr.mxu0 0.0
    %3085 = vmatpush1.xpose.msra.mxu0 0.0
    %3086 = vmatprep.subr.mxu0 0.0
    %3087 = vmatpush1.xpose.msra.mxu0 0.0
    %3088 = vmatprep.subr.mxu0 0.0
    %3089 = vmatpush1.xpose.msra.mxu0 0.0
    %3090 = vmatprep.subr.mxu0 0.0
    %3091 = vmatpush1.xpose.msra.mxu0 0.0
    %3092 = vmatprep.mubr.f32.mxu0 0.0
    %3093 = vmatmul.mubr.f32.gmra.mrb[0].mxu0 %v2943
    %v3094 = vpop.f32.mrb[0].mxu0
    %v3095 = vadd.f32 0.0, %v3094
    %v3096 = vpop.f32.mrb[0].mxu0
    %3097 = vdwg.mxu0
    %v3098 = vmul.f32 %v2942, %v2942
    %v3099 = vmul.f32 %v2929, %v3098
    %v3100 = vmax.f32 %v3099, 1e-16
    %v3101 = vrsqrt.pop %v3100
    %s3102 = sld [smem:[#allocation6]]
    %v3103 = vstv %s3102
    %v3104 = vmul.f32 %v3103, %v3101
    %v3105 = vmul.f32 %v3104, %v3095
    %s3106 = sld [smem:[#allocation6 + $0x1]]
    %v3107 = vstv %s3106
    %v3108 = vadd.f32 %v3105, %v3107
    %vm3109 = vcmask 15360
    %3110 = vst.msk [vmem:[%s5] sm:$0xff] %vm3109, %v3108
    // Predicated region
    $region26: #{tpu_custom_call.1} parent=1 // pred_check
      _
    $region27: #{tpu_custom_call.1} parent=1 // pred_check_branch
      %3112 = sbr.rel (0) target = $region29
    $region28: #{tpu_custom_call.1} parent=1 // pred_region
      %s3114 = ssub.s32 128, 128
      %3115 = vsyncadd [#allocation4], %s3114
      %s3117 = sshll.u32 [#allocation7], 4
      %s3118 = int_to_ptr.vmem [resolvable:$true] %s3117
      %3120 = dma.vmem_to_hbm [thread:$0]  %s3118, 128, %s4, [#allocation4]
    $region29: #{tpu_custom_call.1} parent=1 // pred_fallthru
      _
    // Predicated region
    $region30: #{tpu_custom_call.1} parent=1 // pred_check
      _
    $region31: #{tpu_custom_call.1} parent=1 // pred_check_branch
      %3122 = sbr.rel (0) target = $region33
    $region32: #{tpu_custom_call.1} parent=1 // pred_region
      _
    $region33: #{tpu_custom_call.1} parent=1 // pred_fallthru
      _
    // Predicated region
    $region34: #{tpu_custom_call.1} parent=1 // pred_check
      _
    $region35: #{tpu_custom_call.1} parent=1 // pred_check_branch
      %3124 = sbr.rel (0) target = $region37
    $region36: #{tpu_custom_call.1} parent=1 // pred_region
      %3125 = dma.done [#allocation4], 128
    $region37: #{tpu_custom_call.1} parent=1 // pred_fallthru
      _
    // Predicated region
    $region38: #{tpu_custom_call.1} parent=1 // pred_check
      _
    $region39: #{tpu_custom_call.1} parent=1 // pred_check_branch
      %3127 = sbr.rel (0) target = $region41
    $region40: #{tpu_custom_call.1} parent=1 // pred_region
      _
    $region41: #{tpu_custom_call.1} parent=1 // pred_fallthru
      _
    %3128 = vsyncpa [#allocation3], 1
    %3129 = vsyncpa [#allocation4], 1
    %3130 = vsyncpa [#allocation5], 1

</llo_original>
